<compile_context>
chip_gen: v6e
topology: v6e:2x2x1
jax: 0.10.0
libtpu: 0.0.40
codegen_flags: <defaults>
</compile_context>

<pallas_src>
import math
import numpy as np
import jax
import jax.numpy as jnp
from jax.experimental import pallas as pl
from jax.experimental.pallas import tpu as pltpu

# ----------------------------- configuration --------------------------------
D_IN, D_OUT = 1, 1            # max input / output degrees
C_IN, C_OUT = 2, 2            # channel multiplicities
N = 16                        # nodes
K = 8                         # incoming edges per node (regular graph)
E = N * K                     # edges (dst-major: dst[e] = e // K)
HID = 16                      # radial MLP hidden width
C0P = 8                       # radial input (c_in+1 = 3) zero-padded to 8
L_MIN = min(D_IN, D_OUT)
L_TOTAL = (L_MIN + 1) ** 2    # concatenated degree dim of q / k
TE_LANES = 128                # edges per grid step (one full lane dim)

PAIRS = [(k, l) for l in range(D_OUT + 1) for k in range(D_IN + 1)]
# only pairs with l <= min(d_in, d_out) are ever read by calc_k; the torch
# module computes the others and discards them, we simply skip them.
ACTIVE_PAIRS = [(k, l) for l in range(L_MIN + 1) for k in range(D_IN + 1)]
N_ACT = len(ACTIVE_PAIRS)


def j_size(k, l):
    return 2 * min(k, l) + 1


def r_size(k, l):
    return j_size(k, l) * C_OUT * C_IN


R_SZ = [r_size(k, l) for (k, l) in ACTIVE_PAIRS]
R_OFF = [sum(R_SZ[:i]) for i in range(N_ACT)]
R_TOT = sum(R_SZ)                                               # 24
WJ_SZ = [j_size(k, l) * (2 * l + 1) * (2 * k + 1) for (k, l) in ACTIVE_PAIRS]
WJ_OFF = [sum(WJ_SZ[:i]) for i in range(N_ACT)]
WJ_TOT = sum(WJ_SZ)                                             # 34
FD_SZ = [C_IN * (2 * k + 1) for k in range(D_IN + 1)]
FD_OFF = [sum(FD_SZ[:i]) for i in range(D_IN + 1)]              # [0, 2]
FD_TOT = sum(FD_SZ)                                             # 8

# f32 precision only used for the tiny glue einsums / the segment-sum matmul.
HIMM = dict(precision=jax.lax.Precision.HIGHEST, preferred_element_type=jnp.float32)


# ------------------------------- kernel --------------------------------------
def attn_fused_kernel(x0s_ref, x0d_ref, fdst_ref, wj_ref, q_ref,
                      w1_ref, w2_ref, w3_ref, vec_ref, b3_ref, seg_ref,
                      a_ref):
    """Radial MLPs + CG contraction + q.k dot + fused per-dst softmax.

    All per-edge refs are (rows, TE) with TE = 128 edges in the lane dim.
    """
    f32 = jnp.float32
    TE = a_ref.shape[1]

    # ---- prep_input: x0 = cat(sum_m f0[src]*f0[dst], dist, 0-pad) as (C0P, TE)
    # x0d rows: [f0[dst,0], f0[dst,1], 1, 0...], so one multiply builds x0.
    x0 = x0s_ref[...] * x0d_ref[...]

    # ---- batched radial MLPs for all active (k,l) pairs: 3 MXU matmuls,
    #      bf16 operands / f32 accumulation (weights already bf16).
    def mm(w_bf16, x_f32):
        return jnp.dot(w_bf16, x_f32.astype(jnp.bfloat16),
                       preferred_element_type=f32)

    vec = vec_ref[...]                                    # (N_ACT*HID, 8) f32
    b1, g1, be1 = vec[:, 0:1], vec[:, 1:2], vec[:, 2:3]
    b2, g2, be2 = vec[:, 3:4], vec[:, 4:5], vec[:, 5:6]

    def group_layernorm(h, g, b, eps=1e-5):
        # per-pair LayerNorm over its 16 hidden rows (f32, exact like torch)
        parts = []
        for p in range(N_ACT):
            hp = h[p * HID:(p + 1) * HID, :]
            mu = jnp.mean(hp, axis=0, keepdims=True)
            var = jnp.mean((hp - mu) ** 2, axis=0, keepdims=True)
            parts.append((hp - mu) * jax.lax.rsqrt(var + eps))
        return jnp.concatenate(parts, axis=0) * g + b

    h = mm(w1_ref[...], x0) + b1                          # (N_ACT*HID, TE)
    h = jnp.maximum(group_layernorm(h, g1, be1), 0.0)
    h = mm(w2_ref[...], h) + b2
    h = jnp.maximum(group_layernorm(h, g2, be2), 0.0)
    R = mm(w3_ref[...], h) + b3_ref[...]                  # (R_TOT, TE)

    # ---- Clebsch-Gordan-style contraction + q.k dot, all (1, TE) rows (f32)
    wj = wj_ref[...]                                      # (WJ_TOT, TE)
    fd = fdst_ref[...]                                    # (FD_TOT, TE)
    q = q_ref[...]                                        # (C_OUT*L_TOTAL, TE)

    def row(a, r):
        return a[r:r + 1, :]

    dot = jnp.zeros((1, TE), f32)
    for p_idx, (kd, ld) in enumerate(ACTIVE_PAIRS):
        J = j_size(kd, ld)
        dl, dk = 2 * ld + 1, 2 * kd + 1
        rb, wb, fb, l_off = R_OFF[p_idx], WJ_OFF[p_idx], FD_OFF[kd], ld * ld
        for lm in range(dl):
            # s[j,i] = sum_m wj[j,lm,m] * f_dst[i,m]   (shared across o)
            s = {}
            for j in range(J):
                for i in range(C_IN):
                    acc = row(wj, wb + (j * dl + lm) * dk) * row(fd, fb + i * dk)
                    for m in range(1, dk):
                        acc = acc + (row(wj, wb + (j * dl + lm) * dk + m)
                                     * row(fd, fb + i * dk + m))
                    s[(j, i)] = acc
            # k[o, l_off+lm] = sum_{j,i} R[j,o,i] * s[j,i];  dot += q * k
            for o in range(C_OUT):
                kcol = row(R, rb + o * C_IN) * s[(0, 0)]
                for j in range(J):
                    for i in range(C_IN):
                        if j == 0 and i == 0:
                            continue
                        kcol = kcol + row(R, rb + (j * C_OUT + o) * C_IN + i) * s[(j, i)]
                dot = dot + row(q, o * L_TOTAL + l_off + lm) * kcol

    # ---- fused per-dst softmax (dst-major: K consecutive lanes per node)
    m = jnp.max(dot, axis=1, keepdims=True)               # block max: stable
    p = jnp.exp(dot - m)                                  # (1, TE)
    # segment sum via one tiny MXU matmul against the precomputed same-dst
    # mask (M sublane-padded to 8); HIGHEST precision keeps it exact in f32.
    p8 = jnp.broadcast_to(p, (8, TE))
    denom = jnp.dot(p8, seg_ref[...], precision=jax.lax.Precision.HIGHEST,
                    preferred_element_type=f32)[0:1, :]   # (1, TE) group sums
    a_ref[...] = p * pl.reciprocal(denom, approx=True)


# ------------------------------ wrapper ---------------------------------------
def pack_radial_params(rad_params):
    """Pack the 4x10 radial-MLP tensors into 5 slabs (transposed, block-diag)."""
    HW = N_ACT * HID
    w1 = jnp.zeros((HW, C0P), jnp.float32)
    w2 = jnp.zeros((HW, HW), jnp.float32)
    w3 = jnp.zeros((R_TOT, HW), jnp.float32)
    vec = jnp.zeros((HW, 8), jnp.float32)
    b3 = jnp.zeros((R_TOT, 1), jnp.float32)
    for p, kl in enumerate(ACTIVE_PAIRS):
        pr = rad_params[kl]
        h0, h1 = p * HID, (p + 1) * HID
        r0, r1 = R_OFF[p], R_OFF[p] + R_SZ[p]
        w1 = w1.at[h0:h1, :].set(pr['W1'].T)
        w2 = w2.at[h0:h1, h0:h1].set(pr['W2'].T)
        w3 = w3.at[r0:r1, h0:h1].set(pr['W3'].T)
        vec = vec.at[h0:h1, 0].set(pr['b1'][0])
        vec = vec.at[h0:h1, 1].set(pr['g1'][0])
        vec = vec.at[h0:h1, 2].set(pr['be1'][0])
        vec = vec.at[h0:h1, 3].set(pr['b2'][0])
        vec = vec.at[h0:h1, 4].set(pr['g2'][0])
        vec = vec.at[h0:h1, 5].set(pr['be2'][0])
        b3 = b3.at[r0:r1, 0].set(pr['b3'][0])
    # MXU operands in bf16 (f32 accumulation happens in the kernel).
    return (w1.astype(jnp.bfloat16), w2.astype(jnp.bfloat16),
            w3.astype(jnp.bfloat16), vec, b3)


def attn_block_forward(f, dist, src, dst, wq, rad_params, wj_dict):
    e = dist.shape[0]
    assert e == N * K and TE_LANES % K == 0 and e % TE_LANES == 0, "layout"
    assert np.array_equal(np.asarray(dst), np.repeat(np.arange(N), K)), \
        "edges must be dst-major with a regular in-degree K"

    pad = C0P - (C_IN + 1)
    # ---- glue: gathers, q projection, flatten/transpose to (rows, E) layout
    # TODO(synk): DGL graph gathers (f[.][src], f[.][dst]) have no Pallas
    # equivalent at this size; they stay as XLA gathers in the wrapper.
    f0s = f[0][src, :, 0]                                             # (E, C_IN)
    f0d = f[0][dst, :, 0]
    x0_src = jnp.concatenate(
        [f0s, dist[:, None], jnp.zeros((e, pad), jnp.float32)], axis=1).T
    x0_dst = jnp.concatenate(
        [f0d, jnp.ones((e, 1), jnp.float32), jnp.zeros((e, pad), jnp.float32)],
        axis=1).T
    fdst_all = jnp.concatenate(
        [f[k][dst].reshape(e, C_IN * (2 * k + 1)) for k in range(D_IN + 1)],
        axis=1).T                                                      # (8, E)
    wj_all = jnp.concatenate(
        [wj_dict[kl].reshape(e, -1) for kl in ACTIVE_PAIRS], axis=1).T  # (34, E)

    ql = [jnp.einsum('oi,nik->nok', wq[k], f[k], **HIMM) for k in range(L_MIN + 1)]
    q = jnp.concatenate(ql, axis=2)                                    # (N, C_OUT, L_TOTAL)
    q_dst = q[dst].reshape(e, C_OUT * L_TOTAL).T                       # (8, E)

    w1, w2, w3, vec, b3 = pack_radial_params(rad_params)

    # precomputed same-dst segment mask for one 128-edge block (dst-major)
    lane = np.arange(TE_LANES)
    seg_mask = jnp.asarray((lane[:, None] // K) == (lane[None, :] // K),
                           jnp.float32)                                # (128, 128)

    edge_inputs = [x0_src, x0_dst, fdst_all, wj_all, q_dst]
    param_inputs = [w1, w2, w3, vec, b3, seg_mask]

    nblk = e // TE_LANES                                               # 1 here

    def edge_spec(a):
        return pl.BlockSpec((a.shape[0], TE_LANES), lambda i: (0, i))

    def full_spec(a):
        return pl.BlockSpec(a.shape, lambda i: (0, 0))

    a2d = pl.pallas_call(
        attn_fused_kernel,
        out_shape=jax.ShapeDtypeStruct((1, e), jnp.float32),
        grid=(nblk,),
        in_specs=[edge_spec(a) for a in edge_inputs]
                 + [full_spec(a) for a in param_inputs],
        out_specs=pl.BlockSpec((1, TE_LANES), lambda i: (0, i)),
        compiler_params=pltpu.CompilerParams(dimension_semantics=("parallel",)),
    )(*edge_inputs, *param_inputs)
    return a2d.reshape(e)                  # one attention weight per edge


# ------------------------- pure-JAX reference ---------------------------------
def _layernorm_ref(x, g, b, eps=1e-5):
    mu = x.mean(axis=-1, keepdims=True)
    var = ((x - mu) ** 2).mean(axis=-1, keepdims=True)
    return (x - mu) * jax.lax.rsqrt(var + eps) * g + b


def attn_block_reference(f, dist, src, dst, wq, rad_params, wj_dict):
    # Same math as the torch module; radial-MLP matmul operands are rounded to
    # bf16 (native TPU MXU numerics, matching the kernel), everything else f32.
    bf = lambda x: x.astype(jnp.bfloat16)
    mmf = lambda a, b: jnp.dot(bf(a), bf(b), preferred_element_type=jnp.float32)

    ql = [jnp.einsum('oi,nik->nok', wq[k], f[k], **HIMM) for k in range(L_MIN + 1)]
    q = jnp.concatenate(ql, axis=2)

    zero = jnp.sum(f[0][src] * f[0][dst], axis=2)
    x0 = jnp.concatenate(
        [zero, dist[:, None], jnp.zeros((E, C0P - (C_IN + 1)), jnp.float32)], axis=1)

    kl_parts = []
    for l in range(L_MIN + 1):
        s = 0.0
        for k in range(D_IN + 1):
            p = rad_params[(k, l)]
            h = mmf(x0, p['W1']) + p['b1']
            h = jnp.maximum(_layernorm_ref(h, p['g1'], p['be1']), 0.0)
            h = mmf(h, p['W2']) + p['b2']
            h = jnp.maximum(_layernorm_ref(h, p['g2'], p['be2']), 0.0)
            R = (mmf(h, p['W3']) + p['b3']).reshape(E, j_size(k, l), C_OUT, C_IN)
            w_ed = jnp.einsum('ejoi,ejlk->eoilk', R, wj_dict[(k, l)], **HIMM)
            s = s + jnp.einsum('eoilk,eik->eol', w_ed, f[k][dst], **HIMM)
        kl_parts.append(s)
    kv = jnp.concatenate(kl_parts, axis=2)
    dot = jnp.einsum('eol,eol->e', q[dst], kv, **HIMM)
    dot2 = dot.reshape(N, K)
    m = jnp.max(dot2, axis=1)
    lse = m + jnp.log(jnp.sum(jnp.exp(dot2 - m[:, None]), axis=1))
    return jnp.exp(dot - lse[dst])


# --------------------------------- main ----------------------------------------
if __name__ == "__main__":
    keys = iter(jax.random.split(jax.random.PRNGKey(0), 128))

    def xavier(shape):
        std = math.sqrt(2.0 / (shape[0] + shape[1]))
        return std * jax.random.normal(next(keys), shape, jnp.float32)

    # parameters (deterministic synthetic init; shapes from AttnBlock.__init__)
    wq = (math.sqrt(2.0 / (C_OUT + C_IN))
          * jax.random.normal(next(keys), (D_IN + 1, C_OUT, C_IN), jnp.float32))

    rad_params = {}
    for (k, l) in PAIRS:
        rs = r_size(k, l)
        W1 = jnp.zeros((C0P, HID), jnp.float32).at[:C_IN + 1].set(xavier((C_IN + 1, HID)))
        rad_params[(k, l)] = dict(
            W1=W1,
            b1=0.1 * jax.random.normal(next(keys), (1, HID), jnp.float32),
            g1=jnp.ones((1, HID), jnp.float32), be1=jnp.zeros((1, HID), jnp.float32),
            W2=xavier((HID, HID)),
            b2=0.1 * jax.random.normal(next(keys), (1, HID), jnp.float32),
            g2=jnp.ones((1, HID), jnp.float32), be2=jnp.zeros((1, HID), jnp.float32),
            W3=xavier((HID, rs)),
            b3=0.1 * jax.random.normal(next(keys), (1, rs), jnp.float32),
        )

    # synthetic graph + type-k features f[k]: (N, C_IN, 2k+1)
    f = {k: jax.random.normal(next(keys), (N, C_IN, 2 * k + 1), jnp.float32)
         for k in range(D_IN + 1)}
    dist = jax.random.uniform(next(keys), (E,), jnp.float32, 0.1, 2.0)
    dst = jnp.repeat(jnp.arange(N, dtype=jnp.int32), K)          # dst-major order
    src = jax.random.randint(next(keys), (E,), 0, N, jnp.int32)
    wj_dict = {(k, l): jax.random.normal(
        next(keys), (E, j_size(k, l), 2 * l + 1, 2 * k + 1), jnp.float32)
        for (k, l) in PAIRS}

    a = jax.block_until_ready(
        attn_block_forward(f, dist, src, dst, wq, rad_params, wj_dict))

    a_ref = attn_block_reference(f, dist, src, dst, wq, rad_params, wj_dict)
    err = float(jnp.max(jnp.abs(a - a_ref)))
    assert err < 1e-2, f"mismatch vs reference, max abs err = {err}"
    print("KERNEL_OK")
</pallas_src>

<mosaic_0001>
module attributes {stable_mosaic.version = 11 : i64} {
  func.func @attn_fused_kernel(%arg0: i32, %arg1: memref<8x128xf32, #tpu.memory_space<vmem>>, %arg2: memref<8x128xf32, #tpu.memory_space<vmem>>, %arg3: memref<8x128xf32, #tpu.memory_space<vmem>>, %arg4: memref<34x128xf32, #tpu.memory_space<vmem>>, %arg5: memref<8x128xf32, #tpu.memory_space<vmem>>, %arg6: memref<64x8xbf16, #tpu.memory_space<vmem>>, %arg7: memref<64x64xbf16, #tpu.memory_space<vmem>>, %arg8: memref<24x64xbf16, #tpu.memory_space<vmem>>, %arg9: memref<64x8xf32, #tpu.memory_space<vmem>>, %arg10: memref<24x1xf32, #tpu.memory_space<vmem>>, %arg11: memref<128x128xf32, #tpu.memory_space<vmem>>, %arg12: memref<1x128xf32, #tpu.memory_space<vmem>>) attributes {dimension_semantics = [#tpu.dimension_semantics<parallel>], iteration_bounds = array<i64: 1>, scalar_prefetch = 0 : i64, scratch_operands = 0 : i64, tpu.core_type = #tpu.core_type<tc>, window_params = [{transform_indices = @transform_0, window_bounds = array<i64: 8, 128>}, {transform_indices = @transform_1, window_bounds = array<i64: 8, 128>}, {transform_indices = @transform_2, window_bounds = array<i64: 8, 128>}, {transform_indices = @transform_3, window_bounds = array<i64: 34, 128>}, {transform_indices = @transform_4, window_bounds = array<i64: 8, 128>}, {pipeline_mode = #tpu.pipeline_mode<synchronous>, transform_indices = @transform_5, window_bounds = array<i64: 64, 8>}, {pipeline_mode = #tpu.pipeline_mode<synchronous>, transform_indices = @transform_6, window_bounds = array<i64: 64, 64>}, {pipeline_mode = #tpu.pipeline_mode<synchronous>, transform_indices = @transform_7, window_bounds = array<i64: 24, 64>}, {pipeline_mode = #tpu.pipeline_mode<synchronous>, transform_indices = @transform_8, window_bounds = array<i64: 64, 8>}, {pipeline_mode = #tpu.pipeline_mode<synchronous>, transform_indices = @transform_9, window_bounds = array<i64: 24, 1>}, {pipeline_mode = #tpu.pipeline_mode<synchronous>, transform_indices = @transform_10, window_bounds = array<i64: 128, 128>}, {transform_indices = @transform_11, window_bounds = array<i64: 1, 128>}]} {
    %c0 = arith.constant 0 : index
    %c0_0 = arith.constant 0 : index
    %0 = vector.load %arg1[%c0, %c0_0] : memref<8x128xf32, #tpu.memory_space<vmem>>, vector<8x128xf32>
    %c0_1 = arith.constant 0 : index
    %c0_2 = arith.constant 0 : index
    %1 = vector.load %arg2[%c0_1, %c0_2] : memref<8x128xf32, #tpu.memory_space<vmem>>, vector<8x128xf32>
    %2 = arith.mulf %0, %1 : vector<8x128xf32>
    %c0_3 = arith.constant 0 : index
    %c0_4 = arith.constant 0 : index
    %3 = vector.load %arg9[%c0_3, %c0_4] : memref<64x8xf32, #tpu.memory_space<vmem>>, vector<64x8xf32>
    %4 = vector.extract_strided_slice %3 {offsets = [0, 0], sizes = [64, 1], strides = [1, 1]} : vector<64x8xf32> to vector<64x1xf32>
    %5 = vector.extract_strided_slice %3 {offsets = [0, 1], sizes = [64, 1], strides = [1, 1]} : vector<64x8xf32> to vector<64x1xf32>
    %6 = vector.extract_strided_slice %3 {offsets = [0, 2], sizes = [64, 1], strides = [1, 1]} : vector<64x8xf32> to vector<64x1xf32>
    %7 = vector.extract_strided_slice %3 {offsets = [0, 3], sizes = [64, 1], strides = [1, 1]} : vector<64x8xf32> to vector<64x1xf32>
    %8 = vector.extract_strided_slice %3 {offsets = [0, 4], sizes = [64, 1], strides = [1, 1]} : vector<64x8xf32> to vector<64x1xf32>
    %9 = vector.extract_strided_slice %3 {offsets = [0, 5], sizes = [64, 1], strides = [1, 1]} : vector<64x8xf32> to vector<64x1xf32>
    %c0_5 = arith.constant 0 : index
    %c0_6 = arith.constant 0 : index
    %10 = vector.load %arg6[%c0_5, %c0_6] : memref<64x8xbf16, #tpu.memory_space<vmem>>, vector<64x8xbf16>
    %11 = arith.truncf %2 : vector<8x128xf32> to vector<8x128xbf16>
    %cst = arith.constant dense<0.000000e+00> : vector<64x128xf32>
    %12 = tpu.matmul %10, %11, %cst {dimension_numbers = #tpu.dot_dimension_numbers<[1], [0], [0], [1], [0, 0, 1, 1], [], []>} : vector<64x8xbf16>, vector<8x128xbf16>, vector<64x128xf32> -> vector<64x128xf32>
    %13 = vector.broadcast %4 : vector<64x1xf32> to vector<64x128xf32>
    %14 = arith.addf %12, %13 : vector<64x128xf32>
    %15 = vector.extract_strided_slice %14 {offsets = [0, 0], sizes = [16, 128], strides = [1, 1]} : vector<64x128xf32> to vector<16x128xf32>
    %cst_7 = arith.constant dense<0.000000e+00> : vector<128xf32>
    %16 = vector.multi_reduction <add>, %15, %cst_7 [0] : vector<16x128xf32> to vector<128xf32>
    %17 = vector.shape_cast %16 : vector<128xf32> to vector<1x128xf32>
    %cst_8 = arith.constant 1.600000e+01 : f32
    %18 = vector.broadcast %cst_8 : f32 to vector<1x128xf32>
    %19 = arith.divf %17, %18 : vector<1x128xf32>
    %20 = vector.broadcast %19 : vector<1x128xf32> to vector<16x128xf32>
    %21 = arith.subf %15, %20 : vector<16x128xf32>
    %22 = arith.mulf %21, %21 : vector<16x128xf32>
    %cst_9 = arith.constant dense<0.000000e+00> : vector<128xf32>
    %23 = vector.multi_reduction <add>, %22, %cst_9 [0] : vector<16x128xf32> to vector<128xf32>
    %24 = vector.shape_cast %23 : vector<128xf32> to vector<1x128xf32>
    %cst_10 = arith.constant 1.600000e+01 : f32
    %25 = vector.broadcast %cst_10 : f32 to vector<1x128xf32>
    %26 = arith.divf %24, %25 : vector<1x128xf32>
    %27 = vector.broadcast %19 : vector<1x128xf32> to vector<16x128xf32>
    %28 = arith.subf %15, %27 : vector<16x128xf32>
    %cst_11 = arith.constant 9.99999974E-6 : f32
    %29 = vector.broadcast %cst_11 : f32 to vector<1x128xf32>
    %30 = arith.addf %26, %29 : vector<1x128xf32>
    %31 = math.rsqrt %30 : vector<1x128xf32>
    %32 = vector.broadcast %31 : vector<1x128xf32> to vector<16x128xf32>
    %33 = arith.mulf %28, %32 : vector<16x128xf32>
    %34 = vector.extract_strided_slice %14 {offsets = [16, 0], sizes = [16, 128], strides = [1, 1]} : vector<64x128xf32> to vector<16x128xf32>
    %cst_12 = arith.constant dense<0.000000e+00> : vector<128xf32>
    %35 = vector.multi_reduction <add>, %34, %cst_12 [0] : vector<16x128xf32> to vector<128xf32>
    %36 = vector.shape_cast %35 : vector<128xf32> to vector<1x128xf32>
    %cst_13 = arith.constant 1.600000e+01 : f32
    %37 = vector.broadcast %cst_13 : f32 to vector<1x128xf32>
    %38 = arith.divf %36, %37 : vector<1x128xf32>
    %39 = vector.broadcast %38 : vector<1x128xf32> to vector<16x128xf32>
    %40 = arith.subf %34, %39 : vector<16x128xf32>
    %41 = arith.mulf %40, %40 : vector<16x128xf32>
    %cst_14 = arith.constant dense<0.000000e+00> : vector<128xf32>
    %42 = vector.multi_reduction <add>, %41, %cst_14 [0] : vector<16x128xf32> to vector<128xf32>
    %43 = vector.shape_cast %42 : vector<128xf32> to vector<1x128xf32>
    %cst_15 = arith.constant 1.600000e+01 : f32
    %44 = vector.broadcast %cst_15 : f32 to vector<1x128xf32>
    %45 = arith.divf %43, %44 : vector<1x128xf32>
    %46 = vector.broadcast %38 : vector<1x128xf32> to vector<16x128xf32>
    %47 = arith.subf %34, %46 : vector<16x128xf32>
    %cst_16 = arith.constant 9.99999974E-6 : f32
    %48 = vector.broadcast %cst_16 : f32 to vector<1x128xf32>
    %49 = arith.addf %45, %48 : vector<1x128xf32>
    %50 = math.rsqrt %49 : vector<1x128xf32>
    %51 = vector.broadcast %50 : vector<1x128xf32> to vector<16x128xf32>
    %52 = arith.mulf %47, %51 : vector<16x128xf32>
    %53 = vector.extract_strided_slice %14 {offsets = [32, 0], sizes = [16, 128], strides = [1, 1]} : vector<64x128xf32> to vector<16x128xf32>
    %cst_17 = arith.constant dense<0.000000e+00> : vector<128xf32>
    %54 = vector.multi_reduction <add>, %53, %cst_17 [0] : vector<16x128xf32> to vector<128xf32>
    %55 = vector.shape_cast %54 : vector<128xf32> to vector<1x128xf32>
    %cst_18 = arith.constant 1.600000e+01 : f32
    %56 = vector.broadcast %cst_18 : f32 to vector<1x128xf32>
    %57 = arith.divf %55, %56 : vector<1x128xf32>
    %58 = vector.broadcast %57 : vector<1x128xf32> to vector<16x128xf32>
    %59 = arith.subf %53, %58 : vector<16x128xf32>
    %60 = arith.mulf %59, %59 : vector<16x128xf32>
    %cst_19 = arith.constant dense<0.000000e+00> : vector<128xf32>
    %61 = vector.multi_reduction <add>, %60, %cst_19 [0] : vector<16x128xf32> to vector<128xf32>
    %62 = vector.shape_cast %61 : vector<128xf32> to vector<1x128xf32>
    %cst_20 = arith.constant 1.600000e+01 : f32
    %63 = vector.broadcast %cst_20 : f32 to vector<1x128xf32>
    %64 = arith.divf %62, %63 : vector<1x128xf32>
    %65 = vector.broadcast %57 : vector<1x128xf32> to vector<16x128xf32>
    %66 = arith.subf %53, %65 : vector<16x128xf32>
    %cst_21 = arith.constant 9.99999974E-6 : f32
    %67 = vector.broadcast %cst_21 : f32 to vector<1x128xf32>
    %68 = arith.addf %64, %67 : vector<1x128xf32>
    %69 = math.rsqrt %68 : vector<1x128xf32>
    %70 = vector.broadcast %69 : vector<1x128xf32> to vector<16x128xf32>
    %71 = arith.mulf %66, %70 : vector<16x128xf32>
    %72 = vector.extract_strided_slice %14 {offsets = [48, 0], sizes = [16, 128], strides = [1, 1]} : vector<64x128xf32> to vector<16x128xf32>
    %cst_22 = arith.constant dense<0.000000e+00> : vector<128xf32>
    %73 = vector.multi_reduction <add>, %72, %cst_22 [0] : vector<16x128xf32> to vector<128xf32>
    %74 = vector.shape_cast %73 : vector<128xf32> to vector<1x128xf32>
    %cst_23 = arith.constant 1.600000e+01 : f32
    %75 = vector.broadcast %cst_23 : f32 to vector<1x128xf32>
    %76 = arith.divf %74, %75 : vector<1x128xf32>
    %77 = vector.broadcast %76 : vector<1x128xf32> to vector<16x128xf32>
    %78 = arith.subf %72, %77 : vector<16x128xf32>
    %79 = arith.mulf %78, %78 : vector<16x128xf32>
    %cst_24 = arith.constant dense<0.000000e+00> : vector<128xf32>
    %80 = vector.multi_reduction <add>, %79, %cst_24 [0] : vector<16x128xf32> to vector<128xf32>
    %81 = vector.shape_cast %80 : vector<128xf32> to vector<1x128xf32>
    %cst_25 = arith.constant 1.600000e+01 : f32
    %82 = vector.broadcast %cst_25 : f32 to vector<1x128xf32>
    %83 = arith.divf %81, %82 : vector<1x128xf32>
    %84 = vector.broadcast %76 : vector<1x128xf32> to vector<16x128xf32>
    %85 = arith.subf %72, %84 : vector<16x128xf32>
    %cst_26 = arith.constant 9.99999974E-6 : f32
    %86 = vector.broadcast %cst_26 : f32 to vector<1x128xf32>
    %87 = arith.addf %83, %86 : vector<1x128xf32>
    %88 = math.rsqrt %87 : vector<1x128xf32>
    %89 = vector.broadcast %88 : vector<1x128xf32> to vector<16x128xf32>
    %90 = arith.mulf %85, %89 : vector<16x128xf32>
    %91 = tpu.concatenate %33, %52, %71, %90 in 0 : vector<16x128xf32>, vector<16x128xf32>, vector<16x128xf32>, vector<16x128xf32> -> vector<64x128xf32>
    %92 = vector.broadcast %5 : vector<64x1xf32> to vector<64x128xf32>
    %93 = arith.mulf %91, %92 : vector<64x128xf32>
    %94 = vector.broadcast %6 : vector<64x1xf32> to vector<64x128xf32>
    %95 = arith.addf %93, %94 : vector<64x128xf32>
    %cst_27 = arith.constant 0.000000e+00 : f32
    %96 = vector.broadcast %cst_27 : f32 to vector<64x128xf32>
    %97 = arith.maximumf %95, %96 : vector<64x128xf32>
    %c0_28 = arith.constant 0 : index
    %c0_29 = arith.constant 0 : index
    %98 = vector.load %arg7[%c0_28, %c0_29] : memref<64x64xbf16, #tpu.memory_space<vmem>>, vector<64x64xbf16>
    %99 = arith.truncf %97 : vector<64x128xf32> to vector<64x128xbf16>
    %cst_30 = arith.constant dense<0.000000e+00> : vector<64x128xf32>
    %100 = tpu.matmul %98, %99, %cst_30 {dimension_numbers = #tpu.dot_dimension_numbers<[1], [0], [0], [1], [0, 0, 1, 1], [], []>} : vector<64x64xbf16>, vector<64x128xbf16>, vector<64x128xf32> -> vector<64x128xf32>
    %101 = vector.broadcast %7 : vector<64x1xf32> to vector<64x128xf32>
    %102 = arith.addf %100, %101 : vector<64x128xf32>
    %103 = vector.extract_strided_slice %102 {offsets = [0, 0], sizes = [16, 128], strides = [1, 1]} : vector<64x128xf32> to vector<16x128xf32>
    %cst_31 = arith.constant dense<0.000000e+00> : vector<128xf32>
    %104 = vector.multi_reduction <add>, %103, %cst_31 [0] : vector<16x128xf32> to vector<128xf32>
    %105 = vector.shape_cast %104 : vector<128xf32> to vector<1x128xf32>
    %cst_32 = arith.constant 1.600000e+01 : f32
    %106 = vector.broadcast %cst_32 : f32 to vector<1x128xf32>
    %107 = arith.divf %105, %106 : vector<1x128xf32>
    %108 = vector.broadcast %107 : vector<1x128xf32> to vector<16x128xf32>
    %109 = arith.subf %103, %108 : vector<16x128xf32>
    %110 = arith.mulf %109, %109 : vector<16x128xf32>
    %cst_33 = arith.constant dense<0.000000e+00> : vector<128xf32>
    %111 = vector.multi_reduction <add>, %110, %cst_33 [0] : vector<16x128xf32> to vector<128xf32>
    %112 = vector.shape_cast %111 : vector<128xf32> to vector<1x128xf32>
    %cst_34 = arith.constant 1.600000e+01 : f32
    %113 = vector.broadcast %cst_34 : f32 to vector<1x128xf32>
    %114 = arith.divf %112, %113 : vector<1x128xf32>
    %115 = vector.broadcast %107 : vector<1x128xf32> to vector<16x128xf32>
    %116 = arith.subf %103, %115 : vector<16x128xf32>
    %cst_35 = arith.constant 9.99999974E-6 : f32
    %117 = vector.broadcast %cst_35 : f32 to vector<1x128xf32>
    %118 = arith.addf %114, %117 : vector<1x128xf32>
    %119 = math.rsqrt %118 : vector<1x128xf32>
    %120 = vector.broadcast %119 : vector<1x128xf32> to vector<16x128xf32>
    %121 = arith.mulf %116, %120 : vector<16x128xf32>
    %122 = vector.extract_strided_slice %102 {offsets = [16, 0], sizes = [16, 128], strides = [1, 1]} : vector<64x128xf32> to vector<16x128xf32>
    %cst_36 = arith.constant dense<0.000000e+00> : vector<128xf32>
    %123 = vector.multi_reduction <add>, %122, %cst_36 [0] : vector<16x128xf32> to vector<128xf32>
    %124 = vector.shape_cast %123 : vector<128xf32> to vector<1x128xf32>
    %cst_37 = arith.constant 1.600000e+01 : f32
    %125 = vector.broadcast %cst_37 : f32 to vector<1x128xf32>
    %126 = arith.divf %124, %125 : vector<1x128xf32>
    %127 = vector.broadcast %126 : vector<1x128xf32> to vector<16x128xf32>
    %128 = arith.subf %122, %127 : vector<16x128xf32>
    %129 = arith.mulf %128, %128 : vector<16x128xf32>
    %cst_38 = arith.constant dense<0.000000e+00> : vector<128xf32>
    %130 = vector.multi_reduction <add>, %129, %cst_38 [0] : vector<16x128xf32> to vector<128xf32>
    %131 = vector.shape_cast %130 : vector<128xf32> to vector<1x128xf32>
    %cst_39 = arith.constant 1.600000e+01 : f32
    %132 = vector.broadcast %cst_39 : f32 to vector<1x128xf32>
    %133 = arith.divf %131, %132 : vector<1x128xf32>
    %134 = vector.broadcast %126 : vector<1x128xf32> to vector<16x128xf32>
    %135 = arith.subf %122, %134 : vector<16x128xf32>
    %cst_40 = arith.constant 9.99999974E-6 : f32
    %136 = vector.broadcast %cst_40 : f32 to vector<1x128xf32>
    %137 = arith.addf %133, %136 : vector<1x128xf32>
    %138 = math.rsqrt %137 : vector<1x128xf32>
    %139 = vector.broadcast %138 : vector<1x128xf32> to vector<16x128xf32>
    %140 = arith.mulf %135, %139 : vector<16x128xf32>
    %141 = vector.extract_strided_slice %102 {offsets = [32, 0], sizes = [16, 128], strides = [1, 1]} : vector<64x128xf32> to vector<16x128xf32>
    %cst_41 = arith.constant dense<0.000000e+00> : vector<128xf32>
    %142 = vector.multi_reduction <add>, %141, %cst_41 [0] : vector<16x128xf32> to vector<128xf32>
    %143 = vector.shape_cast %142 : vector<128xf32> to vector<1x128xf32>
    %cst_42 = arith.constant 1.600000e+01 : f32
    %144 = vector.broadcast %cst_42 : f32 to vector<1x128xf32>
    %145 = arith.divf %143, %144 : vector<1x128xf32>
    %146 = vector.broadcast %145 : vector<1x128xf32> to vector<16x128xf32>
    %147 = arith.subf %141, %146 : vector<16x128xf32>
    %148 = arith.mulf %147, %147 : vector<16x128xf32>
    %cst_43 = arith.constant dense<0.000000e+00> : vector<128xf32>
    %149 = vector.multi_reduction <add>, %148, %cst_43 [0] : vector<16x128xf32> to vector<128xf32>
    %150 = vector.shape_cast %149 : vector<128xf32> to vector<1x128xf32>
    %cst_44 = arith.constant 1.600000e+01 : f32
    %151 = vector.broadcast %cst_44 : f32 to vector<1x128xf32>
    %152 = arith.divf %150, %151 : vector<1x128xf32>
    %153 = vector.broadcast %145 : vector<1x128xf32> to vector<16x128xf32>
    %154 = arith.subf %141, %153 : vector<16x128xf32>
    %cst_45 = arith.constant 9.99999974E-6 : f32
    %155 = vector.broadcast %cst_45 : f32 to vector<1x128xf32>
    %156 = arith.addf %152, %155 : vector<1x128xf32>
    %157 = math.rsqrt %156 : vector<1x128xf32>
    %158 = vector.broadcast %157 : vector<1x128xf32> to vector<16x128xf32>
    %159 = arith.mulf %154, %158 : vector<16x128xf32>
    %160 = vector.extract_strided_slice %102 {offsets = [48, 0], sizes = [16, 128], strides = [1, 1]} : vector<64x128xf32> to vector<16x128xf32>
    %cst_46 = arith.constant dense<0.000000e+00> : vector<128xf32>
    %161 = vector.multi_reduction <add>, %160, %cst_46 [0] : vector<16x128xf32> to vector<128xf32>
    %162 = vector.shape_cast %161 : vector<128xf32> to vector<1x128xf32>
    %cst_47 = arith.constant 1.600000e+01 : f32
    %163 = vector.broadcast %cst_47 : f32 to vector<1x128xf32>
    %164 = arith.divf %162, %163 : vector<1x128xf32>
    %165 = vector.broadcast %164 : vector<1x128xf32> to vector<16x128xf32>
    %166 = arith.subf %160, %165 : vector<16x128xf32>
    %167 = arith.mulf %166, %166 : vector<16x128xf32>
    %cst_48 = arith.constant dense<0.000000e+00> : vector<128xf32>
    %168 = vector.multi_reduction <add>, %167, %cst_48 [0] : vector<16x128xf32> to vector<128xf32>
    %169 = vector.shape_cast %168 : vector<128xf32> to vector<1x128xf32>
    %cst_49 = arith.constant 1.600000e+01 : f32
    %170 = vector.broadcast %cst_49 : f32 to vector<1x128xf32>
    %171 = arith.divf %169, %170 : vector<1x128xf32>
    %172 = vector.broadcast %164 : vector<1x128xf32> to vector<16x128xf32>
    %173 = arith.subf %160, %172 : vector<16x128xf32>
    %cst_50 = arith.constant 9.99999974E-6 : f32
    %174 = vector.broadcast %cst_50 : f32 to vector<1x128xf32>
    %175 = arith.addf %171, %174 : vector<1x128xf32>
    %176 = math.rsqrt %175 : vector<1x128xf32>
    %177 = vector.broadcast %176 : vector<1x128xf32> to vector<16x128xf32>
    %178 = arith.mulf %173, %177 : vector<16x128xf32>
    %179 = tpu.concatenate %121, %140, %159, %178 in 0 : vector<16x128xf32>, vector<16x128xf32>, vector<16x128xf32>, vector<16x128xf32> -> vector<64x128xf32>
    %180 = vector.broadcast %8 : vector<64x1xf32> to vector<64x128xf32>
    %181 = arith.mulf %179, %180 : vector<64x128xf32>
    %182 = vector.broadcast %9 : vector<64x1xf32> to vector<64x128xf32>
    %183 = arith.addf %181, %182 : vector<64x128xf32>
    %cst_51 = arith.constant 0.000000e+00 : f32
    %184 = vector.broadcast %cst_51 : f32 to vector<64x128xf32>
    %185 = arith.maximumf %183, %184 : vector<64x128xf32>
    %c0_52 = arith.constant 0 : index
    %c0_53 = arith.constant 0 : index
    %186 = vector.load %arg8[%c0_52, %c0_53] : memref<24x64xbf16, #tpu.memory_space<vmem>>, vector<24x64xbf16>
    %187 = arith.truncf %185 : vector<64x128xf32> to vector<64x128xbf16>
    %cst_54 = arith.constant dense<0.000000e+00> : vector<24x128xf32>
    %188 = tpu.matmul %186, %187, %cst_54 {dimension_numbers = #tpu.dot_dimension_numbers<[1], [0], [0], [1], [0, 0, 1, 1], [], []>} : vector<24x64xbf16>, vector<64x128xbf16>, vector<24x128xf32> -> vector<24x128xf32>
    %c0_55 = arith.constant 0 : index
    %c0_56 = arith.constant 0 : index
    %189 = vector.load %arg10[%c0_55, %c0_56] : memref<24x1xf32, #tpu.memory_space<vmem>>, vector<24x1xf32>
    %190 = vector.broadcast %189 : vector<24x1xf32> to vector<24x128xf32>
    %191 = arith.addf %188, %190 : vector<24x128xf32>
    %c0_57 = arith.constant 0 : index
    %c0_58 = arith.constant 0 : index
    %192 = vector.load %arg4[%c0_57, %c0_58] : memref<34x128xf32, #tpu.memory_space<vmem>>, vector<34x128xf32>
    %c0_59 = arith.constant 0 : index
    %c0_60 = arith.constant 0 : index
    %193 = vector.load %arg3[%c0_59, %c0_60] : memref<8x128xf32, #tpu.memory_space<vmem>>, vector<8x128xf32>
    %c0_61 = arith.constant 0 : index
    %c0_62 = arith.constant 0 : index
    %194 = vector.load %arg5[%c0_61, %c0_62] : memref<8x128xf32, #tpu.memory_space<vmem>>, vector<8x128xf32>
    %cst_63 = arith.constant 0.000000e+00 : f32
    %195 = vector.broadcast %cst_63 : f32 to vector<1x128xf32>
    %196 = vector.extract_strided_slice %192 {offsets = [0, 0], sizes = [1, 128], strides = [1, 1]} : vector<34x128xf32> to vector<1x128xf32>
    %197 = vector.extract_strided_slice %193 {offsets = [0, 0], sizes = [1, 128], strides = [1, 1]} : vector<8x128xf32> to vector<1x128xf32>
    %198 = arith.mulf %196, %197 : vector<1x128xf32>
    %199 = vector.extract_strided_slice %192 {offsets = [0, 0], sizes = [1, 128], strides = [1, 1]} : vector<34x128xf32> to vector<1x128xf32>
    %200 = vector.extract_strided_slice %193 {offsets = [1, 0], sizes = [1, 128], strides = [1, 1]} : vector<8x128xf32> to vector<1x128xf32>
    %201 = arith.mulf %199, %200 : vector<1x128xf32>
    %202 = vector.extract_strided_slice %191 {offsets = [0, 0], sizes = [1, 128], strides = [1, 1]} : vector<24x128xf32> to vector<1x128xf32>
    %203 = arith.mulf %202, %198 : vector<1x128xf32>
    %204 = vector.extract_strided_slice %191 {offsets = [1, 0], sizes = [1, 128], strides = [1, 1]} : vector<24x128xf32> to vector<1x128xf32>
    %205 = arith.mulf %204, %201 : vector<1x128xf32>
    %206 = arith.addf %203, %205 : vector<1x128xf32>
    %207 = vector.extract_strided_slice %194 {offsets = [0, 0], sizes = [1, 128], strides = [1, 1]} : vector<8x128xf32> to vector<1x128xf32>
    %208 = arith.mulf %207, %206 : vector<1x128xf32>
    %209 = arith.addf %195, %208 : vector<1x128xf32>
    %210 = vector.extract_strided_slice %191 {offsets = [2, 0], sizes = [1, 128], strides = [1, 1]} : vector<24x128xf32> to vector<1x128xf32>
    %211 = arith.mulf %210, %198 : vector<1x128xf32>
    %212 = vector.extract_strided_slice %191 {offsets = [3, 0], sizes = [1, 128], strides = [1, 1]} : vector<24x128xf32> to vector<1x128xf32>
    %213 = arith.mulf %212, %201 : vector<1x128xf32>
    %214 = arith.addf %211, %213 : vector<1x128xf32>
    %215 = vector.extract_strided_slice %194 {offsets = [4, 0], sizes = [1, 128], strides = [1, 1]} : vector<8x128xf32> to vector<1x128xf32>
    %216 = arith.mulf %215, %214 : vector<1x128xf32>
    %217 = arith.addf %209, %216 : vector<1x128xf32>
    %218 = vector.extract_strided_slice %192 {offsets = [1, 0], sizes = [1, 128], strides = [1, 1]} : vector<34x128xf32> to vector<1x128xf32>
    %219 = vector.extract_strided_slice %193 {offsets = [2, 0], sizes = [1, 128], strides = [1, 1]} : vector<8x128xf32> to vector<1x128xf32>
    %220 = arith.mulf %218, %219 : vector<1x128xf32>
    %221 = vector.extract_strided_slice %192 {offsets = [2, 0], sizes = [1, 128], strides = [1, 1]} : vector<34x128xf32> to vector<1x128xf32>
    %222 = vector.extract_strided_slice %193 {offsets = [3, 0], sizes = [1, 128], strides = [1, 1]} : vector<8x128xf32> to vector<1x128xf32>
    %223 = arith.mulf %221, %222 : vector<1x128xf32>
    %224 = arith.addf %220, %223 : vector<1x128xf32>
    %225 = vector.extract_strided_slice %192 {offsets = [3, 0], sizes = [1, 128], strides = [1, 1]} : vector<34x128xf32> to vector<1x128xf32>
    %226 = vector.extract_strided_slice %193 {offsets = [4, 0], sizes = [1, 128], strides = [1, 1]} : vector<8x128xf32> to vector<1x128xf32>
    %227 = arith.mulf %225, %226 : vector<1x128xf32>
    %228 = arith.addf %224, %227 : vector<1x128xf32>
    %229 = vector.extract_strided_slice %192 {offsets = [1, 0], sizes = [1, 128], strides = [1, 1]} : vector<34x128xf32> to vector<1x128xf32>
    %230 = vector.extract_strided_slice %193 {offsets = [5, 0], sizes = [1, 128], strides = [1, 1]} : vector<8x128xf32> to vector<1x128xf32>
    %231 = arith.mulf %229, %230 : vector<1x128xf32>
    %232 = vector.extract_strided_slice %192 {offsets = [2, 0], sizes = [1, 128], strides = [1, 1]} : vector<34x128xf32> to vector<1x128xf32>
    %233 = vector.extract_strided_slice %193 {offsets = [6, 0], sizes = [1, 128], strides = [1, 1]} : vector<8x128xf32> to vector<1x128xf32>
    %234 = arith.mulf %232, %233 : vector<1x128xf32>
    %235 = arith.addf %231, %234 : vector<1x128xf32>
    %236 = vector.extract_strided_slice %192 {offsets = [3, 0], sizes = [1, 128], strides = [1, 1]} : vector<34x128xf32> to vector<1x128xf32>
    %237 = vector.extract_strided_slice %193 {offsets = [7, 0], sizes = [1, 128], strides = [1, 1]} : vector<8x128xf32> to vector<1x128xf32>
    %238 = arith.mulf %236, %237 : vector<1x128xf32>
    %239 = arith.addf %235, %238 : vector<1x128xf32>
    %240 = vector.extract_strided_slice %191 {offsets = [4, 0], sizes = [1, 128], strides = [1, 1]} : vector<24x128xf32> to vector<1x128xf32>
    %241 = arith.mulf %240, %228 : vector<1x128xf32>
    %242 = vector.extract_strided_slice %191 {offsets = [5, 0], sizes = [1, 128], strides = [1, 1]} : vector<24x128xf32> to vector<1x128xf32>
    %243 = arith.mulf %242, %239 : vector<1x128xf32>
    %244 = arith.addf %241, %243 : vector<1x128xf32>
    %245 = vector.extract_strided_slice %194 {offsets = [0, 0], sizes = [1, 128], strides = [1, 1]} : vector<8x128xf32> to vector<1x128xf32>
    %246 = arith.mulf %245, %244 : vector<1x128xf32>
    %247 = arith.addf %217, %246 : vector<1x128xf32>
    %248 = vector.extract_strided_slice %191 {offsets = [6, 0], sizes = [1, 128], strides = [1, 1]} : vector<24x128xf32> to vector<1x128xf32>
    %249 = arith.mulf %248, %228 : vector<1x128xf32>
    %250 = vector.extract_strided_slice %191 {offsets = [7, 0], sizes = [1, 128], strides = [1, 1]} : vector<24x128xf32> to vector<1x128xf32>
    %251 = arith.mulf %250, %239 : vector<1x128xf32>
    %252 = arith.addf %249, %251 : vector<1x128xf32>
    %253 = vector.extract_strided_slice %194 {offsets = [4, 0], sizes = [1, 128], strides = [1, 1]} : vector<8x128xf32> to vector<1x128xf32>
    %254 = arith.mulf %253, %252 : vector<1x128xf32>
    %255 = arith.addf %247, %254 : vector<1x128xf32>
    %256 = vector.extract_strided_slice %192 {offsets = [4, 0], sizes = [1, 128], strides = [1, 1]} : vector<34x128xf32> to vector<1x128xf32>
    %257 = vector.extract_strided_slice %193 {offsets = [0, 0], sizes = [1, 128], strides = [1, 1]} : vector<8x128xf32> to vector<1x128xf32>
    %258 = arith.mulf %256, %257 : vector<1x128xf32>
    %259 = vector.extract_strided_slice %192 {offsets = [4, 0], sizes = [1, 128], strides = [1, 1]} : vector<34x128xf32> to vector<1x128xf32>
    %260 = vector.extract_strided_slice %193 {offsets = [1, 0], sizes = [1, 128], strides = [1, 1]} : vector<8x128xf32> to vector<1x128xf32>
    %261 = arith.mulf %259, %260 : vector<1x128xf32>
    %262 = vector.extract_strided_slice %191 {offsets = [8, 0], sizes = [1, 128], strides = [1, 1]} : vector<24x128xf32> to vector<1x128xf32>
    %263 = arith.mulf %262, %258 : vector<1x128xf32>
    %264 = vector.extract_strided_slice %191 {offsets = [9, 0], sizes = [1, 128], strides = [1, 1]} : vector<24x128xf32> to vector<1x128xf32>
    %265 = arith.mulf %264, %261 : vector<1x128xf32>
    %266 = arith.addf %263, %265 : vector<1x128xf32>
    %267 = vector.extract_strided_slice %194 {offsets = [1, 0], sizes = [1, 128], strides = [1, 1]} : vector<8x128xf32> to vector<1x128xf32>
    %268 = arith.mulf %267, %266 : vector<1x128xf32>
    %269 = arith.addf %255, %268 : vector<1x128xf32>
    %270 = vector.extract_strided_slice %191 {offsets = [10, 0], sizes = [1, 128], strides = [1, 1]} : vector<24x128xf32> to vector<1x128xf32>
    %271 = arith.mulf %270, %258 : vector<1x128xf32>
    %272 = vector.extract_strided_slice %191 {offsets = [11, 0], sizes = [1, 128], strides = [1, 1]} : vector<24x128xf32> to vector<1x128xf32>
    %273 = arith.mulf %272, %261 : vector<1x128xf32>
    %274 = arith.addf %271, %273 : vector<1x128xf32>
    %275 = vector.extract_strided_slice %194 {offsets = [5, 0], sizes = [1, 128], strides = [1, 1]} : vector<8x128xf32> to vector<1x128xf32>
    %276 = arith.mulf %275, %274 : vector<1x128xf32>
    %277 = arith.addf %269, %276 : vector<1x128xf32>
    %278 = vector.extract_strided_slice %192 {offsets = [5, 0], sizes = [1, 128], strides = [1, 1]} : vector<34x128xf32> to vector<1x128xf32>
    %279 = vector.extract_strided_slice %193 {offsets = [0, 0], sizes = [1, 128], strides = [1, 1]} : vector<8x128xf32> to vector<1x128xf32>
    %280 = arith.mulf %278, %279 : vector<1x128xf32>
    %281 = vector.extract_strided_slice %192 {offsets = [5, 0], sizes = [1, 128], strides = [1, 1]} : vector<34x128xf32> to vector<1x128xf32>
    %282 = vector.extract_strided_slice %193 {offsets = [1, 0], sizes = [1, 128], strides = [1, 1]} : vector<8x128xf32> to vector<1x128xf32>
    %283 = arith.mulf %281, %282 : vector<1x128xf32>
    %284 = vector.extract_strided_slice %191 {offsets = [8, 0], sizes = [1, 128], strides = [1, 1]} : vector<24x128xf32> to vector<1x128xf32>
    %285 = arith.mulf %284, %280 : vector<1x128xf32>
    %286 = vector.extract_strided_slice %191 {offsets = [9, 0], sizes = [1, 128], strides = [1, 1]} : vector<24x128xf32> to vector<1x128xf32>
    %287 = arith.mulf %286, %283 : vector<1x128xf32>
    %288 = arith.addf %285, %287 : vector<1x128xf32>
    %289 = vector.extract_strided_slice %194 {offsets = [2, 0], sizes = [1, 128], strides = [1, 1]} : vector<8x128xf32> to vector<1x128xf32>
    %290 = arith.mulf %289, %288 : vector<1x128xf32>
    %291 = arith.addf %277, %290 : vector<1x128xf32>
    %292 = vector.extract_strided_slice %191 {offsets = [10, 0], sizes = [1, 128], strides = [1, 1]} : vector<24x128xf32> to vector<1x128xf32>
    %293 = arith.mulf %292, %280 : vector<1x128xf32>
    %294 = vector.extract_strided_slice %191 {offsets = [11, 0], sizes = [1, 128], strides = [1, 1]} : vector<24x128xf32> to vector<1x128xf32>
    %295 = arith.mulf %294, %283 : vector<1x128xf32>
    %296 = arith.addf %293, %295 : vector<1x128xf32>
    %297 = vector.extract_strided_slice %194 {offsets = [6, 0], sizes = [1, 128], strides = [1, 1]} : vector<8x128xf32> to vector<1x128xf32>
    %298 = arith.mulf %297, %296 : vector<1x128xf32>
    %299 = arith.addf %291, %298 : vector<1x128xf32>
    %300 = vector.extract_strided_slice %192 {offsets = [6, 0], sizes = [1, 128], strides = [1, 1]} : vector<34x128xf32> to vector<1x128xf32>
    %301 = vector.extract_strided_slice %193 {offsets = [0, 0], sizes = [1, 128], strides = [1, 1]} : vector<8x128xf32> to vector<1x128xf32>
    %302 = arith.mulf %300, %301 : vector<1x128xf32>
    %303 = vector.extract_strided_slice %192 {offsets = [6, 0], sizes = [1, 128], strides = [1, 1]} : vector<34x128xf32> to vector<1x128xf32>
    %304 = vector.extract_strided_slice %193 {offsets = [1, 0], sizes = [1, 128], strides = [1, 1]} : vector<8x128xf32> to vector<1x128xf32>
    %305 = arith.mulf %303, %304 : vector<1x128xf32>
    %306 = vector.extract_strided_slice %191 {offsets = [8, 0], sizes = [1, 128], strides = [1, 1]} : vector<24x128xf32> to vector<1x128xf32>
    %307 = arith.mulf %306, %302 : vector<1x128xf32>
    %308 = vector.extract_strided_slice %191 {offsets = [9, 0], sizes = [1, 128], strides = [1, 1]} : vector<24x128xf32> to vector<1x128xf32>
    %309 = arith.mulf %308, %305 : vector<1x128xf32>
    %310 = arith.addf %307, %309 : vector<1x128xf32>
    %311 = vector.extract_strided_slice %194 {offsets = [3, 0], sizes = [1, 128], strides = [1, 1]} : vector<8x128xf32> to vector<1x128xf32>
    %312 = arith.mulf %311, %310 : vector<1x128xf32>
    %313 = arith.addf %299, %312 : vector<1x128xf32>
    %314 = vector.extract_strided_slice %191 {offsets = [10, 0], sizes = [1, 128], strides = [1, 1]} : vector<24x128xf32> to vector<1x128xf32>
    %315 = arith.mulf %314, %302 : vector<1x128xf32>
    %316 = vector.extract_strided_slice %191 {offsets = [11, 0], sizes = [1, 128], strides = [1, 1]} : vector<24x128xf32> to vector<1x128xf32>
    %317 = arith.mulf %316, %305 : vector<1x128xf32>
    %318 = arith.addf %315, %317 : vector<1x128xf32>
    %319 = vector.extract_strided_slice %194 {offsets = [7, 0], sizes = [1, 128], strides = [1, 1]} : vector<8x128xf32> to vector<1x128xf32>
    %320 = arith.mulf %319, %318 : vector<1x128xf32>
    %321 = arith.addf %313, %320 : vector<1x128xf32>
    %322 = vector.extract_strided_slice %192 {offsets = [7, 0], sizes = [1, 128], strides = [1, 1]} : vector<34x128xf32> to vector<1x128xf32>
    %323 = vector.extract_strided_slice %193 {offsets = [2, 0], sizes = [1, 128], strides = [1, 1]} : vector<8x128xf32> to vector<1x128xf32>
    %324 = arith.mulf %322, %323 : vector<1x128xf32>
    %325 = vector.extract_strided_slice %192 {offsets = [8, 0], sizes = [1, 128], strides = [1, 1]} : vector<34x128xf32> to vector<1x128xf32>
    %326 = vector.extract_strided_slice %193 {offsets = [3, 0], sizes = [1, 128], strides = [1, 1]} : vector<8x128xf32> to vector<1x128xf32>
    %327 = arith.mulf %325, %326 : vector<1x128xf32>
    %328 = arith.addf %324, %327 : vector<1x128xf32>
    %329 = vector.extract_strided_slice %192 {offsets = [9, 0], sizes = [1, 128], strides = [1, 1]} : vector<34x128xf32> to vector<1x128xf32>
    %330 = vector.extract_strided_slice %193 {offsets = [4, 0], sizes = [1, 128], strides = [1, 1]} : vector<8x128xf32> to vector<1x128xf32>
    %331 = arith.mulf %329, %330 : vector<1x128xf32>
    %332 = arith.addf %328, %331 : vector<1x128xf32>
    %333 = vector.extract_strided_slice %192 {offsets = [7, 0], sizes = [1, 128], strides = [1, 1]} : vector<34x128xf32> to vector<1x128xf32>
    %334 = vector.extract_strided_slice %193 {offsets = [5, 0], sizes = [1, 128], strides = [1, 1]} : vector<8x128xf32> to vector<1x128xf32>
    %335 = arith.mulf %333, %334 : vector<1x128xf32>
    %336 = vector.extract_strided_slice %192 {offsets = [8, 0], sizes = [1, 128], strides = [1, 1]} : vector<34x128xf32> to vector<1x128xf32>
    %337 = vector.extract_strided_slice %193 {offsets = [6, 0], sizes = [1, 128], strides = [1, 1]} : vector<8x128xf32> to vector<1x128xf32>
    %338 = arith.mulf %336, %337 : vector<1x128xf32>
    %339 = arith.addf %335, %338 : vector<1x128xf32>
    %340 = vector.extract_strided_slice %192 {offsets = [9, 0], sizes = [1, 128], strides = [1, 1]} : vector<34x128xf32> to vector<1x128xf32>
    %341 = vector.extract_strided_slice %193 {offsets = [7, 0], sizes = [1, 128], strides = [1, 1]} : vector<8x128xf32> to vector<1x128xf32>
    %342 = arith.mulf %340, %341 : vector<1x128xf32>
    %343 = arith.addf %339, %342 : vector<1x128xf32>
    %344 = vector.extract_strided_slice %192 {offsets = [16, 0], sizes = [1, 128], strides = [1, 1]} : vector<34x128xf32> to vector<1x128xf32>
    %345 = vector.extract_strided_slice %193 {offsets = [2, 0], sizes = [1, 128], strides = [1, 1]} : vector<8x128xf32> to vector<1x128xf32>
    %346 = arith.mulf %344, %345 : vector<1x128xf32>
    %347 = vector.extract_strided_slice %192 {offsets = [17, 0], sizes = [1, 128], strides = [1, 1]} : vector<34x128xf32> to vector<1x128xf32>
    %348 = vector.extract_strided_slice %193 {offsets = [3, 0], sizes = [1, 128], strides = [1, 1]} : vector<8x128xf32> to vector<1x128xf32>
    %349 = arith.mulf %347, %348 : vector<1x128xf32>
    %350 = arith.addf %346, %349 : vector<1x128xf32>
    %351 = vector.extract_strided_slice %192 {offsets = [18, 0], sizes = [1, 128], strides = [1, 1]} : vector<34x128xf32> to vector<1x128xf32>
    %352 = vector.extract_strided_slice %193 {offsets = [4, 0], sizes = [1, 128], strides = [1, 1]} : vector<8x128xf32> to vector<1x128xf32>
    %353 = arith.mulf %351, %352 : vector<1x128xf32>
    %354 = arith.addf %350, %353 : vector<1x128xf32>
    %355 = vector.extract_strided_slice %192 {offsets = [16, 0], sizes = [1, 128], strides = [1, 1]} : vector<34x128xf32> to vector<1x128xf32>
    %356 = vector.extract_strided_slice %193 {offsets = [5, 0], sizes = [1, 128], strides = [1, 1]} : vector<8x128xf32> to vector<1x128xf32>
    %357 = arith.mulf %355, %356 : vector<1x128xf32>
    %358 = vector.extract_strided_slice %192 {offsets = [17, 0], sizes = [1, 128], strides = [1, 1]} : vector<34x128xf32> to vector<1x128xf32>
    %359 = vector.extract_strided_slice %193 {offsets = [6, 0], sizes = [1, 128], strides = [1, 1]} : vector<8x128xf32> to vector<1x128xf32>
    %360 = arith.mulf %358, %359 : vector<1x128xf32>
    %361 = arith.addf %357, %360 : vector<1x128xf32>
    %362 = vector.extract_strided_slice %192 {offsets = [18, 0], sizes = [1, 128], strides = [1, 1]} : vector<34x128xf32> to vector<1x128xf32>
    %363 = vector.extract_strided_slice %193 {offsets = [7, 0], sizes = [1, 128], strides = [1, 1]} : vector<8x128xf32> to vector<1x128xf32>
    %364 = arith.mulf %362, %363 : vector<1x128xf32>
    %365 = arith.addf %361, %364 : vector<1x128xf32>
    %366 = vector.extract_strided_slice %192 {offsets = [25, 0], sizes = [1, 128], strides = [1, 1]} : vector<34x128xf32> to vector<1x128xf32>
    %367 = vector.extract_strided_slice %193 {offsets = [2, 0], sizes = [1, 128], strides = [1, 1]} : vector<8x128xf32> to vector<1x128xf32>
    %368 = arith.mulf %366, %367 : vector<1x128xf32>
    %369 = vector.extract_strided_slice %192 {offsets = [26, 0], sizes = [1, 128], strides = [1, 1]} : vector<34x128xf32> to vector<1x128xf32>
    %370 = vector.extract_strided_slice %193 {offsets = [3, 0], sizes = [1, 128], strides = [1, 1]} : vector<8x128xf32> to vector<1x128xf32>
    %371 = arith.mulf %369, %370 : vector<1x128xf32>
    %372 = arith.addf %368, %371 : vector<1x128xf32>
    %373 = vector.extract_strided_slice %192 {offsets = [27, 0], sizes = [1, 128], strides = [1, 1]} : vector<34x128xf32> to vector<1x128xf32>
    %374 = vector.extract_strided_slice %193 {offsets = [4, 0], sizes = [1, 128], strides = [1, 1]} : vector<8x128xf32> to vector<1x128xf32>
    %375 = arith.mulf %373, %374 : vector<1x128xf32>
    %376 = arith.addf %372, %375 : vector<1x128xf32>
    %377 = vector.extract_strided_slice %192 {offsets = [25, 0], sizes = [1, 128], strides = [1, 1]} : vector<34x128xf32> to vector<1x128xf32>
    %378 = vector.extract_strided_slice %193 {offsets = [5, 0], sizes = [1, 128], strides = [1, 1]} : vector<8x128xf32> to vector<1x128xf32>
    %379 = arith.mulf %377, %378 : vector<1x128xf32>
    %380 = vector.extract_strided_slice %192 {offsets = [26, 0], sizes = [1, 128], strides = [1, 1]} : vector<34x128xf32> to vector<1x128xf32>
    %381 = vector.extract_strided_slice %193 {offsets = [6, 0], sizes = [1, 128], strides = [1, 1]} : vector<8x128xf32> to vector<1x128xf32>
    %382 = arith.mulf %380, %381 : vector<1x128xf32>
    %383 = arith.addf %379, %382 : vector<1x128xf32>
    %384 = vector.extract_strided_slice %192 {offsets = [27, 0], sizes = [1, 128], strides = [1, 1]} : vector<34x128xf32> to vector<1x128xf32>
    %385 = vector.extract_strided_slice %193 {offsets = [7, 0], sizes = [1, 128], strides = [1, 1]} : vector<8x128xf32> to vector<1x128xf32>
    %386 = arith.mulf %384, %385 : vector<1x128xf32>
    %387 = arith.addf %383, %386 : vector<1x128xf32>
    %388 = vector.extract_strided_slice %191 {offsets = [12, 0], sizes = [1, 128], strides = [1, 1]} : vector<24x128xf32> to vector<1x128xf32>
    %389 = arith.mulf %388, %332 : vector<1x128xf32>
    %390 = vector.extract_strided_slice %191 {offsets = [13, 0], sizes = [1, 128], strides = [1, 1]} : vector<24x128xf32> to vector<1x128xf32>
    %391 = arith.mulf %390, %343 : vector<1x128xf32>
    %392 = arith.addf %389, %391 : vector<1x128xf32>
    %393 = vector.extract_strided_slice %191 {offsets = [16, 0], sizes = [1, 128], strides = [1, 1]} : vector<24x128xf32> to vector<1x128xf32>
    %394 = arith.mulf %393, %354 : vector<1x128xf32>
    %395 = arith.addf %392, %394 : vector<1x128xf32>
    %396 = vector.extract_strided_slice %191 {offsets = [17, 0], sizes = [1, 128], strides = [1, 1]} : vector<24x128xf32> to vector<1x128xf32>
    %397 = arith.mulf %396, %365 : vector<1x128xf32>
    %398 = arith.addf %395, %397 : vector<1x128xf32>
    %399 = vector.extract_strided_slice %191 {offsets = [20, 0], sizes = [1, 128], strides = [1, 1]} : vector<24x128xf32> to vector<1x128xf32>
    %400 = arith.mulf %399, %376 : vector<1x128xf32>
    %401 = arith.addf %398, %400 : vector<1x128xf32>
    %402 = vector.extract_strided_slice %191 {offsets = [21, 0], sizes = [1, 128], strides = [1, 1]} : vector<24x128xf32> to vector<1x128xf32>
    %403 = arith.mulf %402, %387 : vector<1x128xf32>
    %404 = arith.addf %401, %403 : vector<1x128xf32>
    %405 = vector.extract_strided_slice %194 {offsets = [1, 0], sizes = [1, 128], strides = [1, 1]} : vector<8x128xf32> to vector<1x128xf32>
    %406 = arith.mulf %405, %404 : vector<1x128xf32>
    %407 = arith.addf %321, %406 : vector<1x128xf32>
    %408 = vector.extract_strided_slice %191 {offsets = [14, 0], sizes = [1, 128], strides = [1, 1]} : vector<24x128xf32> to vector<1x128xf32>
    %409 = arith.mulf %408, %332 : vector<1x128xf32>
    %410 = vector.extract_strided_slice %191 {offsets = [15, 0], sizes = [1, 128], strides = [1, 1]} : vector<24x128xf32> to vector<1x128xf32>
    %411 = arith.mulf %410, %343 : vector<1x128xf32>
    %412 = arith.addf %409, %411 : vector<1x128xf32>
    %413 = vector.extract_strided_slice %191 {offsets = [18, 0], sizes = [1, 128], strides = [1, 1]} : vector<24x128xf32> to vector<1x128xf32>
    %414 = arith.mulf %413, %354 : vector<1x128xf32>
    %415 = arith.addf %412, %414 : vector<1x128xf32>
    %416 = vector.extract_strided_slice %191 {offsets = [19, 0], sizes = [1, 128], strides = [1, 1]} : vector<24x128xf32> to vector<1x128xf32>
    %417 = arith.mulf %416, %365 : vector<1x128xf32>
    %418 = arith.addf %415, %417 : vector<1x128xf32>
    %419 = vector.extract_strided_slice %191 {offsets = [22, 0], sizes = [1, 128], strides = [1, 1]} : vector<24x128xf32> to vector<1x128xf32>
    %420 = arith.mulf %419, %376 : vector<1x128xf32>
    %421 = arith.addf %418, %420 : vector<1x128xf32>
    %422 = vector.extract_strided_slice %191 {offsets = [23, 0], sizes = [1, 128], strides = [1, 1]} : vector<24x128xf32> to vector<1x128xf32>
    %423 = arith.mulf %422, %387 : vector<1x128xf32>
    %424 = arith.addf %421, %423 : vector<1x128xf32>
    %425 = vector.extract_strided_slice %194 {offsets = [5, 0], sizes = [1, 128], strides = [1, 1]} : vector<8x128xf32> to vector<1x128xf32>
    %426 = arith.mulf %425, %424 : vector<1x128xf32>
    %427 = arith.addf %407, %426 : vector<1x128xf32>
    %428 = vector.extract_strided_slice %192 {offsets = [10, 0], sizes = [1, 128], strides = [1, 1]} : vector<34x128xf32> to vector<1x128xf32>
    %429 = vector.extract_strided_slice %193 {offsets = [2, 0], sizes = [1, 128], strides = [1, 1]} : vector<8x128xf32> to vector<1x128xf32>
    %430 = arith.mulf %428, %429 : vector<1x128xf32>
    %431 = vector.extract_strided_slice %192 {offsets = [11, 0], sizes = [1, 128], strides = [1, 1]} : vector<34x128xf32> to vector<1x128xf32>
    %432 = vector.extract_strided_slice %193 {offsets = [3, 0], sizes = [1, 128], strides = [1, 1]} : vector<8x128xf32> to vector<1x128xf32>
    %433 = arith.mulf %431, %432 : vector<1x128xf32>
    %434 = arith.addf %430, %433 : vector<1x128xf32>
    %435 = vector.extract_strided_slice %192 {offsets = [12, 0], sizes = [1, 128], strides = [1, 1]} : vector<34x128xf32> to vector<1x128xf32>
    %436 = vector.extract_strided_slice %193 {offsets = [4, 0], sizes = [1, 128], strides = [1, 1]} : vector<8x128xf32> to vector<1x128xf32>
    %437 = arith.mulf %435, %436 : vector<1x128xf32>
    %438 = arith.addf %434, %437 : vector<1x128xf32>
    %439 = vector.extract_strided_slice %192 {offsets = [10, 0], sizes = [1, 128], strides = [1, 1]} : vector<34x128xf32> to vector<1x128xf32>
    %440 = vector.extract_strided_slice %193 {offsets = [5, 0], sizes = [1, 128], strides = [1, 1]} : vector<8x128xf32> to vector<1x128xf32>
    %441 = arith.mulf %439, %440 : vector<1x128xf32>
    %442 = vector.extract_strided_slice %192 {offsets = [11, 0], sizes = [1, 128], strides = [1, 1]} : vector<34x128xf32> to vector<1x128xf32>
    %443 = vector.extract_strided_slice %193 {offsets = [6, 0], sizes = [1, 128], strides = [1, 1]} : vector<8x128xf32> to vector<1x128xf32>
    %444 = arith.mulf %442, %443 : vector<1x128xf32>
    %445 = arith.addf %441, %444 : vector<1x128xf32>
    %446 = vector.extract_strided_slice %192 {offsets = [12, 0], sizes = [1, 128], strides = [1, 1]} : vector<34x128xf32> to vector<1x128xf32>
    %447 = vector.extract_strided_slice %193 {offsets = [7, 0], sizes = [1, 128], strides = [1, 1]} : vector<8x128xf32> to vector<1x128xf32>
    %448 = arith.mulf %446, %447 : vector<1x128xf32>
    %449 = arith.addf %445, %448 : vector<1x128xf32>
    %450 = vector.extract_strided_slice %192 {offsets = [19, 0], sizes = [1, 128], strides = [1, 1]} : vector<34x128xf32> to vector<1x128xf32>
    %451 = vector.extract_strided_slice %193 {offsets = [2, 0], sizes = [1, 128], strides = [1, 1]} : vector<8x128xf32> to vector<1x128xf32>
    %452 = arith.mulf %450, %451 : vector<1x128xf32>
    %453 = vector.extract_strided_slice %192 {offsets = [20, 0], sizes = [1, 128], strides = [1, 1]} : vector<34x128xf32> to vector<1x128xf32>
    %454 = vector.extract_strided_slice %193 {offsets = [3, 0], sizes = [1, 128], strides = [1, 1]} : vector<8x128xf32> to vector<1x128xf32>
    %455 = arith.mulf %453, %454 : vector<1x128xf32>
    %456 = arith.addf %452, %455 : vector<1x128xf32>
    %457 = vector.extract_strided_slice %192 {offsets = [21, 0], sizes = [1, 128], strides = [1, 1]} : vector<34x128xf32> to vector<1x128xf32>
    %458 = vector.extract_strided_slice %193 {offsets = [4, 0], sizes = [1, 128], strides = [1, 1]} : vector<8x128xf32> to vector<1x128xf32>
    %459 = arith.mulf %457, %458 : vector<1x128xf32>
    %460 = arith.addf %456, %459 : vector<1x128xf32>
    %461 = vector.extract_strided_slice %192 {offsets = [19, 0], sizes = [1, 128], strides = [1, 1]} : vector<34x128xf32> to vector<1x128xf32>
    %462 = vector.extract_strided_slice %193 {offsets = [5, 0], sizes = [1, 128], strides = [1, 1]} : vector<8x128xf32> to vector<1x128xf32>
    %463 = arith.mulf %461, %462 : vector<1x128xf32>
    %464 = vector.extract_strided_slice %192 {offsets = [20, 0], sizes = [1, 128], strides = [1, 1]} : vector<34x128xf32> to vector<1x128xf32>
    %465 = vector.extract_strided_slice %193 {offsets = [6, 0], sizes = [1, 128], strides = [1, 1]} : vector<8x128xf32> to vector<1x128xf32>
    %466 = arith.mulf %464, %465 : vector<1x128xf32>
    %467 = arith.addf %463, %466 : vector<1x128xf32>
    %468 = vector.extract_strided_slice %192 {offsets = [21, 0], sizes = [1, 128], strides = [1, 1]} : vector<34x128xf32> to vector<1x128xf32>
    %469 = vector.extract_strided_slice %193 {offsets = [7, 0], sizes = [1, 128], strides = [1, 1]} : vector<8x128xf32> to vector<1x128xf32>
    %470 = arith.mulf %468, %469 : vector<1x128xf32>
    %471 = arith.addf %467, %470 : vector<1x128xf32>
    %472 = vector.extract_strided_slice %192 {offsets = [28, 0], sizes = [1, 128], strides = [1, 1]} : vector<34x128xf32> to vector<1x128xf32>
    %473 = vector.extract_strided_slice %193 {offsets = [2, 0], sizes = [1, 128], strides = [1, 1]} : vector<8x128xf32> to vector<1x128xf32>
    %474 = arith.mulf %472, %473 : vector<1x128xf32>
    %475 = vector.extract_strided_slice %192 {offsets = [29, 0], sizes = [1, 128], strides = [1, 1]} : vector<34x128xf32> to vector<1x128xf32>
    %476 = vector.extract_strided_slice %193 {offsets = [3, 0], sizes = [1, 128], strides = [1, 1]} : vector<8x128xf32> to vector<1x128xf32>
    %477 = arith.mulf %475, %476 : vector<1x128xf32>
    %478 = arith.addf %474, %477 : vector<1x128xf32>
    %479 = vector.extract_strided_slice %192 {offsets = [30, 0], sizes = [1, 128], strides = [1, 1]} : vector<34x128xf32> to vector<1x128xf32>
    %480 = vector.extract_strided_slice %193 {offsets = [4, 0], sizes = [1, 128], strides = [1, 1]} : vector<8x128xf32> to vector<1x128xf32>
    %481 = arith.mulf %479, %480 : vector<1x128xf32>
    %482 = arith.addf %478, %481 : vector<1x128xf32>
    %483 = vector.extract_strided_slice %192 {offsets = [28, 0], sizes = [1, 128], strides = [1, 1]} : vector<34x128xf32> to vector<1x128xf32>
    %484 = vector.extract_strided_slice %193 {offsets = [5, 0], sizes = [1, 128], strides = [1, 1]} : vector<8x128xf32> to vector<1x128xf32>
    %485 = arith.mulf %483, %484 : vector<1x128xf32>
    %486 = vector.extract_strided_slice %192 {offsets = [29, 0], sizes = [1, 128], strides = [1, 1]} : vector<34x128xf32> to vector<1x128xf32>
    %487 = vector.extract_strided_slice %193 {offsets = [6, 0], sizes = [1, 128], strides = [1, 1]} : vector<8x128xf32> to vector<1x128xf32>
    %488 = arith.mulf %486, %487 : vector<1x128xf32>
    %489 = arith.addf %485, %488 : vector<1x128xf32>
    %490 = vector.extract_strided_slice %192 {offsets = [30, 0], sizes = [1, 128], strides = [1, 1]} : vector<34x128xf32> to vector<1x128xf32>
    %491 = vector.extract_strided_slice %193 {offsets = [7, 0], sizes = [1, 128], strides = [1, 1]} : vector<8x128xf32> to vector<1x128xf32>
    %492 = arith.mulf %490, %491 : vector<1x128xf32>
    %493 = arith.addf %489, %492 : vector<1x128xf32>
    %494 = vector.extract_strided_slice %191 {offsets = [12, 0], sizes = [1, 128], strides = [1, 1]} : vector<24x128xf32> to vector<1x128xf32>
    %495 = arith.mulf %494, %438 : vector<1x128xf32>
    %496 = vector.extract_strided_slice %191 {offsets = [13, 0], sizes = [1, 128], strides = [1, 1]} : vector<24x128xf32> to vector<1x128xf32>
    %497 = arith.mulf %496, %449 : vector<1x128xf32>
    %498 = arith.addf %495, %497 : vector<1x128xf32>
    %499 = vector.extract_strided_slice %191 {offsets = [16, 0], sizes = [1, 128], strides = [1, 1]} : vector<24x128xf32> to vector<1x128xf32>
    %500 = arith.mulf %499, %460 : vector<1x128xf32>
    %501 = arith.addf %498, %500 : vector<1x128xf32>
    %502 = vector.extract_strided_slice %191 {offsets = [17, 0], sizes = [1, 128], strides = [1, 1]} : vector<24x128xf32> to vector<1x128xf32>
    %503 = arith.mulf %502, %471 : vector<1x128xf32>
    %504 = arith.addf %501, %503 : vector<1x128xf32>
    %505 = vector.extract_strided_slice %191 {offsets = [20, 0], sizes = [1, 128], strides = [1, 1]} : vector<24x128xf32> to vector<1x128xf32>
    %506 = arith.mulf %505, %482 : vector<1x128xf32>
    %507 = arith.addf %504, %506 : vector<1x128xf32>
    %508 = vector.extract_strided_slice %191 {offsets = [21, 0], sizes = [1, 128], strides = [1, 1]} : vector<24x128xf32> to vector<1x128xf32>
    %509 = arith.mulf %508, %493 : vector<1x128xf32>
    %510 = arith.addf %507, %509 : vector<1x128xf32>
    %511 = vector.extract_strided_slice %194 {offsets = [2, 0], sizes = [1, 128], strides = [1, 1]} : vector<8x128xf32> to vector<1x128xf32>
    %512 = arith.mulf %511, %510 : vector<1x128xf32>
    %513 = arith.addf %427, %512 : vector<1x128xf32>
    %514 = vector.extract_strided_slice %191 {offsets = [14, 0], sizes = [1, 128], strides = [1, 1]} : vector<24x128xf32> to vector<1x128xf32>
    %515 = arith.mulf %514, %438 : vector<1x128xf32>
    %516 = vector.extract_strided_slice %191 {offsets = [15, 0], sizes = [1, 128], strides = [1, 1]} : vector<24x128xf32> to vector<1x128xf32>
    %517 = arith.mulf %516, %449 : vector<1x128xf32>
    %518 = arith.addf %515, %517 : vector<1x128xf32>
    %519 = vector.extract_strided_slice %191 {offsets = [18, 0], sizes = [1, 128], strides = [1, 1]} : vector<24x128xf32> to vector<1x128xf32>
    %520 = arith.mulf %519, %460 : vector<1x128xf32>
    %521 = arith.addf %518, %520 : vector<1x128xf32>
    %522 = vector.extract_strided_slice %191 {offsets = [19, 0], sizes = [1, 128], strides = [1, 1]} : vector<24x128xf32> to vector<1x128xf32>
    %523 = arith.mulf %522, %471 : vector<1x128xf32>
    %524 = arith.addf %521, %523 : vector<1x128xf32>
    %525 = vector.extract_strided_slice %191 {offsets = [22, 0], sizes = [1, 128], strides = [1, 1]} : vector<24x128xf32> to vector<1x128xf32>
    %526 = arith.mulf %525, %482 : vector<1x128xf32>
    %527 = arith.addf %524, %526 : vector<1x128xf32>
    %528 = vector.extract_strided_slice %191 {offsets = [23, 0], sizes = [1, 128], strides = [1, 1]} : vector<24x128xf32> to vector<1x128xf32>
    %529 = arith.mulf %528, %493 : vector<1x128xf32>
    %530 = arith.addf %527, %529 : vector<1x128xf32>
    %531 = vector.extract_strided_slice %194 {offsets = [6, 0], sizes = [1, 128], strides = [1, 1]} : vector<8x128xf32> to vector<1x128xf32>
    %532 = arith.mulf %531, %530 : vector<1x128xf32>
    %533 = arith.addf %513, %532 : vector<1x128xf32>
    %534 = vector.extract_strided_slice %192 {offsets = [13, 0], sizes = [1, 128], strides = [1, 1]} : vector<34x128xf32> to vector<1x128xf32>
    %535 = vector.extract_strided_slice %193 {offsets = [2, 0], sizes = [1, 128], strides = [1, 1]} : vector<8x128xf32> to vector<1x128xf32>
    %536 = arith.mulf %534, %535 : vector<1x128xf32>
    %537 = vector.extract_strided_slice %192 {offsets = [14, 0], sizes = [1, 128], strides = [1, 1]} : vector<34x128xf32> to vector<1x128xf32>
    %538 = vector.extract_strided_slice %193 {offsets = [3, 0], sizes = [1, 128], strides = [1, 1]} : vector<8x128xf32> to vector<1x128xf32>
    %539 = arith.mulf %537, %538 : vector<1x128xf32>
    %540 = arith.addf %536, %539 : vector<1x128xf32>
    %541 = vector.extract_strided_slice %192 {offsets = [15, 0], sizes = [1, 128], strides = [1, 1]} : vector<34x128xf32> to vector<1x128xf32>
    %542 = vector.extract_strided_slice %193 {offsets = [4, 0], sizes = [1, 128], strides = [1, 1]} : vector<8x128xf32> to vector<1x128xf32>
    %543 = arith.mulf %541, %542 : vector<1x128xf32>
    %544 = arith.addf %540, %543 : vector<1x128xf32>
    %545 = vector.extract_strided_slice %192 {offsets = [13, 0], sizes = [1, 128], strides = [1, 1]} : vector<34x128xf32> to vector<1x128xf32>
    %546 = vector.extract_strided_slice %193 {offsets = [5, 0], sizes = [1, 128], strides = [1, 1]} : vector<8x128xf32> to vector<1x128xf32>
    %547 = arith.mulf %545, %546 : vector<1x128xf32>
    %548 = vector.extract_strided_slice %192 {offsets = [14, 0], sizes = [1, 128], strides = [1, 1]} : vector<34x128xf32> to vector<1x128xf32>
    %549 = vector.extract_strided_slice %193 {offsets = [6, 0], sizes = [1, 128], strides = [1, 1]} : vector<8x128xf32> to vector<1x128xf32>
    %550 = arith.mulf %548, %549 : vector<1x128xf32>
    %551 = arith.addf %547, %550 : vector<1x128xf32>
    %552 = vector.extract_strided_slice %192 {offsets = [15, 0], sizes = [1, 128], strides = [1, 1]} : vector<34x128xf32> to vector<1x128xf32>
    %553 = vector.extract_strided_slice %193 {offsets = [7, 0], sizes = [1, 128], strides = [1, 1]} : vector<8x128xf32> to vector<1x128xf32>
    %554 = arith.mulf %552, %553 : vector<1x128xf32>
    %555 = arith.addf %551, %554 : vector<1x128xf32>
    %556 = vector.extract_strided_slice %192 {offsets = [22, 0], sizes = [1, 128], strides = [1, 1]} : vector<34x128xf32> to vector<1x128xf32>
    %557 = vector.extract_strided_slice %193 {offsets = [2, 0], sizes = [1, 128], strides = [1, 1]} : vector<8x128xf32> to vector<1x128xf32>
    %558 = arith.mulf %556, %557 : vector<1x128xf32>
    %559 = vector.extract_strided_slice %192 {offsets = [23, 0], sizes = [1, 128], strides = [1, 1]} : vector<34x128xf32> to vector<1x128xf32>
    %560 = vector.extract_strided_slice %193 {offsets = [3, 0], sizes = [1, 128], strides = [1, 1]} : vector<8x128xf32> to vector<1x128xf32>
    %561 = arith.mulf %559, %560 : vector<1x128xf32>
    %562 = arith.addf %558, %561 : vector<1x128xf32>
    %563 = vector.extract_strided_slice %192 {offsets = [24, 0], sizes = [1, 128], strides = [1, 1]} : vector<34x128xf32> to vector<1x128xf32>
    %564 = vector.extract_strided_slice %193 {offsets = [4, 0], sizes = [1, 128], strides = [1, 1]} : vector<8x128xf32> to vector<1x128xf32>
    %565 = arith.mulf %563, %564 : vector<1x128xf32>
    %566 = arith.addf %562, %565 : vector<1x128xf32>
    %567 = vector.extract_strided_slice %192 {offsets = [22, 0], sizes = [1, 128], strides = [1, 1]} : vector<34x128xf32> to vector<1x128xf32>
    %568 = vector.extract_strided_slice %193 {offsets = [5, 0], sizes = [1, 128], strides = [1, 1]} : vector<8x128xf32> to vector<1x128xf32>
    %569 = arith.mulf %567, %568 : vector<1x128xf32>
    %570 = vector.extract_strided_slice %192 {offsets = [23, 0], sizes = [1, 128], strides = [1, 1]} : vector<34x128xf32> to vector<1x128xf32>
    %571 = vector.extract_strided_slice %193 {offsets = [6, 0], sizes = [1, 128], strides = [1, 1]} : vector<8x128xf32> to vector<1x128xf32>
    %572 = arith.mulf %570, %571 : vector<1x128xf32>
    %573 = arith.addf %569, %572 : vector<1x128xf32>
    %574 = vector.extract_strided_slice %192 {offsets = [24, 0], sizes = [1, 128], strides = [1, 1]} : vector<34x128xf32> to vector<1x128xf32>
    %575 = vector.extract_strided_slice %193 {offsets = [7, 0], sizes = [1, 128], strides = [1, 1]} : vector<8x128xf32> to vector<1x128xf32>
    %576 = arith.mulf %574, %575 : vector<1x128xf32>
    %577 = arith.addf %573, %576 : vector<1x128xf32>
    %578 = vector.extract_strided_slice %192 {offsets = [31, 0], sizes = [1, 128], strides = [1, 1]} : vector<34x128xf32> to vector<1x128xf32>
    %579 = vector.extract_strided_slice %193 {offsets = [2, 0], sizes = [1, 128], strides = [1, 1]} : vector<8x128xf32> to vector<1x128xf32>
    %580 = arith.mulf %578, %579 : vector<1x128xf32>
    %581 = vector.extract_strided_slice %192 {offsets = [32, 0], sizes = [1, 128], strides = [1, 1]} : vector<34x128xf32> to vector<1x128xf32>
    %582 = vector.extract_strided_slice %193 {offsets = [3, 0], sizes = [1, 128], strides = [1, 1]} : vector<8x128xf32> to vector<1x128xf32>
    %583 = arith.mulf %581, %582 : vector<1x128xf32>
    %584 = arith.addf %580, %583 : vector<1x128xf32>
    %585 = vector.extract_strided_slice %192 {offsets = [33, 0], sizes = [1, 128], strides = [1, 1]} : vector<34x128xf32> to vector<1x128xf32>
    %586 = vector.extract_strided_slice %193 {offsets = [4, 0], sizes = [1, 128], strides = [1, 1]} : vector<8x128xf32> to vector<1x128xf32>
    %587 = arith.mulf %585, %586 : vector<1x128xf32>
    %588 = arith.addf %584, %587 : vector<1x128xf32>
    %589 = vector.extract_strided_slice %192 {offsets = [31, 0], sizes = [1, 128], strides = [1, 1]} : vector<34x128xf32> to vector<1x128xf32>
    %590 = vector.extract_strided_slice %193 {offsets = [5, 0], sizes = [1, 128], strides = [1, 1]} : vector<8x128xf32> to vector<1x128xf32>
    %591 = arith.mulf %589, %590 : vector<1x128xf32>
    %592 = vector.extract_strided_slice %192 {offsets = [32, 0], sizes = [1, 128], strides = [1, 1]} : vector<34x128xf32> to vector<1x128xf32>
    %593 = vector.extract_strided_slice %193 {offsets = [6, 0], sizes = [1, 128], strides = [1, 1]} : vector<8x128xf32> to vector<1x128xf32>
    %594 = arith.mulf %592, %593 : vector<1x128xf32>
    %595 = arith.addf %591, %594 : vector<1x128xf32>
    %596 = vector.extract_strided_slice %192 {offsets = [33, 0], sizes = [1, 128], strides = [1, 1]} : vector<34x128xf32> to vector<1x128xf32>
    %597 = vector.extract_strided_slice %193 {offsets = [7, 0], sizes = [1, 128], strides = [1, 1]} : vector<8x128xf32> to vector<1x128xf32>
    %598 = arith.mulf %596, %597 : vector<1x128xf32>
    %599 = arith.addf %595, %598 : vector<1x128xf32>
    %600 = vector.extract_strided_slice %191 {offsets = [12, 0], sizes = [1, 128], strides = [1, 1]} : vector<24x128xf32> to vector<1x128xf32>
    %601 = arith.mulf %600, %544 : vector<1x128xf32>
    %602 = vector.extract_strided_slice %191 {offsets = [13, 0], sizes = [1, 128], strides = [1, 1]} : vector<24x128xf32> to vector<1x128xf32>
    %603 = arith.mulf %602, %555 : vector<1x128xf32>
    %604 = arith.addf %601, %603 : vector<1x128xf32>
    %605 = vector.extract_strided_slice %191 {offsets = [16, 0], sizes = [1, 128], strides = [1, 1]} : vector<24x128xf32> to vector<1x128xf32>
    %606 = arith.mulf %605, %566 : vector<1x128xf32>
    %607 = arith.addf %604, %606 : vector<1x128xf32>
    %608 = vector.extract_strided_slice %191 {offsets = [17, 0], sizes = [1, 128], strides = [1, 1]} : vector<24x128xf32> to vector<1x128xf32>
    %609 = arith.mulf %608, %577 : vector<1x128xf32>
    %610 = arith.addf %607, %609 : vector<1x128xf32>
    %611 = vector.extract_strided_slice %191 {offsets = [20, 0], sizes = [1, 128], strides = [1, 1]} : vector<24x128xf32> to vector<1x128xf32>
    %612 = arith.mulf %611, %588 : vector<1x128xf32>
    %613 = arith.addf %610, %612 : vector<1x128xf32>
    %614 = vector.extract_strided_slice %191 {offsets = [21, 0], sizes = [1, 128], strides = [1, 1]} : vector<24x128xf32> to vector<1x128xf32>
    %615 = arith.mulf %614, %599 : vector<1x128xf32>
    %616 = arith.addf %613, %615 : vector<1x128xf32>
    %617 = vector.extract_strided_slice %194 {offsets = [3, 0], sizes = [1, 128], strides = [1, 1]} : vector<8x128xf32> to vector<1x128xf32>
    %618 = arith.mulf %617, %616 : vector<1x128xf32>
    %619 = arith.addf %533, %618 : vector<1x128xf32>
    %620 = vector.extract_strided_slice %191 {offsets = [14, 0], sizes = [1, 128], strides = [1, 1]} : vector<24x128xf32> to vector<1x128xf32>
    %621 = arith.mulf %620, %544 : vector<1x128xf32>
    %622 = vector.extract_strided_slice %191 {offsets = [15, 0], sizes = [1, 128], strides = [1, 1]} : vector<24x128xf32> to vector<1x128xf32>
    %623 = arith.mulf %622, %555 : vector<1x128xf32>
    %624 = arith.addf %621, %623 : vector<1x128xf32>
    %625 = vector.extract_strided_slice %191 {offsets = [18, 0], sizes = [1, 128], strides = [1, 1]} : vector<24x128xf32> to vector<1x128xf32>
    %626 = arith.mulf %625, %566 : vector<1x128xf32>
    %627 = arith.addf %624, %626 : vector<1x128xf32>
    %628 = vector.extract_strided_slice %191 {offsets = [19, 0], sizes = [1, 128], strides = [1, 1]} : vector<24x128xf32> to vector<1x128xf32>
    %629 = arith.mulf %628, %577 : vector<1x128xf32>
    %630 = arith.addf %627, %629 : vector<1x128xf32>
    %631 = vector.extract_strided_slice %191 {offsets = [22, 0], sizes = [1, 128], strides = [1, 1]} : vector<24x128xf32> to vector<1x128xf32>
    %632 = arith.mulf %631, %588 : vector<1x128xf32>
    %633 = arith.addf %630, %632 : vector<1x128xf32>
    %634 = vector.extract_strided_slice %191 {offsets = [23, 0], sizes = [1, 128], strides = [1, 1]} : vector<24x128xf32> to vector<1x128xf32>
    %635 = arith.mulf %634, %599 : vector<1x128xf32>
    %636 = arith.addf %633, %635 : vector<1x128xf32>
    %637 = vector.extract_strided_slice %194 {offsets = [7, 0], sizes = [1, 128], strides = [1, 1]} : vector<8x128xf32> to vector<1x128xf32>
    %638 = arith.mulf %637, %636 : vector<1x128xf32>
    %639 = arith.addf %619, %638 : vector<1x128xf32>
    %cst_64 = arith.constant dense<0xFF800000> : vector<1xf32>
    %640 = vector.multi_reduction <maximumf>, %639, %cst_64 [1] : vector<1x128xf32> to vector<1xf32>
    %641 = vector.shape_cast %640 : vector<1xf32> to vector<1x1xf32>
    %642 = vector.broadcast %641 : vector<1x1xf32> to vector<1x128xf32>
    %643 = arith.subf %639, %642 : vector<1x128xf32>
    %644 = math.exp %643 : vector<1x128xf32>
    %645 = vector.shape_cast %644 : vector<1x128xf32> to vector<1x128xf32>
    %646 = vector.broadcast %645 : vector<1x128xf32> to vector<8x128xf32>
    %c0_65 = arith.constant 0 : index
    %c0_66 = arith.constant 0 : index
    %647 = vector.load %arg11[%c0_65, %c0_66] : memref<128x128xf32, #tpu.memory_space<vmem>>, vector<128x128xf32>
    %cst_67 = arith.constant dense<0.000000e+00> : vector<8x128xf32>
    %648 = tpu.matmul %646, %647, %cst_67 {dimension_numbers = #tpu.dot_dimension_numbers<[1], [0], [0], [1], [0, 0, 1, 1], [], []>, precision = #tpu.contract_precision<fp32>} : vector<8x128xf32>, vector<128x128xf32>, vector<8x128xf32> -> vector<8x128xf32>
    %649 = vector.extract_strided_slice %648 {offsets = [0, 0], sizes = [1, 128], strides = [1, 1]} : vector<8x128xf32> to vector<1x128xf32>
    %650 = tpu.reciprocal %649 {approx = true} : vector<1x128xf32> -> vector<1x128xf32>
    %651 = arith.mulf %644, %650 : vector<1x128xf32>
    %c0_68 = arith.constant 0 : index
    %c0_69 = arith.constant 0 : index
    %652 = vector.load %arg12[%c0_68, %c0_69] : memref<1x128xf32, #tpu.memory_space<vmem>>, vector<1x128xf32>
    tpu.vector_store %arg12[%c0_68, %c0_69], %651 {strides = array<i32>} : memref<1x128xf32, #tpu.memory_space<vmem>>, vector<1x128xf32>,
    return
  }
  func.func @transform_0(%arg0: i32) -> (i32, i32) {
    %c0_i32 = arith.constant 0 : i32
    %c0_i32_0 = arith.constant 0 : i32
    return %c0_i32, %arg0 : i32, i32
  }
  func.func @transform_1(%arg0: i32) -> (i32, i32) {
    %c0_i32 = arith.constant 0 : i32
    %c0_i32_0 = arith.constant 0 : i32
    return %c0_i32, %arg0 : i32, i32
  }
  func.func @transform_2(%arg0: i32) -> (i32, i32) {
    %c0_i32 = arith.constant 0 : i32
    %c0_i32_0 = arith.constant 0 : i32
    return %c0_i32, %arg0 : i32, i32
  }
  func.func @transform_3(%arg0: i32) -> (i32, i32) {
    %c0_i32 = arith.constant 0 : i32
    %c0_i32_0 = arith.constant 0 : i32
    return %c0_i32, %arg0 : i32, i32
  }
  func.func @transform_4(%arg0: i32) -> (i32, i32) {
    %c0_i32 = arith.constant 0 : i32
    %c0_i32_0 = arith.constant 0 : i32
    return %c0_i32, %arg0 : i32, i32
  }
  func.func @transform_5(%arg0: i32) -> (i32, i32) {
    %c0_i32 = arith.constant 0 : i32
    %c0_i32_0 = arith.constant 0 : i32
    %c0_i32_1 = arith.constant 0 : i32
    return %c0_i32, %c0_i32_0 : i32, i32
  }
  func.func @transform_6(%arg0: i32) -> (i32, i32) {
    %c0_i32 = arith.constant 0 : i32
    %c0_i32_0 = arith.constant 0 : i32
    %c0_i32_1 = arith.constant 0 : i32
    return %c0_i32, %c0_i32_0 : i32, i32
  }
  func.func @transform_7(%arg0: i32) -> (i32, i32) {
    %c0_i32 = arith.constant 0 : i32
    %c0_i32_0 = arith.constant 0 : i32
    %c0_i32_1 = arith.constant 0 : i32
    return %c0_i32, %c0_i32_0 : i32, i32
  }
  func.func @transform_8(%arg0: i32) -> (i32, i32) {
    %c0_i32 = arith.constant 0 : i32
    %c0_i32_0 = arith.constant 0 : i32
    %c0_i32_1 = arith.constant 0 : i32
    return %c0_i32, %c0_i32_0 : i32, i32
  }
  func.func @transform_9(%arg0: i32) -> (i32, i32) {
    %c0_i32 = arith.constant 0 : i32
    %c0_i32_0 = arith.constant 0 : i32
    %c0_i32_1 = arith.constant 0 : i32
    return %c0_i32, %c0_i32_0 : i32, i32
  }
  func.func @transform_10(%arg0: i32) -> (i32, i32) {
    %c0_i32 = arith.constant 0 : i32
    %c0_i32_0 = arith.constant 0 : i32
    %c0_i32_1 = arith.constant 0 : i32
    return %c0_i32, %c0_i32_0 : i32, i32
  }
  func.func @transform_11(%arg0: i32) -> (i32, i32) {
    %c0_i32 = arith.constant 0 : i32
    %c0_i32_0 = arith.constant 0 : i32
    return %c0_i32, %arg0 : i32, i32
  }
}

</mosaic_0001>

<llo_original>
// kernel: tpu_custom_call.1
$region0: #{tpu_custom_call.1}
  #allocation0 [shape = 'u32[]', space=smem, size = 0x4, offset = 0x4, fixed_abs, tag = 'smem constant byte address 0x4 - core index']
  #allocation1 [shape = 'u32[144,128]{1,0:T(1,128)}', space=vmem, size = 0x12000, scoped, tag = 'internal scratch']
  %s0 = inlined_call_operand.vmem [shape: f32[8,128], index: 0, kind: input, shape index: {}]
  %s1 = inlined_call_operand.hbm [shape: f32[8,128], index: 1, kind: input, shape index: {}]
  %s2 = inlined_call_operand.hbm [shape: f32[8,128], index: 2, kind: input, shape index: {}]
  %s3 = inlined_call_operand.hbm [shape: f32[34,128], index: 3, kind: input, shape index: {}]
  %s4 = inlined_call_operand.hbm [shape: f32[8,128], index: 4, kind: input, shape index: {}]
  %s5 = inlined_call_operand.vmem [shape: bf16[64,8], index: 5, kind: input, shape index: {}]
  %s6 = inlined_call_operand.hbm [shape: bf16[64,64], index: 6, kind: input, shape index: {}]
  %s7 = inlined_call_operand.vmem [shape: bf16[24,64], index: 7, kind: input, shape index: {}]
  %s8 = inlined_call_operand.vmem [shape: f32[64,8], index: 8, kind: input, shape index: {}]
  %s9 = inlined_call_operand.vmem [shape: f32[24,1], index: 9, kind: input, shape index: {}]
  %s10 = inlined_call_operand.vmem [shape: f32[128,128], index: 10, kind: input, shape index: {}]
  %s11 = inlined_call_operand.hbm [shape: f32[1,128], index: 11, kind: output, shape index: {}]
  %s12 = sld [smem:[#allocation0]]
  $region74: #{tpu_custom_call.1} parent=0
    _
  %s14 = ssub.s32 1, %s12
  %s15 = scalar_select 0, %s14, %s12
  $region1: #{tpu_custom_call.1} parent=0
    #allocation2 [shape = 'u8[4096]{0}', space=vmem, size = 0x1000, scoped, tag = 'input window, operand 1, single buffered']
    #allocation3 [shape = 's32[1]{0}', space=sflag, size = 0x4, scoped, tag = 'scoped memory for tpu_custom_call.1']
    #allocation4 [shape = 's32[1]{0}', space=sflag, size = 0x4, scoped, tag = 'scoped memory for tpu_custom_call.1']
    #allocation5 [shape = 'u8[4096]{0}', space=vmem, size = 0x1000, scoped, tag = 'input window, operand 2, single buffered']
    #allocation6 [shape = 's32[1]{0}', space=sflag, size = 0x4, scoped, tag = 'scoped memory for tpu_custom_call.1']
    #allocation7 [shape = 'u8[20480]{0}', space=vmem, size = 0x5000, scoped, tag = 'input window, operand 3, single buffered']
    #allocation8 [shape = 'u8[4096]{0}', space=vmem, size = 0x1000, scoped, tag = 'input window, operand 4, single buffered']
    #allocation9 [shape = 's32[1]{0}', space=sflag, size = 0x4, scoped, tag = 'scoped memory for tpu_custom_call.1']
    #allocation10 [shape = 'u8[16384]{0}', space=vmem, size = 0x4000, scoped, tag = 'input window, operand 6, single buffered']
    #allocation11 [shape = 'u8[512]{0}', space=vmem, size = 0x400, scoped, tag = 'output window, operand 0, single buffered']
    %16 = vsyncpa [#allocation3], 0
    %17 = vsyncpa [#allocation6], 0
    %18 = vsyncpa [#allocation9], 0
    %19 = vsyncpa [#allocation4], 0
    // Predicated region
    $region2: #{tpu_custom_call.1} parent=1 // pred_check
      _
    $region3: #{tpu_custom_call.1} parent=1 // pred_check_branch
      %21 = sbr.rel (0) target = $region5
    $region4: #{tpu_custom_call.1} parent=1 // pred_region
      _
    $region5: #{tpu_custom_call.1} parent=1 // pred_fallthru
      _
    // Predicated region
    $region6: #{tpu_custom_call.1} parent=1 // pred_check
      _
    $region7: #{tpu_custom_call.1} parent=1 // pred_check_branch
      %23 = sbr.rel (0) target = $region9
    $region8: #{tpu_custom_call.1} parent=1 // pred_region
      %s25 = ssub.s32 128, 128
      %26 = vsyncadd [#allocation3], %s25
      %s28 = sshll.u32 [#allocation2], 4
      %s29 = int_to_ptr.vmem [resolvable:$true] %s28
      %31 = dma.hbm_to_vmem [thread:$0]  %s1, 128, %s29, [#allocation3]
    $region9: #{tpu_custom_call.1} parent=1 // pred_fallthru
      _
    // Predicated region
    $region10: #{tpu_custom_call.1} parent=1 // pred_check
      _
    $region11: #{tpu_custom_call.1} parent=1 // pred_check_branch
      %33 = sbr.rel (0) target = $region13
    $region12: #{tpu_custom_call.1} parent=1 // pred_region
      %s35 = ssub.s32 128, 128
      %36 = vsyncadd [#allocation6], %s35
      %s38 = sshll.u32 [#allocation5], 4
      %s39 = int_to_ptr.vmem [resolvable:$true] %s38
      %41 = dma.hbm_to_vmem [thread:$0]  %s2, 128, %s39, [#allocation6]
    $region13: #{tpu_custom_call.1} parent=1 // pred_fallthru
      _
    // Predicated region
    $region14: #{tpu_custom_call.1} parent=1 // pred_check
      _
    $region15: #{tpu_custom_call.1} parent=1 // pred_check_branch
      %43 = sbr.rel (0) target = $region17
    $region16: #{tpu_custom_call.1} parent=1 // pred_region
      %s45 = ssub.s32 640, 640
      %46 = vsyncadd [#allocation6], %s45
      %s47 = sshll.u32 [#allocation7], 4
      %s48 = int_to_ptr.vmem [resolvable:$true] %s47
      %53 = dma.hbm_to_vmem [thread:$0]  %s3, 640, %s48, [#allocation6], 128, 128, 8
    $region17: #{tpu_custom_call.1} parent=1 // pred_fallthru
      _
    // Predicated region
    $region18: #{tpu_custom_call.1} parent=1 // pred_check
      _
    $region19: #{tpu_custom_call.1} parent=1 // pred_check_branch
      %55 = sbr.rel (0) target = $region21
    $region20: #{tpu_custom_call.1} parent=1 // pred_region
      %s57 = ssub.s32 128, 128
      %58 = vsyncadd [#allocation9], %s57
      %s60 = sshll.u32 [#allocation8], 4
      %s61 = int_to_ptr.vmem [resolvable:$true] %s60
      %63 = dma.hbm_to_vmem [thread:$0]  %s4, 128, %s61, [#allocation9]
    $region21: #{tpu_custom_call.1} parent=1 // pred_fallthru
      _
    // Predicated region
    $region22: #{tpu_custom_call.1} parent=1 // pred_check
      _
    $region23: #{tpu_custom_call.1} parent=1 // pred_check_branch
      %65 = sbr.rel (0) target = $region25
    $region24: #{tpu_custom_call.1} parent=1 // pred_region
      _
    $region25: #{tpu_custom_call.1} parent=1 // pred_fallthru
      _
    // Predicated region
    $region26: #{tpu_custom_call.1} parent=1 // pred_check
      _
    $region27: #{tpu_custom_call.1} parent=1 // pred_check_branch
      %67 = sbr.rel (0) target = $region29
    $region28: #{tpu_custom_call.1} parent=1 // pred_region
      %s69 = ssub.s32 512, 512
      %70 = vsyncadd [#allocation9], %s69
      %s71 = sshll.u32 [#allocation10], 4
      %s72 = int_to_ptr.vmem [resolvable:$true] %s71
      %77 = dma.hbm_to_vmem [thread:$0]  %s6, 512, %s72, [#allocation9], 64, 64, 4
    $region29: #{tpu_custom_call.1} parent=1 // pred_fallthru
      _
    // Predicated region
    $region30: #{tpu_custom_call.1} parent=1 // pred_check
      _
    $region31: #{tpu_custom_call.1} parent=1 // pred_check_branch
      %79 = sbr.rel (0) target = $region33
    $region32: #{tpu_custom_call.1} parent=1 // pred_region
      _
    $region33: #{tpu_custom_call.1} parent=1 // pred_fallthru
      _
    // Predicated region
    $region34: #{tpu_custom_call.1} parent=1 // pred_check
      _
    $region35: #{tpu_custom_call.1} parent=1 // pred_check_branch
      %81 = sbr.rel (0) target = $region37
    $region36: #{tpu_custom_call.1} parent=1 // pred_region
      _
    $region37: #{tpu_custom_call.1} parent=1 // pred_fallthru
      _
    // Predicated region
    $region38: #{tpu_custom_call.1} parent=1 // pred_check
      _
    $region39: #{tpu_custom_call.1} parent=1 // pred_check_branch
      %83 = sbr.rel (0) target = $region41
    $region40: #{tpu_custom_call.1} parent=1 // pred_region
      _
    $region41: #{tpu_custom_call.1} parent=1 // pred_fallthru
      _
    // Predicated region
    $region42: #{tpu_custom_call.1} parent=1 // pred_check
      _
    $region43: #{tpu_custom_call.1} parent=1 // pred_check_branch
      %85 = sbr.rel (0) target = $region45
    $region44: #{tpu_custom_call.1} parent=1 // pred_region
      _
    $region45: #{tpu_custom_call.1} parent=1 // pred_fallthru
      _
    // Predicated region
    $region46: #{tpu_custom_call.1} parent=1 // pred_check
      _
    $region47: #{tpu_custom_call.1} parent=1 // pred_check_branch
      %87 = sbr.rel (0) target = $region49
    $region48: #{tpu_custom_call.1} parent=1 // pred_region
      %88 = dma.done [#allocation3], 128
    $region49: #{tpu_custom_call.1} parent=1 // pred_fallthru
      _
    // Predicated region
    $region50: #{tpu_custom_call.1} parent=1 // pred_check
      _
    $region51: #{tpu_custom_call.1} parent=1 // pred_check_branch
      %90 = sbr.rel (0) target = $region53
    $region52: #{tpu_custom_call.1} parent=1 // pred_region
      %91 = dma.done [#allocation6], 128
    $region53: #{tpu_custom_call.1} parent=1 // pred_fallthru
      _
    // Predicated region
    $region54: #{tpu_custom_call.1} parent=1 // pred_check
      _
    $region55: #{tpu_custom_call.1} parent=1 // pred_check_branch
      %93 = sbr.rel (0) target = $region57
    $region56: #{tpu_custom_call.1} parent=1 // pred_region
      %94 = dma.done [#allocation6], 640
    $region57: #{tpu_custom_call.1} parent=1 // pred_fallthru
      _
    // Predicated region
    $region58: #{tpu_custom_call.1} parent=1 // pred_check
      _
    $region59: #{tpu_custom_call.1} parent=1 // pred_check_branch
      %96 = sbr.rel (0) target = $region61
    $region60: #{tpu_custom_call.1} parent=1 // pred_region
      %97 = dma.done [#allocation9], 128
    $region61: #{tpu_custom_call.1} parent=1 // pred_fallthru
      _
    // Predicated region
    $region62: #{tpu_custom_call.1} parent=1 // pred_check
      _
    $region63: #{tpu_custom_call.1} parent=1 // pred_check_branch
      %99 = sbr.rel (0) target = $region65
    $region64: #{tpu_custom_call.1} parent=1 // pred_region
      %100 = dma.done [#allocation9], 512
    $region65: #{tpu_custom_call.1} parent=1 // pred_fallthru
      _
    %v102 = vld [vmem:[%s0] sm:$0xff]
    %v103 = vld [vmem:[#allocation2] sm:$0xff]
    %v104 = vmul.f32 %v102, %v103
    %v105 = vld [vmem:[%s8] sm:$0xff]
    %v106 = vld [vmem:[%s8 + $0x8] sm:$0xff]
    %v107 = vld [vmem:[%s8 + $0x10] sm:$0xff]
    %v108 = vld [vmem:[%s8 + $0x18] sm:$0xff]
    %v109 = vld [vmem:[%s8 + $0x20] sm:$0xff]
    %v110 = vld [vmem:[%s8 + $0x28] sm:$0xff]
    %v111 = vld [vmem:[%s8 + $0x30] sm:$0xff]
    %v112 = vld [vmem:[%s8 + $0x38] sm:$0xff]
    %v113 = vld [vmem:[%s5] sm:$0xf]
    %v114 = vld [vmem:[%s5 + $0x4] sm:$0xf]
    %v115 = vld [vmem:[%s5 + $0x8] sm:$0xf]
    %v116 = vld [vmem:[%s5 + $0xc] sm:$0xf]
    %v117 = vld [vmem:[%s5 + $0x10] sm:$0xf]
    %v118 = vld [vmem:[%s5 + $0x14] sm:$0xf]
    %v119 = vld [vmem:[%s5 + $0x18] sm:$0xf]
    %v120 = vld [vmem:[%s5 + $0x1c] sm:$0xf]
    %v121 = vpack.c.bf16 %v104, %v104
    %123 = vset.pattern.permute.xlu0 0
    %124 = vperm.xlu0 %123, %v105
    %v125 = vpop.permute.xlu0 %124
    %128 = vset.pattern.permute.xlu0 0
    %129 = vperm.xlu0 %128, %v106
    %v130 = vpop.permute.xlu0 %129
    %133 = vset.pattern.permute.xlu0 0
    %134 = vperm.xlu0 %133, %v107
    %v135 = vpop.permute.xlu0 %134
    %138 = vset.pattern.permute.xlu0 0
    %139 = vperm.xlu0 %138, %v108
    %v140 = vpop.permute.xlu0 %139
    %143 = vset.pattern.permute.xlu0 0
    %144 = vperm.xlu0 %143, %v109
    %v145 = vpop.permute.xlu0 %144
    %148 = vset.pattern.permute.xlu0 0
    %149 = vperm.xlu0 %148, %v110
    %v150 = vpop.permute.xlu0 %149
    %153 = vset.pattern.permute.xlu0 0
    %154 = vperm.xlu0 %153, %v111
    %v155 = vpop.permute.xlu0 %154
    %158 = vset.pattern.permute.xlu0 0
    %159 = vperm.xlu0 %158, %v112
    %v160 = vpop.permute.xlu0 %159
    %v170 = vunpack.c.l.b16 %v113
    %v171 = vunpack.c.l.b16 %v114
    %v172 = vunpack.c.l.b16 %v115
    %v173 = vunpack.c.l.b16 %v116
    %v174 = vunpack.c.l.b16 %v117
    %v175 = vunpack.c.l.b16 %v118
    %v176 = vunpack.c.l.b16 %v119
    %v177 = vunpack.c.l.b16 %v120
    %v178 = vpack.c.b16 %v171, %v170
    %v179 = vpack.c.b16 %v173, %v172
    %v180 = vpack.c.b16 %v175, %v174
    %v181 = vpack.c.b16 %v177, %v176
    %vm182 = vcmask 64512
    %v184 = vsel %vm182, %v178, 0
    %v187 = vsel %vm182, %v179, 0
    %v190 = vsel %vm182, %v180, 0
    %v193 = vsel %vm182, %v181, 0
    %vm195 = vcmask 1043456
    %v197 = vsel %vm195, %v121, 0
    %199 = vmatprep.subr.bf16.mxu0 0
    %200 = vmatpush1.bf16.msra.mxu0 0
    %201 = vmatprep.subr.bf16.mxu0 0
    %202 = vmatpush1.bf16.msra.mxu0 0
    %203 = vmatprep.subr.bf16.mxu0 0
    %204 = vmatpush1.bf16.msra.mxu0 0
    %205 = vmatprep.subr.bf16.mxu0 0
    %206 = vmatpush1.bf16.msra.mxu0 0
    %207 = vmatprep.subr.bf16.mxu0 0
    %208 = vmatpush1.bf16.msra.mxu0 0
    %209 = vmatprep.subr.bf16.mxu0 0
    %210 = vmatpush1.bf16.msra.mxu0 0
    %211 = vmatprep.subr.bf16.mxu0 0
    %212 = vmatpush1.bf16.msra.mxu0 0
    %213 = vmatprep.subr.bf16.mxu0 0
    %214 = vmatpush1.bf16.msra.mxu0 %v197
    %215 = vmatprep.subr.bf16.mxu0 0
    %216 = vmatpush2.bf16.msra.mxu0 0
    %217 = vmatprep.subr.bf16.mxu0 0
    %218 = vmatpush2.bf16.msra.mxu0 0
    %219 = vmatprep.subr.bf16.mxu0 0
    %220 = vmatpush2.bf16.msra.mxu0 0
    %221 = vmatprep.subr.bf16.mxu0 0
    %222 = vmatpush2.bf16.msra.mxu0 0
    %223 = vmatprep.subr.bf16.mxu0 0
    %224 = vmatpush2.bf16.msra.mxu0 0
    %225 = vmatprep.subr.bf16.mxu0 0
    %226 = vmatpush2.bf16.msra.mxu0 0
    %227 = vmatprep.subr.bf16.mxu0 0
    %228 = vmatpush2.bf16.msra.mxu0 0
    %229 = vmatprep.subr.bf16.mxu0 0
    %230 = vmatpush2.bf16.msra.mxu0 0
    %231 = vmatprep.mubr.bf16.mxu0 0
    %232 = vmatmul.mubr.bf16.gmra.mxu0 %v184
    %v233 = vpop.f32.mrf.mxu0
    %v234 = vadd.f32 %v125, %v233
    %v235 = vpop.f32.mrf.mxu0
    %v236 = vpop.f32.mrf.mxu0
    %v237 = vadd.f32 %v130, %v236
    %v238 = vpop.f32.mrf.mxu0
    %239 = vmatprep.mubr.bf16.mxu0 0
    %240 = vmatmul.mubr.bf16.gmra.mxu0 %v187
    %v241 = vpop.f32.mrf.mxu0
    %v242 = vadd.f32 %v135, %v241
    %v243 = vpop.f32.mrf.mxu0
    %v244 = vpop.f32.mrf.mxu0
    %v245 = vadd.f32 %v140, %v244
    %v246 = vpop.f32.mrf.mxu0
    %247 = vmatprep.mubr.bf16.mxu0 0
    %248 = vmatmul.mubr.bf16.gmra.mxu0 %v190
    %v249 = vpop.f32.mrf.mxu0
    %v250 = vadd.f32 %v145, %v249
    %v251 = vpop.f32.mrf.mxu0
    %v252 = vpop.f32.mrf.mxu0
    %v253 = vadd.f32 %v150, %v252
    %v254 = vpop.f32.mrf.mxu0
    %255 = vmatprep.mubr.bf16.mxu0 0
    %256 = vmatmul.mubr.bf16.gmra.mxu0 %v193
    %v257 = vpop.f32.mrf.mxu0
    %v258 = vadd.f32 %v155, %v257
    %v259 = vpop.f32.mrf.mxu0
    %v260 = vpop.f32.mrf.mxu0
    %v261 = vadd.f32 %v160, %v260
    %v262 = vpop.f32.mrf.mxu0
    %263 = vdwg.mxu0
    %v264 = vadd.f32 %v234, %v237
    %v265 = vrot.slane %v264, 4
    %v266 = vadd.f32 %v264, %v265
    %v267 = vrot.slane %v266, 2
    %v268 = vadd.f32 %v266, %v267
    %v269 = vrot.slane %v268, 1
    %v270 = vadd.f32 %v268, %v269
    %v271 = vrcp.pop 16.0
    %v272 = vmul.f32 %v270, %v271
    %v273 = vsub.f32 %v234, %v272
    %v274 = vsub.f32 %v237, %v272
    %v275 = vmul.f32 %v273, %v273
    %v276 = vmul.f32 %v274, %v274
    %v277 = vadd.f32 %v275, %v276
    %v278 = vrot.slane %v277, 4
    %v279 = vadd.f32 %v277, %v278
    %v280 = vrot.slane %v279, 2
    %v281 = vadd.f32 %v279, %v280
    %v282 = vrot.slane %v281, 1
    %v283 = vadd.f32 %v281, %v282
    %v284 = vmul.f32 %v283, %v271
    %v285 = vadd.f32 %v284, 1e-05
    %v286 = vrsqrt.pop %v285
    %v287 = vmul.f32 %v273, %v286
    %v288 = vmul.f32 %v274, %v286
    %v289 = vadd.f32 %v242, %v245
    %v290 = vrot.slane %v289, 4
    %v291 = vadd.f32 %v289, %v290
    %v292 = vrot.slane %v291, 2
    %v293 = vadd.f32 %v291, %v292
    %v294 = vrot.slane %v293, 1
    %v295 = vadd.f32 %v293, %v294
    %v296 = vmul.f32 %v295, %v271
    %v297 = vsub.f32 %v242, %v296
    %v298 = vsub.f32 %v245, %v296
    %v299 = vmul.f32 %v297, %v297
    %v300 = vmul.f32 %v298, %v298
    %v301 = vadd.f32 %v299, %v300
    %v302 = vrot.slane %v301, 4
    %v303 = vadd.f32 %v301, %v302
    %v304 = vrot.slane %v303, 2
    %v305 = vadd.f32 %v303, %v304
    %v306 = vrot.slane %v305, 1
    %v307 = vadd.f32 %v305, %v306
    %v308 = vmul.f32 %v307, %v271
    %v309 = vadd.f32 %v308, 1e-05
    %v310 = vrsqrt.pop %v309
    %v311 = vmul.f32 %v297, %v310
    %v312 = vmul.f32 %v298, %v310
    %v313 = vadd.f32 %v250, %v253
    %v314 = vrot.slane %v313, 4
    %v315 = vadd.f32 %v313, %v314
    %v316 = vrot.slane %v315, 2
    %v317 = vadd.f32 %v315, %v316
    %v318 = vrot.slane %v317, 1
    %v319 = vadd.f32 %v317, %v318
    %v320 = vmul.f32 %v319, %v271
    %v321 = vsub.f32 %v250, %v320
    %v322 = vsub.f32 %v253, %v320
    %v323 = vmul.f32 %v321, %v321
    %v324 = vmul.f32 %v322, %v322
    %v325 = vadd.f32 %v323, %v324
    %v326 = vrot.slane %v325, 4
    %v327 = vadd.f32 %v325, %v326
    %v328 = vrot.slane %v327, 2
    %v329 = vadd.f32 %v327, %v328
    %v330 = vrot.slane %v329, 1
    %v331 = vadd.f32 %v329, %v330
    %v332 = vmul.f32 %v331, %v271
    %v333 = vadd.f32 %v332, 1e-05
    %v334 = vrsqrt.pop %v333
    %v335 = vmul.f32 %v321, %v334
    %v336 = vmul.f32 %v322, %v334
    %v337 = vadd.f32 %v258, %v261
    %v338 = vrot.slane %v337, 4
    %v339 = vadd.f32 %v337, %v338
    %v340 = vrot.slane %v339, 2
    %v341 = vadd.f32 %v339, %v340
    %v342 = vrot.slane %v341, 1
    %v343 = vadd.f32 %v341, %v342
    %v344 = vmul.f32 %v343, %v271
    %v345 = vsub.f32 %v258, %v344
    %v346 = vsub.f32 %v261, %v344
    %v347 = vmul.f32 %v345, %v345
    %v348 = vmul.f32 %v346, %v346
    %v349 = vadd.f32 %v347, %v348
    %v350 = vrot.slane %v349, 4
    %v351 = vadd.f32 %v349, %v350
    %v352 = vrot.slane %v351, 2
    %v353 = vadd.f32 %v351, %v352
    %v354 = vrot.slane %v353, 1
    %v355 = vadd.f32 %v353, %v354
    %v356 = vmul.f32 %v355, %v271
    %v357 = vadd.f32 %v356, 1e-05
    %v358 = vrsqrt.pop %v357
    %v359 = vmul.f32 %v345, %v358
    %v360 = vmul.f32 %v346, %v358
    %361 = vset.pattern.permute.xlu0 1
    %362 = vperm.xlu0 %361, %v105
    %v363 = vpop.permute.xlu0 %362
    %365 = vset.pattern.permute.xlu0 1
    %366 = vperm.xlu0 %365, %v106
    %v367 = vpop.permute.xlu0 %366
    %369 = vset.pattern.permute.xlu0 1
    %370 = vperm.xlu0 %369, %v107
    %v371 = vpop.permute.xlu0 %370
    %373 = vset.pattern.permute.xlu0 1
    %374 = vperm.xlu0 %373, %v108
    %v375 = vpop.permute.xlu0 %374
    %377 = vset.pattern.permute.xlu0 1
    %378 = vperm.xlu0 %377, %v109
    %v379 = vpop.permute.xlu0 %378
    %381 = vset.pattern.permute.xlu0 1
    %382 = vperm.xlu0 %381, %v110
    %v383 = vpop.permute.xlu0 %382
    %385 = vset.pattern.permute.xlu0 1
    %386 = vperm.xlu0 %385, %v111
    %v387 = vpop.permute.xlu0 %386
    %389 = vset.pattern.permute.xlu0 1
    %390 = vperm.xlu0 %389, %v112
    %v391 = vpop.permute.xlu0 %390
    %v393 = vmul.f32 %v287, %v363
    %v394 = vmul.f32 %v288, %v367
    %v395 = vmul.f32 %v311, %v371
    %v396 = vmul.f32 %v312, %v375
    %v397 = vmul.f32 %v335, %v379
    %v398 = vmul.f32 %v336, %v383
    %v399 = vmul.f32 %v359, %v387
    %v400 = vmul.f32 %v360, %v391
    %401 = vset.pattern.permute.xlu0 2
    %402 = vperm.xlu0 %401, %v105
    %v403 = vpop.permute.xlu0 %402
    %405 = vset.pattern.permute.xlu0 2
    %406 = vperm.xlu0 %405, %v106
    %v407 = vpop.permute.xlu0 %406
    %409 = vset.pattern.permute.xlu0 2
    %410 = vperm.xlu0 %409, %v107
    %v411 = vpop.permute.xlu0 %410
    %413 = vset.pattern.permute.xlu0 2
    %414 = vperm.xlu0 %413, %v108
    %v415 = vpop.permute.xlu0 %414
    %417 = vset.pattern.permute.xlu0 2
    %418 = vperm.xlu0 %417, %v109
    %v419 = vpop.permute.xlu0 %418
    %421 = vset.pattern.permute.xlu0 2
    %422 = vperm.xlu0 %421, %v110
    %v423 = vpop.permute.xlu0 %422
    %425 = vset.pattern.permute.xlu0 2
    %426 = vperm.xlu0 %425, %v111
    %v427 = vpop.permute.xlu0 %426
    %429 = vset.pattern.permute.xlu0 2
    %430 = vperm.xlu0 %429, %v112
    %v431 = vpop.permute.xlu0 %430
    %v433 = vadd.f32 %v393, %v403
    %v434 = vadd.f32 %v394, %v407
    %v435 = vadd.f32 %v395, %v411
    %v436 = vadd.f32 %v396, %v415
    %v437 = vadd.f32 %v397, %v419
    %v438 = vadd.f32 %v398, %v423
    %v439 = vadd.f32 %v399, %v427
    %v440 = vadd.f32 %v400, %v431
    %v441 = vmax.f32 %v433, 0.0
    %v442 = vmax.f32 %v434, 0.0
    %v443 = vmax.f32 %v435, 0.0
    %v444 = vmax.f32 %v436, 0.0
    %v445 = vmax.f32 %v437, 0.0
    %v446 = vmax.f32 %v438, 0.0
    %v447 = vmax.f32 %v439, 0.0
    %v448 = vmax.f32 %v440, 0.0
    %v449 = vld [vmem:[#allocation10] sm:$0xf]
    %v450 = vld [vmem:[#allocation10 + $0x4] sm:$0xf]
    %v451 = vld [vmem:[#allocation10 + $0x8] sm:$0xf]
    %v452 = vld [vmem:[#allocation10 + $0xc] sm:$0xf]
    %v453 = vld [vmem:[#allocation10 + $0x10] sm:$0xf]
    %v454 = vld [vmem:[#allocation10 + $0x14] sm:$0xf]
    %v455 = vld [vmem:[#allocation10 + $0x18] sm:$0xf]
    %v456 = vld [vmem:[#allocation10 + $0x1c] sm:$0xf]
    %v457 = vpack.c.bf16 %v442, %v441
    %v458 = vpack.c.bf16 %v444, %v443
    %v459 = vpack.c.bf16 %v446, %v445
    %v460 = vpack.c.bf16 %v448, %v447
    %461 = vset.pattern.permute.xlu0 3
    %462 = vperm.xlu0 %461, %v105
    %v463 = vpop.permute.xlu0 %462
    %465 = vset.pattern.permute.xlu0 3
    %466 = vperm.xlu0 %465, %v106
    %v467 = vpop.permute.xlu0 %466
    %469 = vset.pattern.permute.xlu0 3
    %470 = vperm.xlu0 %469, %v107
    %v471 = vpop.permute.xlu0 %470
    %473 = vset.pattern.permute.xlu0 3
    %474 = vperm.xlu0 %473, %v108
    %v475 = vpop.permute.xlu0 %474
    %477 = vset.pattern.permute.xlu0 3
    %478 = vperm.xlu0 %477, %v109
    %v479 = vpop.permute.xlu0 %478
    %481 = vset.pattern.permute.xlu0 3
    %482 = vperm.xlu0 %481, %v110
    %v483 = vpop.permute.xlu0 %482
    %485 = vset.pattern.permute.xlu0 3
    %486 = vperm.xlu0 %485, %v111
    %v487 = vpop.permute.xlu0 %486
    %489 = vset.pattern.permute.xlu0 3
    %490 = vperm.xlu0 %489, %v112
    %v491 = vpop.permute.xlu0 %490
    %v501 = vunpack.c.l.b16 %v449
    %v502 = vunpack.c.l.b16 %v450
    %v503 = vunpack.c.l.b16 %v451
    %v504 = vunpack.c.l.b16 %v452
    %v505 = vunpack.c.l.b16 %v453
    %v506 = vunpack.c.l.b16 %v454
    %v507 = vunpack.c.l.b16 %v455
    %v508 = vunpack.c.l.b16 %v456
    %v509 = vpack.c.b16 %v502, %v501
    %v510 = vpack.c.b16 %v504, %v503
    %v511 = vpack.c.b16 %v506, %v505
    %v512 = vpack.c.b16 %v508, %v507
    %vm513 = vcmask 523264
    %v515 = vsel %vm513, %v509, 0
    %v518 = vsel %vm513, %v510, 0
    %v521 = vsel %vm513, %v511, 0
    %v524 = vsel %vm513, %v512, 0
    %526 = vmatprep.subr.bf16.mxu0 0
    %527 = vmatpush1.bf16.msra.mxu0 0
    %528 = vmatprep.subr.bf16.mxu0 0
    %529 = vmatpush1.bf16.msra.mxu0 0
    %530 = vmatprep.subr.bf16.mxu0 0
    %531 = vmatpush1.bf16.msra.mxu0 0
    %532 = vmatprep.subr.bf16.mxu0 0
    %533 = vmatpush1.bf16.msra.mxu0 0
    %534 = vmatprep.subr.bf16.mxu0 0
    %535 = vmatpush1.bf16.msra.mxu0 %v460
    %536 = vmatprep.subr.bf16.mxu0 0
    %537 = vmatpush1.bf16.msra.mxu0 %v459
    %538 = vmatprep.subr.bf16.mxu0 0
    %539 = vmatpush1.bf16.msra.mxu0 %v458
    %540 = vmatprep.subr.bf16.mxu0 0
    %541 = vmatpush1.bf16.msra.mxu0 %v457
    %542 = vmatprep.subr.bf16.mxu0 0
    %543 = vmatpush2.bf16.msra.mxu0 0
    %544 = vmatprep.subr.bf16.mxu0 0
    %545 = vmatpush2.bf16.msra.mxu0 0
    %546 = vmatprep.subr.bf16.mxu0 0
    %547 = vmatpush2.bf16.msra.mxu0 0
    %548 = vmatprep.subr.bf16.mxu0 0
    %549 = vmatpush2.bf16.msra.mxu0 0
    %550 = vmatprep.subr.bf16.mxu0 0
    %551 = vmatpush2.bf16.msra.mxu0 0
    %552 = vmatprep.subr.bf16.mxu0 0
    %553 = vmatpush2.bf16.msra.mxu0 0
    %554 = vmatprep.subr.bf16.mxu0 0
    %555 = vmatpush2.bf16.msra.mxu0 0
    %556 = vmatprep.subr.bf16.mxu0 0
    %557 = vmatpush2.bf16.msra.mxu0 0
    %558 = vmatprep.mubr.bf16.mxu0 0
    %559 = vmatmul.mubr.bf16.gmra.mxu0 %v515
    %v560 = vpop.f32.mrf.mxu0
    %v561 = vadd.f32 %v463, %v560
    %v562 = vpop.f32.mrf.mxu0
    %v563 = vpop.f32.mrf.mxu0
    %v564 = vadd.f32 %v467, %v563
    %v565 = vpop.f32.mrf.mxu0
    %566 = vmatprep.mubr.bf16.mxu0 0
    %567 = vmatmul.mubr.bf16.gmra.mxu0 %v518
    %v568 = vpop.f32.mrf.mxu0
    %v569 = vadd.f32 %v471, %v568
    %v570 = vpop.f32.mrf.mxu0
    %v571 = vpop.f32.mrf.mxu0
    %v572 = vadd.f32 %v475, %v571
    %v573 = vpop.f32.mrf.mxu0
    %574 = vmatprep.mubr.bf16.mxu0 0
    %575 = vmatmul.mubr.bf16.gmra.mxu0 %v521
    %v576 = vpop.f32.mrf.mxu0
    %v577 = vadd.f32 %v479, %v576
    %v578 = vpop.f32.mrf.mxu0
    %v579 = vpop.f32.mrf.mxu0
    %v580 = vadd.f32 %v483, %v579
    %v581 = vpop.f32.mrf.mxu0
    %582 = vmatprep.mubr.bf16.mxu0 0
    %583 = vmatmul.mubr.bf16.gmra.mxu0 %v524
    %v584 = vpop.f32.mrf.mxu0
    %v585 = vadd.f32 %v487, %v584
    %v586 = vpop.f32.mrf.mxu0
    %v587 = vpop.f32.mrf.mxu0
    %v588 = vadd.f32 %v491, %v587
    %v589 = vpop.f32.mrf.mxu0
    %590 = vdwg.mxu0
    %v591 = vadd.f32 %v561, %v564
    %v592 = vrot.slane %v591, 4
    %v593 = vadd.f32 %v591, %v592
    %v594 = vrot.slane %v593, 2
    %v595 = vadd.f32 %v593, %v594
    %v596 = vrot.slane %v595, 1
    %v597 = vadd.f32 %v595, %v596
    %v598 = vmul.f32 %v597, %v271
    %v599 = vsub.f32 %v561, %v598
    %v600 = vsub.f32 %v564, %v598
    %v601 = vmul.f32 %v599, %v599
    %v602 = vmul.f32 %v600, %v600
    %v603 = vadd.f32 %v601, %v602
    %v604 = vrot.slane %v603, 4
    %v605 = vadd.f32 %v603, %v604
    %v606 = vrot.slane %v605, 2
    %v607 = vadd.f32 %v605, %v606
    %v608 = vrot.slane %v607, 1
    %v609 = vadd.f32 %v607, %v608
    %v610 = vmul.f32 %v609, %v271
    %v611 = vadd.f32 %v610, 1e-05
    %v612 = vrsqrt.pop %v611
    %v613 = vmul.f32 %v599, %v612
    %v614 = vmul.f32 %v600, %v612
    %v615 = vadd.f32 %v569, %v572
    %v616 = vrot.slane %v615, 4
    %v617 = vadd.f32 %v615, %v616
    %v618 = vrot.slane %v617, 2
    %v619 = vadd.f32 %v617, %v618
    %v620 = vrot.slane %v619, 1
    %v621 = vadd.f32 %v619, %v620
    %v622 = vmul.f32 %v621, %v271
    %v623 = vsub.f32 %v569, %v622
    %v624 = vsub.f32 %v572, %v622
    %v625 = vmul.f32 %v623, %v623
    %v626 = vmul.f32 %v624, %v624
    %v627 = vadd.f32 %v625, %v626
    %v628 = vrot.slane %v627, 4
    %v629 = vadd.f32 %v627, %v628
    %v630 = vrot.slane %v629, 2
    %v631 = vadd.f32 %v629, %v630
    %v632 = vrot.slane %v631, 1
    %v633 = vadd.f32 %v631, %v632
    %v634 = vmul.f32 %v633, %v271
    %v635 = vadd.f32 %v634, 1e-05
    %v636 = vrsqrt.pop %v635
    %v637 = vmul.f32 %v623, %v636
    %v638 = vmul.f32 %v624, %v636
    %v639 = vadd.f32 %v577, %v580
    %v640 = vrot.slane %v639, 4
    %v641 = vadd.f32 %v639, %v640
    %v642 = vrot.slane %v641, 2
    %v643 = vadd.f32 %v641, %v642
    %v644 = vrot.slane %v643, 1
    %v645 = vadd.f32 %v643, %v644
    %v646 = vmul.f32 %v645, %v271
    %v647 = vsub.f32 %v577, %v646
    %v648 = vsub.f32 %v580, %v646
    %v649 = vmul.f32 %v647, %v647
    %v650 = vmul.f32 %v648, %v648
    %v651 = vadd.f32 %v649, %v650
    %v652 = vrot.slane %v651, 4
    %v653 = vadd.f32 %v651, %v652
    %v654 = vrot.slane %v653, 2
    %v655 = vadd.f32 %v653, %v654
    %v656 = vrot.slane %v655, 1
    %v657 = vadd.f32 %v655, %v656
    %v658 = vmul.f32 %v657, %v271
    %v659 = vadd.f32 %v658, 1e-05
    %v660 = vrsqrt.pop %v659
    %v661 = vmul.f32 %v647, %v660
    %v662 = vmul.f32 %v648, %v660
    %v663 = vadd.f32 %v585, %v588
    %v664 = vrot.slane %v663, 4
    %v665 = vadd.f32 %v663, %v664
    %v666 = vrot.slane %v665, 2
    %v667 = vadd.f32 %v665, %v666
    %v668 = vrot.slane %v667, 1
    %v669 = vadd.f32 %v667, %v668
    %v670 = vmul.f32 %v669, %v271
    %v671 = vsub.f32 %v585, %v670
    %v672 = vsub.f32 %v588, %v670
    %v673 = vmul.f32 %v671, %v671
    %v674 = vmul.f32 %v672, %v672
    %v675 = vadd.f32 %v673, %v674
    %v676 = vrot.slane %v675, 4
    %v677 = vadd.f32 %v675, %v676
    %v678 = vrot.slane %v677, 2
    %v679 = vadd.f32 %v677, %v678
    %v680 = vrot.slane %v679, 1
    %v681 = vadd.f32 %v679, %v680
    %v682 = vmul.f32 %v681, %v271
    %v683 = vadd.f32 %v682, 1e-05
    %v684 = vrsqrt.pop %v683
    %v685 = vmul.f32 %v671, %v684
    %v686 = vmul.f32 %v672, %v684
    %687 = vset.pattern.permute.xlu0 4
    %688 = vperm.xlu0 %687, %v105
    %v689 = vpop.permute.xlu0 %688
    %691 = vset.pattern.permute.xlu0 4
    %692 = vperm.xlu0 %691, %v106
    %v693 = vpop.permute.xlu0 %692
    %695 = vset.pattern.permute.xlu0 4
    %696 = vperm.xlu0 %695, %v107
    %v697 = vpop.permute.xlu0 %696
    %699 = vset.pattern.permute.xlu0 4
    %700 = vperm.xlu0 %699, %v108
    %v701 = vpop.permute.xlu0 %700
    %703 = vset.pattern.permute.xlu0 4
    %704 = vperm.xlu0 %703, %v109
    %v705 = vpop.permute.xlu0 %704
    %707 = vset.pattern.permute.xlu0 4
    %708 = vperm.xlu0 %707, %v110
    %v709 = vpop.permute.xlu0 %708
    %711 = vset.pattern.permute.xlu0 4
    %712 = vperm.xlu0 %711, %v111
    %v713 = vpop.permute.xlu0 %712
    %715 = vset.pattern.permute.xlu0 4
    %716 = vperm.xlu0 %715, %v112
    %v717 = vpop.permute.xlu0 %716
    %v719 = vmul.f32 %v613, %v689
    %v720 = vmul.f32 %v614, %v693
    %v721 = vmul.f32 %v637, %v697
    %v722 = vmul.f32 %v638, %v701
    %v723 = vmul.f32 %v661, %v705
    %v724 = vmul.f32 %v662, %v709
    %v725 = vmul.f32 %v685, %v713
    %v726 = vmul.f32 %v686, %v717
    %727 = vset.pattern.permute.xlu0 5
    %728 = vperm.xlu0 %727, %v105
    %v729 = vpop.permute.xlu0 %728
    %731 = vset.pattern.permute.xlu0 5
    %732 = vperm.xlu0 %731, %v106
    %v733 = vpop.permute.xlu0 %732
    %735 = vset.pattern.permute.xlu0 5
    %736 = vperm.xlu0 %735, %v107
    %v737 = vpop.permute.xlu0 %736
    %739 = vset.pattern.permute.xlu0 5
    %740 = vperm.xlu0 %739, %v108
    %v741 = vpop.permute.xlu0 %740
    %743 = vset.pattern.permute.xlu0 5
    %744 = vperm.xlu0 %743, %v109
    %v745 = vpop.permute.xlu0 %744
    %747 = vset.pattern.permute.xlu0 5
    %748 = vperm.xlu0 %747, %v110
    %v749 = vpop.permute.xlu0 %748
    %751 = vset.pattern.permute.xlu0 5
    %752 = vperm.xlu0 %751, %v111
    %v753 = vpop.permute.xlu0 %752
    %755 = vset.pattern.permute.xlu0 5
    %756 = vperm.xlu0 %755, %v112
    %v757 = vpop.permute.xlu0 %756
    %v759 = vadd.f32 %v719, %v729
    %v760 = vadd.f32 %v720, %v733
    %v761 = vadd.f32 %v721, %v737
    %v762 = vadd.f32 %v722, %v741
    %v763 = vadd.f32 %v723, %v745
    %v764 = vadd.f32 %v724, %v749
    %v765 = vadd.f32 %v725, %v753
    %v766 = vadd.f32 %v726, %v757
    %v767 = vmax.f32 %v759, 0.0
    %v768 = vmax.f32 %v760, 0.0
    %v769 = vmax.f32 %v761, 0.0
    %v770 = vmax.f32 %v762, 0.0
    %v771 = vmax.f32 %v763, 0.0
    %v772 = vmax.f32 %v764, 0.0
    %v773 = vmax.f32 %v765, 0.0
    %v774 = vmax.f32 %v766, 0.0
    %v775 = vld [vmem:[%s7] sm:$0xf]
    %v776 = vld [vmem:[%s7 + $0x4] sm:$0xf]
    %v777 = vld [vmem:[%s7 + $0x8] sm:$0xf]
    %v778 = vpack.c.bf16 %v768, %v767
    %v779 = vpack.c.bf16 %v770, %v769
    %v780 = vpack.c.bf16 %v772, %v771
    %v781 = vpack.c.bf16 %v774, %v773
    %v782 = vld [vmem:[%s9] sm:$0xff]
    %v783 = vld [vmem:[%s9 + $0x8] sm:$0xff]
    %v784 = vld [vmem:[%s9 + $0x10] sm:$0xff]
    %786 = vset.pattern.permute.xlu0 0
    %787 = vperm.xlu0 %786, %v782
    %v788 = vpop.permute.xlu0 %787
    %791 = vset.pattern.permute.xlu0 0
    %792 = vperm.xlu0 %791, %v783
    %v793 = vpop.permute.xlu0 %792
    %796 = vset.pattern.permute.xlu0 0
    %797 = vperm.xlu0 %796, %v784
    %v798 = vpop.permute.xlu0 %797
    %v803 = vunpack.c.l.b16 %v775
    %v804 = vunpack.c.l.b16 %v776
    %v805 = vunpack.c.l.b16 %v777
    %v806 = vpack.c.b16 %v804, %v803
    %v807 = vpack.c.b16 %v805, %v805
    %v809 = vsel %vm513, %v806, 0
    %v812 = vsel %vm513, %v807, 0
    %814 = vmatprep.subr.bf16.mxu0 0
    %815 = vmatpush1.bf16.msra.mxu0 0
    %816 = vmatprep.subr.bf16.mxu0 0
    %817 = vmatpush1.bf16.msra.mxu0 0
    %818 = vmatprep.subr.bf16.mxu0 0
    %819 = vmatpush1.bf16.msra.mxu0 0
    %820 = vmatprep.subr.bf16.mxu0 0
    %821 = vmatpush1.bf16.msra.mxu0 0
    %822 = vmatprep.subr.bf16.mxu0 0
    %823 = vmatpush1.bf16.msra.mxu0 %v781
    %824 = vmatprep.subr.bf16.mxu0 0
    %825 = vmatpush1.bf16.msra.mxu0 %v780
    %826 = vmatprep.subr.bf16.mxu0 0
    %827 = vmatpush1.bf16.msra.mxu0 %v779
    %828 = vmatprep.subr.bf16.mxu0 0
    %829 = vmatpush1.bf16.msra.mxu0 %v778
    %830 = vmatprep.subr.bf16.mxu0 0
    %831 = vmatpush2.bf16.msra.mxu0 0
    %832 = vmatprep.subr.bf16.mxu0 0
    %833 = vmatpush2.bf16.msra.mxu0 0
    %834 = vmatprep.subr.bf16.mxu0 0
    %835 = vmatpush2.bf16.msra.mxu0 0
    %836 = vmatprep.subr.bf16.mxu0 0
    %837 = vmatpush2.bf16.msra.mxu0 0
    %838 = vmatprep.subr.bf16.mxu0 0
    %839 = vmatpush2.bf16.msra.mxu0 0
    %840 = vmatprep.subr.bf16.mxu0 0
    %841 = vmatpush2.bf16.msra.mxu0 0
    %842 = vmatprep.subr.bf16.mxu0 0
    %843 = vmatpush2.bf16.msra.mxu0 0
    %844 = vmatprep.subr.bf16.mxu0 0
    %845 = vmatpush2.bf16.msra.mxu0 0
    %846 = vmatprep.mubr.bf16.mxu0 0
    %847 = vmatmul.mubr.bf16.gmra.mxu0 %v809
    %v848 = vpop.f32.mrf.mxu0
    %v849 = vadd.f32 %v788, %v848
    %v850 = vpop.f32.mrf.mxu0
    %v851 = vpop.f32.mrf.mxu0
    %v852 = vadd.f32 %v793, %v851
    %v853 = vpop.f32.mrf.mxu0
    %854 = vmatprep.mubr.bf16.mxu0 0
    %855 = vmatmul.mubr.bf16.gmra.mxu0 %v812
    %v856 = vpop.f32.mrf.mxu0
    %v857 = vadd.f32 %v798, %v856
    %v858 = vpop.f32.mrf.mxu0
    %v859 = vpop.f32.mrf.mxu0
    %v860 = vpop.f32.mrf.mxu0
    %861 = vdwg.mxu0
    %v862 = vld [vmem:[#allocation7] sm:$0xff]
    %v863 = vld [vmem:[#allocation7 + $0x8] sm:$0xff]
    %v864 = vld [vmem:[#allocation7 + $0x10] sm:$0xff]
    %v865 = vld [vmem:[#allocation7 + $0x18] sm:$0xff]
    %v866 = vld [vmem:[#allocation7 + $0x20] sm:$0x3]
    %v867 = vld [vmem:[#allocation5] sm:$0xff]
    %v868 = vld [vmem:[#allocation8] sm:$0xff]
    %v869 = vmul.f32 %v862, %v867
    %v871 = vrot.slane %v867, 1
    %v873 = vmul.f32 %v862, %v871
    %v874 = vmul.f32 %v849, %v869
    %v876 = vrot.slane %v873, 7
    %v878 = vmul.f32 %v849, %v876
    %v880 = vrot.slane %v878, 1
    %v882 = vadd.f32 %v874, %v880
    %v883 = vmul.f32 %v868, %v882
    %v884 = vadd.f32 %v883, 0.0
    %v886 = vrot.slane %v869, 6
    %v888 = vmul.f32 %v849, %v886
    %v889 = vrot.slane %v873, 5
    %v891 = vmul.f32 %v849, %v889
    %v893 = vrot.slane %v891, 1
    %v895 = vadd.f32 %v888, %v893
    %v897 = vrot.slane %v895, 6
    %v899 = vmul.f32 %v868, %v897
    %v901 = vrot.slane %v899, 4
    %v903 = vadd.f32 %v884, %v901
    %v904 = vrot.slane %v873, 1
    %v906 = vadd.f32 %v873, %v904
    %v907 = vrot.slane %v873, 2
    %v909 = vadd.f32 %v906, %v907
    %v910 = vrot.slane %v867, 4
    %v912 = vmul.f32 %v862, %v910
    %v914 = vrot.slane %v912, 1
    %v916 = vadd.f32 %v912, %v914
    %v917 = vrot.slane %v912, 2
    %v919 = vadd.f32 %v916, %v917
    %v921 = vrot.slane %v909, 5
    %v923 = vmul.f32 %v849, %v921
    %v925 = vrot.slane %v919, 4
    %v927 = vmul.f32 %v849, %v925
    %v929 = vrot.slane %v927, 1
    %v931 = vadd.f32 %v923, %v929
    %v933 = vrot.slane %v931, 4
    %v935 = vmul.f32 %v868, %v933
    %v936 = vadd.f32 %v903, %v935
    %v937 = vrot.slane %v909, 3
    %v939 = vmul.f32 %v849, %v937
    %v940 = vrot.slane %v919, 2
    %v942 = vmul.f32 %v849, %v940
    %v944 = vrot.slane %v942, 1
    %v946 = vadd.f32 %v939, %v944
    %v948 = vrot.slane %v946, 2
    %v950 = vmul.f32 %v868, %v948
    %v952 = vrot.slane %v950, 4
    %v954 = vadd.f32 %v936, %v952
    %v955 = vrot.slane %v867, 5
    %v957 = vmul.f32 %v862, %v955
    %v958 = vrot.slane %v912, 4
    %v960 = vmul.f32 %v852, %v958
    %v962 = vrot.slane %v957, 3
    %v964 = vmul.f32 %v852, %v962
    %v966 = vrot.slane %v964, 1
    %v968 = vadd.f32 %v960, %v966
    %v970 = vrot.slane %v968, 7
    %v972 = vmul.f32 %v868, %v970
    %v974 = vrot.slane %v972, 1
    %v976 = vadd.f32 %v954, %v974
    %v977 = vmul.f32 %v852, %v917
    %v978 = vrot.slane %v957, 1
    %v980 = vmul.f32 %v852, %v978
    %v982 = vrot.slane %v980, 1
    %v984 = vadd.f32 %v977, %v982
    %v986 = vrot.slane %v984, 5
    %v988 = vmul.f32 %v868, %v986
    %v990 = vrot.slane %v988, 5
    %v992 = vadd.f32 %v976, %v990
    %v993 = vrot.slane %v867, 3
    %v995 = vmul.f32 %v862, %v993
    %v997 = vrot.slane %v995, 5
    %v999 = vmul.f32 %v852, %v997
    %v1001 = vrot.slane %v960, 1
    %v1003 = vadd.f32 %v999, %v1001
    %v1005 = vrot.slane %v1003, 6
    %v1007 = vmul.f32 %v868, %v1005
    %v1009 = vrot.slane %v1007, 2
    %v1011 = vadd.f32 %v992, %v1009
    %v1012 = vrot.slane %v995, 3
    %v1014 = vmul.f32 %v852, %v1012
    %v1016 = vrot.slane %v977, 1
    %v1018 = vadd.f32 %v1014, %v1016
    %v1020 = vrot.slane %v1018, 4
    %v1022 = vmul.f32 %v868, %v1020
    %v1024 = vrot.slane %v1022, 6
    %v1026 = vadd.f32 %v1011, %v1024
    %v1027 = vrot.slane %v867, 2
    %v1029 = vmul.f32 %v862, %v1027
    %v1031 = vrot.slane %v1029, 6
    %v1033 = vmul.f32 %v852, %v1031
    %v1035 = vrot.slane %v999, 1
    %v1037 = vadd.f32 %v1033, %v1035
    %v1039 = vrot.slane %v1037, 5
    %v1041 = vmul.f32 %v868, %v1039
    %v1043 = vrot.slane %v1041, 3
    %v1045 = vadd.f32 %v1026, %v1043
    %v1046 = vrot.slane %v1029, 4
    %v1048 = vmul.f32 %v852, %v1046
    %v1050 = vrot.slane %v1014, 1
    %v1052 = vadd.f32 %v1048, %v1050
    %v1054 = vrot.slane %v1052, 3
    %v1056 = vmul.f32 %v868, %v1054
    %v1058 = vrot.slane %v1056, 7
    %v1060 = vadd.f32 %v1045, %v1058
    %v1061 = vmul.f32 %v863, %v993
    %v1063 = vrot.slane %v1061, 1
    %v1065 = vadd.f32 %v995, %v1063
    %v1066 = vrot.slane %v1061, 2
    %v1068 = vadd.f32 %v1065, %v1066
    %v1069 = vrot.slane %v867, 6
    %v1071 = vmul.f32 %v862, %v1069
    %v1072 = vmul.f32 %v863, %v1069
    %v1074 = vrot.slane %v1072, 1
    %v1076 = vadd.f32 %v1071, %v1074
    %v1077 = vrot.slane %v1072, 2
    %v1079 = vadd.f32 %v1076, %v1077
    %v1080 = vmul.f32 %v864, %v1027
    %v1082 = vrot.slane %v1080, 1
    %v1084 = vadd.f32 %v1080, %v1082
    %v1085 = vrot.slane %v1080, 2
    %v1087 = vadd.f32 %v1084, %v1085
    %v1088 = vmul.f32 %v864, %v955
    %v1090 = vrot.slane %v1088, 1
    %v1092 = vadd.f32 %v1088, %v1090
    %v1093 = vrot.slane %v1088, 2
    %v1095 = vadd.f32 %v1092, %v1093
    %v1096 = vmul.f32 %v865, %v871
    %v1098 = vrot.slane %v1096, 1
    %v1100 = vadd.f32 %v1096, %v1098
    %v1101 = vrot.slane %v1096, 2
    %v1103 = vadd.f32 %v1100, %v1101
    %v1104 = vmul.f32 %v865, %v910
    %v1106 = vrot.slane %v1104, 1
    %v1108 = vadd.f32 %v1104, %v1106
    %v1109 = vrot.slane %v1104, 2
    %v1111 = vadd.f32 %v1108, %v1109
    %v1113 = vrot.slane %v1068, 3
    %v1115 = vmul.f32 %v852, %v1113
    %v1117 = vrot.slane %v1079, 2
    %v1119 = vmul.f32 %v852, %v1117
    %v1121 = vrot.slane %v1119, 1
    %v1123 = vadd.f32 %v1115, %v1121
    %v1124 = vmul.f32 %v857, %v1087
    %v1126 = vrot.slane %v1124, 4
    %v1128 = vadd.f32 %v1123, %v1126
    %v1130 = vrot.slane %v1095, 7
    %v1132 = vmul.f32 %v857, %v1130
    %v1134 = vrot.slane %v1132, 5
    %v1136 = vadd.f32 %v1128, %v1134
    %v1138 = vrot.slane %v1103, 5
    %v1140 = vmul.f32 %v857, %v1138
    %v1141 = vadd.f32 %v1136, %v1140
    %v1143 = vrot.slane %v1111, 4
    %v1145 = vmul.f32 %v857, %v1143
    %v1147 = vrot.slane %v1145, 1
    %v1149 = vadd.f32 %v1141, %v1147
    %v1151 = vrot.slane %v1149, 3
    %v1153 = vmul.f32 %v868, %v1151
    %v1155 = vrot.slane %v1153, 1
    %v1157 = vadd.f32 %v1060, %v1155
    %v1158 = vrot.slane %v1068, 1
    %v1160 = vmul.f32 %v852, %v1158
    %v1161 = vmul.f32 %v852, %v1079
    %v1163 = vrot.slane %v1161, 1
    %v1165 = vadd.f32 %v1160, %v1163
    %v1167 = vrot.slane %v1087, 6
    %v1169 = vmul.f32 %v857, %v1167
    %v1171 = vrot.slane %v1169, 4
    %v1173 = vadd.f32 %v1165, %v1171
    %v1174 = vrot.slane %v1095, 5
    %v1176 = vmul.f32 %v857, %v1174
    %v1178 = vrot.slane %v1176, 5
    %v1180 = vadd.f32 %v1173, %v1178
    %v1181 = vrot.slane %v1103, 3
    %v1183 = vmul.f32 %v857, %v1181
    %v1184 = vadd.f32 %v1180, %v1183
    %v1185 = vrot.slane %v1111, 2
    %v1187 = vmul.f32 %v857, %v1185
    %v1189 = vrot.slane %v1187, 1
    %v1191 = vadd.f32 %v1184, %v1189
    %v1193 = vrot.slane %v1191, 1
    %v1195 = vmul.f32 %v868, %v1193
    %v1197 = vrot.slane %v1195, 5
    %v1199 = vadd.f32 %v1157, %v1197
    %v1200 = vmul.f32 %v863, %v867
    %v1202 = vrot.slane %v1200, 1
    %v1204 = vadd.f32 %v1200, %v1202
    %v1205 = vrot.slane %v1200, 2
    %v1207 = vadd.f32 %v1204, %v1205
    %v1208 = vadd.f32 %v1061, %v1063
    %v1209 = vadd.f32 %v1208, %v1066
    %v1210 = vrot.slane %v867, 7
    %v1212 = vmul.f32 %v864, %v1210
    %v1214 = vrot.slane %v1212, 1
    %v1216 = vadd.f32 %v1212, %v1214
    %v1217 = vrot.slane %v1212, 2
    %v1219 = vadd.f32 %v1216, %v1217
    %v1220 = vmul.f32 %v865, %v1069
    %v1222 = vrot.slane %v1220, 1
    %v1224 = vadd.f32 %v1220, %v1222
    %v1225 = vrot.slane %v1220, 2
    %v1227 = vadd.f32 %v1224, %v1225
    %v1229 = vrot.slane %v1207, 6
    %v1231 = vmul.f32 %v852, %v1229
    %v1233 = vrot.slane %v1209, 5
    %v1235 = vmul.f32 %v852, %v1233
    %v1237 = vrot.slane %v1235, 1
    %v1239 = vadd.f32 %v1231, %v1237
    %v1241 = vrot.slane %v1219, 3
    %v1243 = vmul.f32 %v857, %v1241
    %v1245 = vrot.slane %v1243, 4
    %v1247 = vadd.f32 %v1239, %v1245
    %v1248 = vrot.slane %v1087, 2
    %v1250 = vmul.f32 %v857, %v1248
    %v1252 = vrot.slane %v1250, 5
    %v1254 = vadd.f32 %v1247, %v1252
    %v1255 = vmul.f32 %v857, %v1227
    %v1256 = vadd.f32 %v1254, %v1255
    %v1257 = vrot.slane %v1103, 7
    %v1259 = vmul.f32 %v857, %v1257
    %v1261 = vrot.slane %v1259, 1
    %v1263 = vadd.f32 %v1256, %v1261
    %v1265 = vrot.slane %v1263, 2
    %v1267 = vmul.f32 %v868, %v1265
    %v1269 = vrot.slane %v1267, 2
    %v1271 = vadd.f32 %v1199, %v1269
    %v1272 = vrot.slane %v1207, 4
    %v1274 = vmul.f32 %v852, %v1272
    %v1275 = vrot.slane %v1209, 3
    %v1277 = vmul.f32 %v852, %v1275
    %v1279 = vrot.slane %v1277, 1
    %v1281 = vadd.f32 %v1274, %v1279
    %v1282 = vrot.slane %v1219, 1
    %v1284 = vmul.f32 %v857, %v1282
    %v1286 = vrot.slane %v1284, 4
    %v1288 = vadd.f32 %v1281, %v1286
    %v1289 = vrot.slane %v1124, 5
    %v1291 = vadd.f32 %v1288, %v1289
    %v1293 = vrot.slane %v1227, 6
    %v1295 = vmul.f32 %v857, %v1293
    %v1296 = vadd.f32 %v1291, %v1295
    %v1298 = vrot.slane %v1140, 1
    %v1300 = vadd.f32 %v1296, %v1298
    %v1301 = vmul.f32 %v868, %v1300
    %v1303 = vrot.slane %v1301, 6
    %v1305 = vadd.f32 %v1271, %v1303
    %v1306 = vmul.f32 %v863, %v955
    %v1308 = vrot.slane %v1306, 1
    %v1310 = vadd.f32 %v1306, %v1308
    %v1311 = vrot.slane %v1306, 2
    %v1313 = vadd.f32 %v1310, %v1311
    %v1314 = vmul.f32 %v864, %v910
    %v1316 = vrot.slane %v1314, 1
    %v1318 = vadd.f32 %v1314, %v1316
    %v1319 = vadd.f32 %v1318, %v1109
    %v1320 = vmul.f32 %v865, %v1210
    %v1322 = vrot.slane %v1320, 2
    %v1324 = vadd.f32 %v1216, %v1322
    %v1325 = vmul.f32 %v865, %v993
    %v1326 = vmul.f32 %v866, %v993
    %v1328 = vrot.slane %v1326, 1
    %v1330 = vadd.f32 %v1325, %v1328
    %v1331 = vrot.slane %v1326, 2
    %v1333 = vadd.f32 %v1330, %v1331
    %v1334 = vmul.f32 %v866, %v1069
    %v1336 = vrot.slane %v1334, 1
    %v1338 = vadd.f32 %v1220, %v1336
    %v1339 = vrot.slane %v1334, 2
    %v1341 = vadd.f32 %v1338, %v1339
    %v1343 = vrot.slane %v1313, 1
    %v1345 = vmul.f32 %v852, %v1343
    %v1346 = vmul.f32 %v852, %v1207
    %v1348 = vrot.slane %v1346, 1
    %v1350 = vadd.f32 %v1345, %v1348
    %v1352 = vrot.slane %v1319, 6
    %v1354 = vmul.f32 %v857, %v1352
    %v1356 = vrot.slane %v1354, 4
    %v1358 = vadd.f32 %v1350, %v1356
    %v1360 = vrot.slane %v1324, 5
    %v1362 = vmul.f32 %v857, %v1360
    %v1364 = vrot.slane %v1362, 5
    %v1366 = vadd.f32 %v1358, %v1364
    %v1368 = vrot.slane %v1333, 3
    %v1370 = vmul.f32 %v857, %v1368
    %v1371 = vadd.f32 %v1366, %v1370
    %v1373 = vrot.slane %v1341, 2
    %v1375 = vmul.f32 %v857, %v1373
    %v1377 = vrot.slane %v1375, 1
    %v1379 = vadd.f32 %v1371, %v1377
    %v1381 = vrot.slane %v1379, 1
    %v1383 = vmul.f32 %v868, %v1381
    %v1385 = vrot.slane %v1383, 3
    %v1387 = vadd.f32 %v1305, %v1385
    %v1388 = vrot.slane %v1313, 7
    %v1390 = vmul.f32 %v852, %v1388
    %v1392 = vrot.slane %v1231, 1
    %v1394 = vadd.f32 %v1390, %v1392
    %v1395 = vrot.slane %v1319, 4
    %v1397 = vmul.f32 %v857, %v1395
    %v1399 = vrot.slane %v1397, 4
    %v1401 = vadd.f32 %v1394, %v1399
    %v1402 = vrot.slane %v1324, 3
    %v1404 = vmul.f32 %v857, %v1402
    %v1406 = vrot.slane %v1404, 5
    %v1408 = vadd.f32 %v1401, %v1406
    %v1409 = vrot.slane %v1333, 1
    %v1411 = vmul.f32 %v857, %v1409
    %v1412 = vadd.f32 %v1408, %v1411
    %v1413 = vmul.f32 %v857, %v1341
    %v1415 = vrot.slane %v1413, 1
    %v1417 = vadd.f32 %v1412, %v1415
    %v1419 = vrot.slane %v1417, 7
    %v1421 = vmul.f32 %v868, %v1419
    %v1423 = vrot.slane %v1421, 7
    %v1425 = vadd.f32 %v1387, %v1423
    %vm1426 = vcmask 1040384
    %v1427 = vsel %vm1426, %v1425, -inf
    %1428 = vmax.xlane.f32.xlu0 %v1427
    %v1429 = vpop.xlane.xlu0 %1428
    %v1430 = vsub.f32 %v1425, %v1429
    %v1431 = vmul.f32 %v1430, 1.442695
    %v1432 = vpow.pop %v1431
    %v1433 = vlaneseq
    %v1434 = vshrl.u32 %v1433, 7
    %v1435 = vsub.s32 0, %v1434
    %v1436 = vrot.slane %v1432, %v1435
    %v1437 = vld [vmem:[%s10] sm:$0xff]
    %v1438 = vld [vmem:[%s10 + $0x8] sm:$0xff]
    %v1439 = vld [vmem:[%s10 + $0x10] sm:$0xff]
    %v1440 = vld [vmem:[%s10 + $0x18] sm:$0xff]
    %v1441 = vld [vmem:[%s10 + $0x20] sm:$0xff]
    %v1442 = vld [vmem:[%s10 + $0x28] sm:$0xff]
    %v1443 = vld [vmem:[%s10 + $0x30] sm:$0xff]
    %v1444 = vld [vmem:[%s10 + $0x38] sm:$0xff]
    %v1445 = vld [vmem:[%s10 + $0x40] sm:$0xff]
    %v1446 = vld [vmem:[%s10 + $0x48] sm:$0xff]
    %v1447 = vld [vmem:[%s10 + $0x50] sm:$0xff]
    %v1448 = vld [vmem:[%s10 + $0x58] sm:$0xff]
    %v1449 = vld [vmem:[%s10 + $0x60] sm:$0xff]
    %v1450 = vld [vmem:[%s10 + $0x68] sm:$0xff]
    %v1451 = vld [vmem:[%s10 + $0x70] sm:$0xff]
    %v1452 = vld [vmem:[%s10 + $0x78] sm:$0xff]
    %1453 = vmatprep.subr.mxu0 0.0
    %v1454 = vand.u32 %v1452, 4294901760
    %1455 = vmatpush1.msra.mxu0 %v1454
    %1456 = vmatprep.subr.mxu0 0.0
    %v1457 = vand.u32 %v1451, 4294901760
    %1458 = vmatpush1.msra.mxu0 %v1457
    %1459 = vmatprep.subr.mxu0 0.0
    %v1460 = vand.u32 %v1450, 4294901760
    %1461 = vmatpush1.msra.mxu0 %v1460
    %1462 = vmatprep.subr.mxu0 0.0
    %v1463 = vand.u32 %v1449, 4294901760
    %1464 = vmatpush1.msra.mxu0 %v1463
    %1465 = vmatprep.subr.mxu0 0.0
    %v1466 = vand.u32 %v1448, 4294901760
    %1467 = vmatpush1.msra.mxu0 %v1466
    %1468 = vmatprep.subr.mxu0 0.0
    %v1469 = vand.u32 %v1447, 4294901760
    %1470 = vmatpush1.msra.mxu0 %v1469
    %1471 = vmatprep.subr.mxu0 0.0
    %v1472 = vand.u32 %v1446, 4294901760
    %1473 = vmatpush1.msra.mxu0 %v1472
    %1474 = vmatprep.subr.mxu0 0.0
    %v1475 = vand.u32 %v1445, 4294901760
    %1476 = vmatpush1.msra.mxu0 %v1475
    %1477 = vmatprep.subr.mxu0 0.0
    %v1478 = vand.u32 %v1444, 4294901760
    %1479 = vmatpush1.msra.mxu0 %v1478
    %1480 = vmatprep.subr.mxu0 0.0
    %v1481 = vand.u32 %v1443, 4294901760
    %1482 = vmatpush1.msra.mxu0 %v1481
    %1483 = vmatprep.subr.mxu0 0.0
    %v1484 = vand.u32 %v1442, 4294901760
    %1485 = vmatpush1.msra.mxu0 %v1484
    %1486 = vmatprep.subr.mxu0 0.0
    %v1487 = vand.u32 %v1441, 4294901760
    %1488 = vmatpush1.msra.mxu0 %v1487
    %1489 = vmatprep.subr.mxu0 0.0
    %v1490 = vand.u32 %v1440, 4294901760
    %1491 = vmatpush1.msra.mxu0 %v1490
    %1492 = vmatprep.subr.mxu0 0.0
    %v1493 = vand.u32 %v1439, 4294901760
    %1494 = vmatpush1.msra.mxu0 %v1493
    %1495 = vmatprep.subr.mxu0 0.0
    %v1496 = vand.u32 %v1438, 4294901760
    %1497 = vmatpush1.msra.mxu0 %v1496
    %1498 = vmatprep.subr.mxu0 0.0
    %v1499 = vand.u32 %v1437, 4294901760
    %1500 = vmatpush1.msra.mxu0 %v1499
    %1501 = vmatprep.subr.mxu0 0.0
    %1502 = vmatpush2.msra.mxu0 0.0
    %1503 = vmatprep.subr.mxu0 0.0
    %1504 = vmatpush2.msra.mxu0 0.0
    %1505 = vmatprep.subr.mxu0 0.0
    %1506 = vmatpush2.msra.mxu0 0.0
    %1507 = vmatprep.subr.mxu0 0.0
    %1508 = vmatpush2.msra.mxu0 0.0
    %1509 = vmatprep.subr.mxu0 0.0
    %1510 = vmatpush2.msra.mxu0 0.0
    %1511 = vmatprep.subr.mxu0 0.0
    %1512 = vmatpush2.msra.mxu0 0.0
    %1513 = vmatprep.subr.mxu0 0.0
    %1514 = vmatpush2.msra.mxu0 0.0
    %1515 = vmatprep.subr.mxu0 0.0
    %1516 = vmatpush2.msra.mxu0 0.0
    %1517 = vmatprep.subr.mxu0 0.0
    %1518 = vmatpush2.msra.mxu0 0.0
    %1519 = vmatprep.subr.mxu0 0.0
    %1520 = vmatpush2.msra.mxu0 0.0
    %1521 = vmatprep.subr.mxu0 0.0
    %1522 = vmatpush2.msra.mxu0 0.0
    %1523 = vmatprep.subr.mxu0 0.0
    %1524 = vmatpush2.msra.mxu0 0.0
    %1525 = vmatprep.subr.mxu0 0.0
    %1526 = vmatpush2.msra.mxu0 0.0
    %1527 = vmatprep.subr.mxu0 0.0
    %1528 = vmatpush2.msra.mxu0 0.0
    %1529 = vmatprep.subr.mxu0 0.0
    %1530 = vmatpush2.msra.mxu0 0.0
    %1531 = vmatprep.subr.mxu0 0.0
    %1532 = vmatpush2.msra.mxu0 0.0
    %1533 = vmatprep.mubr.f32.mxu0 0.0
    %v1534 = vand.u32 %v1436, 4294901760
    %v1535 = vsub.f32 %v1436, %v1534
    %v1536 = vand.u32 %v1535, 4294901760
    %v1537 = vsub.f32 %v1535, %v1536
    %v1538 = vand.u32 %v1537, 4294901760
    %1539 = vmatmul.mubr.f32.gmra.mxu0 %v1538
    %v1540 = vpop.f32.mrf.mxu0
    %v1541 = vadd.f32 0.0, %v1540
    %v1542 = vpop.f32.mrf.mxu0
    %1543 = vdwg.mxu0
    %1544 = vmatprep.subr.mxu0 0.0
    %v1545 = vand.u32 %v1452, 4294901760
    %v1546 = vsub.f32 %v1452, %v1545
    %v1547 = vand.u32 %v1546, 4294901760
    %v1548 = vsub.f32 %v1546, %v1547
    %v1549 = vand.u32 %v1548, 4294901760
    %1550 = vmatpush1.msra.mxu0 %v1549
    %1551 = vmatprep.subr.mxu0 0.0
    %v1552 = vand.u32 %v1451, 4294901760
    %v1553 = vsub.f32 %v1451, %v1552
    %v1554 = vand.u32 %v1553, 4294901760
    %v1555 = vsub.f32 %v1553, %v1554
    %v1556 = vand.u32 %v1555, 4294901760
    %1557 = vmatpush1.msra.mxu0 %v1556
    %1558 = vmatprep.subr.mxu0 0.0
    %v1559 = vand.u32 %v1450, 4294901760
    %v1560 = vsub.f32 %v1450, %v1559
    %v1561 = vand.u32 %v1560, 4294901760
    %v1562 = vsub.f32 %v1560, %v1561
    %v1563 = vand.u32 %v1562, 4294901760
    %1564 = vmatpush1.msra.mxu0 %v1563
    %1565 = vmatprep.subr.mxu0 0.0
    %v1566 = vand.u32 %v1449, 4294901760
    %v1567 = vsub.f32 %v1449, %v1566
    %v1568 = vand.u32 %v1567, 4294901760
    %v1569 = vsub.f32 %v1567, %v1568
    %v1570 = vand.u32 %v1569, 4294901760
    %1571 = vmatpush1.msra.mxu0 %v1570
    %1572 = vmatprep.subr.mxu0 0.0
    %v1573 = vand.u32 %v1448, 4294901760
    %v1574 = vsub.f32 %v1448, %v1573
    %v1575 = vand.u32 %v1574, 4294901760
    %v1576 = vsub.f32 %v1574, %v1575
    %v1577 = vand.u32 %v1576, 4294901760
    %1578 = vmatpush1.msra.mxu0 %v1577
    %1579 = vmatprep.subr.mxu0 0.0
    %v1580 = vand.u32 %v1447, 4294901760
    %v1581 = vsub.f32 %v1447, %v1580
    %v1582 = vand.u32 %v1581, 4294901760
    %v1583 = vsub.f32 %v1581, %v1582
    %v1584 = vand.u32 %v1583, 4294901760
    %1585 = vmatpush1.msra.mxu0 %v1584
    %1586 = vmatprep.subr.mxu0 0.0
    %v1587 = vand.u32 %v1446, 4294901760
    %v1588 = vsub.f32 %v1446, %v1587
    %v1589 = vand.u32 %v1588, 4294901760
    %v1590 = vsub.f32 %v1588, %v1589
    %v1591 = vand.u32 %v1590, 4294901760
    %1592 = vmatpush1.msra.mxu0 %v1591
    %1593 = vmatprep.subr.mxu0 0.0
    %v1594 = vand.u32 %v1445, 4294901760
    %v1595 = vsub.f32 %v1445, %v1594
    %v1596 = vand.u32 %v1595, 4294901760
    %v1597 = vsub.f32 %v1595, %v1596
    %v1598 = vand.u32 %v1597, 4294901760
    %1599 = vmatpush1.msra.mxu0 %v1598
    %1600 = vmatprep.subr.mxu0 0.0
    %v1601 = vand.u32 %v1444, 4294901760
    %v1602 = vsub.f32 %v1444, %v1601
    %v1603 = vand.u32 %v1602, 4294901760
    %v1604 = vsub.f32 %v1602, %v1603
    %v1605 = vand.u32 %v1604, 4294901760
    %1606 = vmatpush1.msra.mxu0 %v1605
    %1607 = vmatprep.subr.mxu0 0.0
    %v1608 = vand.u32 %v1443, 4294901760
    %v1609 = vsub.f32 %v1443, %v1608
    %v1610 = vand.u32 %v1609, 4294901760
    %v1611 = vsub.f32 %v1609, %v1610
    %v1612 = vand.u32 %v1611, 4294901760
    %1613 = vmatpush1.msra.mxu0 %v1612
    %1614 = vmatprep.subr.mxu0 0.0
    %v1615 = vand.u32 %v1442, 4294901760
    %v1616 = vsub.f32 %v1442, %v1615
    %v1617 = vand.u32 %v1616, 4294901760
    %v1618 = vsub.f32 %v1616, %v1617
    %v1619 = vand.u32 %v1618, 4294901760
    %1620 = vmatpush1.msra.mxu0 %v1619
    %1621 = vmatprep.subr.mxu0 0.0
    %v1622 = vand.u32 %v1441, 4294901760
    %v1623 = vsub.f32 %v1441, %v1622
    %v1624 = vand.u32 %v1623, 4294901760
    %v1625 = vsub.f32 %v1623, %v1624
    %v1626 = vand.u32 %v1625, 4294901760
    %1627 = vmatpush1.msra.mxu0 %v1626
    %1628 = vmatprep.subr.mxu0 0.0
    %v1629 = vand.u32 %v1440, 4294901760
    %v1630 = vsub.f32 %v1440, %v1629
    %v1631 = vand.u32 %v1630, 4294901760
    %v1632 = vsub.f32 %v1630, %v1631
    %v1633 = vand.u32 %v1632, 4294901760
    %1634 = vmatpush1.msra.mxu0 %v1633
    %1635 = vmatprep.subr.mxu0 0.0
    %v1636 = vand.u32 %v1439, 4294901760
    %v1637 = vsub.f32 %v1439, %v1636
    %v1638 = vand.u32 %v1637, 4294901760
    %v1639 = vsub.f32 %v1637, %v1638
    %v1640 = vand.u32 %v1639, 4294901760
    %1641 = vmatpush1.msra.mxu0 %v1640
    %1642 = vmatprep.subr.mxu0 0.0
    %v1643 = vand.u32 %v1438, 4294901760
    %v1644 = vsub.f32 %v1438, %v1643
    %v1645 = vand.u32 %v1644, 4294901760
    %v1646 = vsub.f32 %v1644, %v1645
    %v1647 = vand.u32 %v1646, 4294901760
    %1648 = vmatpush1.msra.mxu0 %v1647
    %1649 = vmatprep.subr.mxu0 0.0
    %v1650 = vand.u32 %v1437, 4294901760
    %v1651 = vsub.f32 %v1437, %v1650
    %v1652 = vand.u32 %v1651, 4294901760
    %v1653 = vsub.f32 %v1651, %v1652
    %v1654 = vand.u32 %v1653, 4294901760
    %1655 = vmatpush1.msra.mxu0 %v1654
    %1656 = vmatprep.subr.mxu0 0.0
    %1657 = vmatpush2.msra.mxu0 0.0
    %1658 = vmatprep.subr.mxu0 0.0
    %1659 = vmatpush2.msra.mxu0 0.0
    %1660 = vmatprep.subr.mxu0 0.0
    %1661 = vmatpush2.msra.mxu0 0.0
    %1662 = vmatprep.subr.mxu0 0.0
    %1663 = vmatpush2.msra.mxu0 0.0
    %1664 = vmatprep.subr.mxu0 0.0
    %1665 = vmatpush2.msra.mxu0 0.0
    %1666 = vmatprep.subr.mxu0 0.0
    %1667 = vmatpush2.msra.mxu0 0.0
    %1668 = vmatprep.subr.mxu0 0.0
    %1669 = vmatpush2.msra.mxu0 0.0
    %1670 = vmatprep.subr.mxu0 0.0
    %1671 = vmatpush2.msra.mxu0 0.0
    %1672 = vmatprep.subr.mxu0 0.0
    %1673 = vmatpush2.msra.mxu0 0.0
    %1674 = vmatprep.subr.mxu0 0.0
    %1675 = vmatpush2.msra.mxu0 0.0
    %1676 = vmatprep.subr.mxu0 0.0
    %1677 = vmatpush2.msra.mxu0 0.0
    %1678 = vmatprep.subr.mxu0 0.0
    %1679 = vmatpush2.msra.mxu0 0.0
    %1680 = vmatprep.subr.mxu0 0.0
    %1681 = vmatpush2.msra.mxu0 0.0
    %1682 = vmatprep.subr.mxu0 0.0
    %1683 = vmatpush2.msra.mxu0 0.0
    %1684 = vmatprep.subr.mxu0 0.0
    %1685 = vmatpush2.msra.mxu0 0.0
    %1686 = vmatprep.subr.mxu0 0.0
    %1687 = vmatpush2.msra.mxu0 0.0
    %1688 = vmatprep.mubr.f32.mxu0 0.0
    %v1689 = vand.u32 %v1436, 4294901760
    %1690 = vmatmul.mubr.f32.gmra.mxu0 %v1689
    %v1691 = vpop.f32.mrf.mxu0
    %v1692 = vadd.f32 %v1541, %v1691
    %v1693 = vpop.f32.mrf.mxu0
    %1694 = vdwg.mxu0
    %1695 = vmatprep.subr.mxu0 0.0
    %v1696 = vand.u32 %v1452, 4294901760
    %v1697 = vsub.f32 %v1452, %v1696
    %1698 = vmatpush1.msra.mxu0 %v1697
    %1699 = vmatprep.subr.mxu0 0.0
    %v1700 = vand.u32 %v1451, 4294901760
    %v1701 = vsub.f32 %v1451, %v1700
    %1702 = vmatpush1.msra.mxu0 %v1701
    %1703 = vmatprep.subr.mxu0 0.0
    %v1704 = vand.u32 %v1450, 4294901760
    %v1705 = vsub.f32 %v1450, %v1704
    %1706 = vmatpush1.msra.mxu0 %v1705
    %1707 = vmatprep.subr.mxu0 0.0
    %v1708 = vand.u32 %v1449, 4294901760
    %v1709 = vsub.f32 %v1449, %v1708
    %1710 = vmatpush1.msra.mxu0 %v1709
    %1711 = vmatprep.subr.mxu0 0.0
    %v1712 = vand.u32 %v1448, 4294901760
    %v1713 = vsub.f32 %v1448, %v1712
    %1714 = vmatpush1.msra.mxu0 %v1713
    %1715 = vmatprep.subr.mxu0 0.0
    %v1716 = vand.u32 %v1447, 4294901760
    %v1717 = vsub.f32 %v1447, %v1716
    %1718 = vmatpush1.msra.mxu0 %v1717
    %1719 = vmatprep.subr.mxu0 0.0
    %v1720 = vand.u32 %v1446, 4294901760
    %v1721 = vsub.f32 %v1446, %v1720
    %1722 = vmatpush1.msra.mxu0 %v1721
    %1723 = vmatprep.subr.mxu0 0.0
    %v1724 = vand.u32 %v1445, 4294901760
    %v1725 = vsub.f32 %v1445, %v1724
    %1726 = vmatpush1.msra.mxu0 %v1725
    %1727 = vmatprep.subr.mxu0 0.0
    %v1728 = vand.u32 %v1444, 4294901760
    %v1729 = vsub.f32 %v1444, %v1728
    %1730 = vmatpush1.msra.mxu0 %v1729
    %1731 = vmatprep.subr.mxu0 0.0
    %v1732 = vand.u32 %v1443, 4294901760
    %v1733 = vsub.f32 %v1443, %v1732
    %1734 = vmatpush1.msra.mxu0 %v1733
    %1735 = vmatprep.subr.mxu0 0.0
    %v1736 = vand.u32 %v1442, 4294901760
    %v1737 = vsub.f32 %v1442, %v1736
    %1738 = vmatpush1.msra.mxu0 %v1737
    %1739 = vmatprep.subr.mxu0 0.0
    %v1740 = vand.u32 %v1441, 4294901760
    %v1741 = vsub.f32 %v1441, %v1740
    %1742 = vmatpush1.msra.mxu0 %v1741
    %1743 = vmatprep.subr.mxu0 0.0
    %v1744 = vand.u32 %v1440, 4294901760
    %v1745 = vsub.f32 %v1440, %v1744
    %1746 = vmatpush1.msra.mxu0 %v1745
    %1747 = vmatprep.subr.mxu0 0.0
    %v1748 = vand.u32 %v1439, 4294901760
    %v1749 = vsub.f32 %v1439, %v1748
    %1750 = vmatpush1.msra.mxu0 %v1749
    %1751 = vmatprep.subr.mxu0 0.0
    %v1752 = vand.u32 %v1438, 4294901760
    %v1753 = vsub.f32 %v1438, %v1752
    %1754 = vmatpush1.msra.mxu0 %v1753
    %1755 = vmatprep.subr.mxu0 0.0
    %v1756 = vand.u32 %v1437, 4294901760
    %v1757 = vsub.f32 %v1437, %v1756
    %1758 = vmatpush1.msra.mxu0 %v1757
    %1759 = vmatprep.subr.mxu0 0.0
    %1760 = vmatpush2.msra.mxu0 0.0
    %1761 = vmatprep.subr.mxu0 0.0
    %1762 = vmatpush2.msra.mxu0 0.0
    %1763 = vmatprep.subr.mxu0 0.0
    %1764 = vmatpush2.msra.mxu0 0.0
    %1765 = vmatprep.subr.mxu0 0.0
    %1766 = vmatpush2.msra.mxu0 0.0
    %1767 = vmatprep.subr.mxu0 0.0
    %1768 = vmatpush2.msra.mxu0 0.0
    %1769 = vmatprep.subr.mxu0 0.0
    %1770 = vmatpush2.msra.mxu0 0.0
    %1771 = vmatprep.subr.mxu0 0.0
    %1772 = vmatpush2.msra.mxu0 0.0
    %1773 = vmatprep.subr.mxu0 0.0
    %1774 = vmatpush2.msra.mxu0 0.0
    %1775 = vmatprep.subr.mxu0 0.0
    %1776 = vmatpush2.msra.mxu0 0.0
    %1777 = vmatprep.subr.mxu0 0.0
    %1778 = vmatpush2.msra.mxu0 0.0
    %1779 = vmatprep.subr.mxu0 0.0
    %1780 = vmatpush2.msra.mxu0 0.0
    %1781 = vmatprep.subr.mxu0 0.0
    %1782 = vmatpush2.msra.mxu0 0.0
    %1783 = vmatprep.subr.mxu0 0.0
    %1784 = vmatpush2.msra.mxu0 0.0
    %1785 = vmatprep.subr.mxu0 0.0
    %1786 = vmatpush2.msra.mxu0 0.0
    %1787 = vmatprep.subr.mxu0 0.0
    %1788 = vmatpush2.msra.mxu0 0.0
    %1789 = vmatprep.subr.mxu0 0.0
    %1790 = vmatpush2.msra.mxu0 0.0
    %1791 = vmatprep.mubr.f32.mxu0 0.0
    %v1792 = vand.u32 %v1436, 4294901760
    %v1793 = vsub.f32 %v1436, %v1792
    %1794 = vmatmul.mubr.f32.gmra.mxu0 %v1793
    %v1795 = vpop.f32.mrf.mxu0
    %v1796 = vadd.f32 %v1692, %v1795
    %v1797 = vpop.f32.mrf.mxu0
    %1798 = vdwg.mxu0
    %1799 = vmatprep.subr.mxu0 0.0
    %v1800 = vand.u32 %v1452, 4294901760
    %1801 = vmatpush1.msra.mxu0 %v1800
    %1802 = vmatprep.subr.mxu0 0.0
    %v1803 = vand.u32 %v1451, 4294901760
    %1804 = vmatpush1.msra.mxu0 %v1803
    %1805 = vmatprep.subr.mxu0 0.0
    %v1806 = vand.u32 %v1450, 4294901760
    %1807 = vmatpush1.msra.mxu0 %v1806
    %1808 = vmatprep.subr.mxu0 0.0
    %v1809 = vand.u32 %v1449, 4294901760
    %1810 = vmatpush1.msra.mxu0 %v1809
    %1811 = vmatprep.subr.mxu0 0.0
    %v1812 = vand.u32 %v1448, 4294901760
    %1813 = vmatpush1.msra.mxu0 %v1812
    %1814 = vmatprep.subr.mxu0 0.0
    %v1815 = vand.u32 %v1447, 4294901760
    %1816 = vmatpush1.msra.mxu0 %v1815
    %1817 = vmatprep.subr.mxu0 0.0
    %v1818 = vand.u32 %v1446, 4294901760
    %1819 = vmatpush1.msra.mxu0 %v1818
    %1820 = vmatprep.subr.mxu0 0.0
    %v1821 = vand.u32 %v1445, 4294901760
    %1822 = vmatpush1.msra.mxu0 %v1821
    %1823 = vmatprep.subr.mxu0 0.0
    %v1824 = vand.u32 %v1444, 4294901760
    %1825 = vmatpush1.msra.mxu0 %v1824
    %1826 = vmatprep.subr.mxu0 0.0
    %v1827 = vand.u32 %v1443, 4294901760
    %1828 = vmatpush1.msra.mxu0 %v1827
    %1829 = vmatprep.subr.mxu0 0.0
    %v1830 = vand.u32 %v1442, 4294901760
    %1831 = vmatpush1.msra.mxu0 %v1830
    %1832 = vmatprep.subr.mxu0 0.0
    %v1833 = vand.u32 %v1441, 4294901760
    %1834 = vmatpush1.msra.mxu0 %v1833
    %1835 = vmatprep.subr.mxu0 0.0
    %v1836 = vand.u32 %v1440, 4294901760
    %1837 = vmatpush1.msra.mxu0 %v1836
    %1838 = vmatprep.subr.mxu0 0.0
    %v1839 = vand.u32 %v1439, 4294901760
    %1840 = vmatpush1.msra.mxu0 %v1839
    %1841 = vmatprep.subr.mxu0 0.0
    %v1842 = vand.u32 %v1438, 4294901760
    %1843 = vmatpush1.msra.mxu0 %v1842
    %1844 = vmatprep.subr.mxu0 0.0
    %v1845 = vand.u32 %v1437, 4294901760
    %1846 = vmatpush1.msra.mxu0 %v1845
    %1847 = vmatprep.subr.mxu0 0.0
    %1848 = vmatpush2.msra.mxu0 0.0
    %1849 = vmatprep.subr.mxu0 0.0
    %1850 = vmatpush2.msra.mxu0 0.0
    %1851 = vmatprep.subr.mxu0 0.0
    %1852 = vmatpush2.msra.mxu0 0.0
    %1853 = vmatprep.subr.mxu0 0.0
    %1854 = vmatpush2.msra.mxu0 0.0
    %1855 = vmatprep.subr.mxu0 0.0
    %1856 = vmatpush2.msra.mxu0 0.0
    %1857 = vmatprep.subr.mxu0 0.0
    %1858 = vmatpush2.msra.mxu0 0.0
    %1859 = vmatprep.subr.mxu0 0.0
    %1860 = vmatpush2.msra.mxu0 0.0
    %1861 = vmatprep.subr.mxu0 0.0
    %1862 = vmatpush2.msra.mxu0 0.0
    %1863 = vmatprep.subr.mxu0 0.0
    %1864 = vmatpush2.msra.mxu0 0.0
    %1865 = vmatprep.subr.mxu0 0.0
    %1866 = vmatpush2.msra.mxu0 0.0
    %1867 = vmatprep.subr.mxu0 0.0
    %1868 = vmatpush2.msra.mxu0 0.0
    %1869 = vmatprep.subr.mxu0 0.0
    %1870 = vmatpush2.msra.mxu0 0.0
    %1871 = vmatprep.subr.mxu0 0.0
    %1872 = vmatpush2.msra.mxu0 0.0
    %1873 = vmatprep.subr.mxu0 0.0
    %1874 = vmatpush2.msra.mxu0 0.0
    %1875 = vmatprep.subr.mxu0 0.0
    %1876 = vmatpush2.msra.mxu0 0.0
    %1877 = vmatprep.subr.mxu0 0.0
    %1878 = vmatpush2.msra.mxu0 0.0
    %1879 = vmatprep.mubr.f32.mxu0 0.0
    %v1880 = vand.u32 %v1436, 4294901760
    %v1881 = vsub.f32 %v1436, %v1880
    %v1882 = vand.u32 %v1881, 4294901760
    %1883 = vmatmul.mubr.f32.gmra.mxu0 %v1882
    %v1884 = vpop.f32.mrf.mxu0
    %v1885 = vadd.f32 %v1796, %v1884
    %v1886 = vpop.f32.mrf.mxu0
    %1887 = vdwg.mxu0
    %1888 = vmatprep.subr.mxu0 0.0
    %v1889 = vand.u32 %v1452, 4294901760
    %v1890 = vsub.f32 %v1452, %v1889
    %v1891 = vand.u32 %v1890, 4294901760
    %1892 = vmatpush1.msra.mxu0 %v1891
    %1893 = vmatprep.subr.mxu0 0.0
    %v1894 = vand.u32 %v1451, 4294901760
    %v1895 = vsub.f32 %v1451, %v1894
    %v1896 = vand.u32 %v1895, 4294901760
    %1897 = vmatpush1.msra.mxu0 %v1896
    %1898 = vmatprep.subr.mxu0 0.0
    %v1899 = vand.u32 %v1450, 4294901760
    %v1900 = vsub.f32 %v1450, %v1899
    %v1901 = vand.u32 %v1900, 4294901760
    %1902 = vmatpush1.msra.mxu0 %v1901
    %1903 = vmatprep.subr.mxu0 0.0
    %v1904 = vand.u32 %v1449, 4294901760
    %v1905 = vsub.f32 %v1449, %v1904
    %v1906 = vand.u32 %v1905, 4294901760
    %1907 = vmatpush1.msra.mxu0 %v1906
    %1908 = vmatprep.subr.mxu0 0.0
    %v1909 = vand.u32 %v1448, 4294901760
    %v1910 = vsub.f32 %v1448, %v1909
    %v1911 = vand.u32 %v1910, 4294901760
    %1912 = vmatpush1.msra.mxu0 %v1911
    %1913 = vmatprep.subr.mxu0 0.0
    %v1914 = vand.u32 %v1447, 4294901760
    %v1915 = vsub.f32 %v1447, %v1914
    %v1916 = vand.u32 %v1915, 4294901760
    %1917 = vmatpush1.msra.mxu0 %v1916
    %1918 = vmatprep.subr.mxu0 0.0
    %v1919 = vand.u32 %v1446, 4294901760
    %v1920 = vsub.f32 %v1446, %v1919
    %v1921 = vand.u32 %v1920, 4294901760
    %1922 = vmatpush1.msra.mxu0 %v1921
    %1923 = vmatprep.subr.mxu0 0.0
    %v1924 = vand.u32 %v1445, 4294901760
    %v1925 = vsub.f32 %v1445, %v1924
    %v1926 = vand.u32 %v1925, 4294901760
    %1927 = vmatpush1.msra.mxu0 %v1926
    %1928 = vmatprep.subr.mxu0 0.0
    %v1929 = vand.u32 %v1444, 4294901760
    %v1930 = vsub.f32 %v1444, %v1929
    %v1931 = vand.u32 %v1930, 4294901760
    %1932 = vmatpush1.msra.mxu0 %v1931
    %1933 = vmatprep.subr.mxu0 0.0
    %v1934 = vand.u32 %v1443, 4294901760
    %v1935 = vsub.f32 %v1443, %v1934
    %v1936 = vand.u32 %v1935, 4294901760
    %1937 = vmatpush1.msra.mxu0 %v1936
    %1938 = vmatprep.subr.mxu0 0.0
    %v1939 = vand.u32 %v1442, 4294901760
    %v1940 = vsub.f32 %v1442, %v1939
    %v1941 = vand.u32 %v1940, 4294901760
    %1942 = vmatpush1.msra.mxu0 %v1941
    %1943 = vmatprep.subr.mxu0 0.0
    %v1944 = vand.u32 %v1441, 4294901760
    %v1945 = vsub.f32 %v1441, %v1944
    %v1946 = vand.u32 %v1945, 4294901760
    %1947 = vmatpush1.msra.mxu0 %v1946
    %1948 = vmatprep.subr.mxu0 0.0
    %v1949 = vand.u32 %v1440, 4294901760
    %v1950 = vsub.f32 %v1440, %v1949
    %v1951 = vand.u32 %v1950, 4294901760
    %1952 = vmatpush1.msra.mxu0 %v1951
    %1953 = vmatprep.subr.mxu0 0.0
    %v1954 = vand.u32 %v1439, 4294901760
    %v1955 = vsub.f32 %v1439, %v1954
    %v1956 = vand.u32 %v1955, 4294901760
    %1957 = vmatpush1.msra.mxu0 %v1956
    %1958 = vmatprep.subr.mxu0 0.0
    %v1959 = vand.u32 %v1438, 4294901760
    %v1960 = vsub.f32 %v1438, %v1959
    %v1961 = vand.u32 %v1960, 4294901760
    %1962 = vmatpush1.msra.mxu0 %v1961
    %1963 = vmatprep.subr.mxu0 0.0
    %v1964 = vand.u32 %v1437, 4294901760
    %v1965 = vsub.f32 %v1437, %v1964
    %v1966 = vand.u32 %v1965, 4294901760
    %1967 = vmatpush1.msra.mxu0 %v1966
    %1968 = vmatprep.subr.mxu0 0.0
    %1969 = vmatpush2.msra.mxu0 0.0
    %1970 = vmatprep.subr.mxu0 0.0
    %1971 = vmatpush2.msra.mxu0 0.0
    %1972 = vmatprep.subr.mxu0 0.0
    %1973 = vmatpush2.msra.mxu0 0.0
    %1974 = vmatprep.subr.mxu0 0.0
    %1975 = vmatpush2.msra.mxu0 0.0
    %1976 = vmatprep.subr.mxu0 0.0
    %1977 = vmatpush2.msra.mxu0 0.0
    %1978 = vmatprep.subr.mxu0 0.0
    %1979 = vmatpush2.msra.mxu0 0.0
    %1980 = vmatprep.subr.mxu0 0.0
    %1981 = vmatpush2.msra.mxu0 0.0
    %1982 = vmatprep.subr.mxu0 0.0
    %1983 = vmatpush2.msra.mxu0 0.0
    %1984 = vmatprep.subr.mxu0 0.0
    %1985 = vmatpush2.msra.mxu0 0.0
    %1986 = vmatprep.subr.mxu0 0.0
    %1987 = vmatpush2.msra.mxu0 0.0
    %1988 = vmatprep.subr.mxu0 0.0
    %1989 = vmatpush2.msra.mxu0 0.0
    %1990 = vmatprep.subr.mxu0 0.0
    %1991 = vmatpush2.msra.mxu0 0.0
    %1992 = vmatprep.subr.mxu0 0.0
    %1993 = vmatpush2.msra.mxu0 0.0
    %1994 = vmatprep.subr.mxu0 0.0
    %1995 = vmatpush2.msra.mxu0 0.0
    %1996 = vmatprep.subr.mxu0 0.0
    %1997 = vmatpush2.msra.mxu0 0.0
    %1998 = vmatprep.subr.mxu0 0.0
    %1999 = vmatpush2.msra.mxu0 0.0
    %2000 = vmatprep.mubr.f32.mxu0 0.0
    %v2001 = vand.u32 %v1436, 4294901760
    %2002 = vmatmul.mubr.f32.gmra.mxu0 %v2001
    %v2003 = vpop.f32.mrf.mxu0
    %v2004 = vadd.f32 %v1885, %v2003
    %v2005 = vpop.f32.mrf.mxu0
    %2006 = vdwg.mxu0
    %2007 = vmatprep.subr.mxu0 0.0
    %v2008 = vand.u32 %v1452, 4294901760
    %2009 = vmatpush1.msra.mxu0 %v2008
    %2010 = vmatprep.subr.mxu0 0.0
    %v2011 = vand.u32 %v1451, 4294901760
    %2012 = vmatpush1.msra.mxu0 %v2011
    %2013 = vmatprep.subr.mxu0 0.0
    %v2014 = vand.u32 %v1450, 4294901760
    %2015 = vmatpush1.msra.mxu0 %v2014
    %2016 = vmatprep.subr.mxu0 0.0
    %v2017 = vand.u32 %v1449, 4294901760
    %2018 = vmatpush1.msra.mxu0 %v2017
    %2019 = vmatprep.subr.mxu0 0.0
    %v2020 = vand.u32 %v1448, 4294901760
    %2021 = vmatpush1.msra.mxu0 %v2020
    %2022 = vmatprep.subr.mxu0 0.0
    %v2023 = vand.u32 %v1447, 4294901760
    %2024 = vmatpush1.msra.mxu0 %v2023
    %2025 = vmatprep.subr.mxu0 0.0
    %v2026 = vand.u32 %v1446, 4294901760
    %2027 = vmatpush1.msra.mxu0 %v2026
    %2028 = vmatprep.subr.mxu0 0.0
    %v2029 = vand.u32 %v1445, 4294901760
    %2030 = vmatpush1.msra.mxu0 %v2029
    %2031 = vmatprep.subr.mxu0 0.0
    %v2032 = vand.u32 %v1444, 4294901760
    %2033 = vmatpush1.msra.mxu0 %v2032
    %2034 = vmatprep.subr.mxu0 0.0
    %v2035 = vand.u32 %v1443, 4294901760
    %2036 = vmatpush1.msra.mxu0 %v2035
    %2037 = vmatprep.subr.mxu0 0.0
    %v2038 = vand.u32 %v1442, 4294901760
    %2039 = vmatpush1.msra.mxu0 %v2038
    %2040 = vmatprep.subr.mxu0 0.0
    %v2041 = vand.u32 %v1441, 4294901760
    %2042 = vmatpush1.msra.mxu0 %v2041
    %2043 = vmatprep.subr.mxu0 0.0
    %v2044 = vand.u32 %v1440, 4294901760
    %2045 = vmatpush1.msra.mxu0 %v2044
    %2046 = vmatprep.subr.mxu0 0.0
    %v2047 = vand.u32 %v1439, 4294901760
    %2048 = vmatpush1.msra.mxu0 %v2047
    %2049 = vmatprep.subr.mxu0 0.0
    %v2050 = vand.u32 %v1438, 4294901760
    %2051 = vmatpush1.msra.mxu0 %v2050
    %2052 = vmatprep.subr.mxu0 0.0
    %v2053 = vand.u32 %v1437, 4294901760
    %2054 = vmatpush1.msra.mxu0 %v2053
    %2055 = vmatprep.subr.mxu0 0.0
    %2056 = vmatpush2.msra.mxu0 0.0
    %2057 = vmatprep.subr.mxu0 0.0
    %2058 = vmatpush2.msra.mxu0 0.0
    %2059 = vmatprep.subr.mxu0 0.0
    %2060 = vmatpush2.msra.mxu0 0.0
    %2061 = vmatprep.subr.mxu0 0.0
    %2062 = vmatpush2.msra.mxu0 0.0
    %2063 = vmatprep.subr.mxu0 0.0
    %2064 = vmatpush2.msra.mxu0 0.0
    %2065 = vmatprep.subr.mxu0 0.0
    %2066 = vmatpush2.msra.mxu0 0.0
    %2067 = vmatprep.subr.mxu0 0.0
    %2068 = vmatpush2.msra.mxu0 0.0
    %2069 = vmatprep.subr.mxu0 0.0
    %2070 = vmatpush2.msra.mxu0 0.0
    %2071 = vmatprep.subr.mxu0 0.0
    %2072 = vmatpush2.msra.mxu0 0.0
    %2073 = vmatprep.subr.mxu0 0.0
    %2074 = vmatpush2.msra.mxu0 0.0
    %2075 = vmatprep.subr.mxu0 0.0
    %2076 = vmatpush2.msra.mxu0 0.0
    %2077 = vmatprep.subr.mxu0 0.0
    %2078 = vmatpush2.msra.mxu0 0.0
    %2079 = vmatprep.subr.mxu0 0.0
    %2080 = vmatpush2.msra.mxu0 0.0
    %2081 = vmatprep.subr.mxu0 0.0
    %2082 = vmatpush2.msra.mxu0 0.0
    %2083 = vmatprep.subr.mxu0 0.0
    %2084 = vmatpush2.msra.mxu0 0.0
    %2085 = vmatprep.subr.mxu0 0.0
    %2086 = vmatpush2.msra.mxu0 0.0
    %2087 = vmatprep.mubr.f32.mxu0 0.0
    %v2088 = vand.u32 %v1436, 4294901760
    %2089 = vmatmul.mubr.f32.gmra.mxu0 %v2088
    %v2090 = vpop.f32.mrf.mxu0
    %v2091 = vadd.f32 %v2004, %v2090
    %v2092 = vpop.f32.mrf.mxu0
    %2093 = vdwg.mxu0
    %v2094 = vrcp.pop %v2091
    %v2095 = vmul.f32 %v1432, %v2094
    %2096 = vst [vmem:[#allocation11] sm:$0x1] %v2095
    // Predicated region
    $region66: #{tpu_custom_call.1} parent=1 // pred_check
      _
    $region67: #{tpu_custom_call.1} parent=1 // pred_check_branch
      %2098 = sbr.rel (0) target = $region69
    $region68: #{tpu_custom_call.1} parent=1 // pred_region
      %s2100 = ssub.s32 16, 16
      %2101 = vsyncadd [#allocation4], %s2100
      %s2103 = sshll.u32 [#allocation11], 4
      %s2104 = int_to_ptr.vmem [resolvable:$true] %s2103
      %2106 = dma.vmem_to_hbm [thread:$0]  %s2104, 16, %s11, [#allocation4]
    $region69: #{tpu_custom_call.1} parent=1 // pred_fallthru
      _
    // Predicated region
    $region70: #{tpu_custom_call.1} parent=1 // pred_check
      _
    $region71: #{tpu_custom_call.1} parent=1 // pred_check_branch
      %2108 = sbr.rel (0) target = $region73
    $region72: #{tpu_custom_call.1} parent=1 // pred_region
      %2109 = dma.done [#allocation4], 16
    $region73: #{tpu_custom_call.1} parent=1 // pred_fallthru
      _
    %2110 = vsyncpa [#allocation3], 1
    %2111 = vsyncpa [#allocation6], 1
    %2112 = vsyncpa [#allocation9], 1
    %2113 = vsyncpa [#allocation4], 1

</llo_original>
